<compile_context>
chip_gen: v7x
topology: tpu7x:2x2x1
jax: 0.10.0
libtpu: 0.0.40
codegen_flags: <defaults>
</compile_context>

<pallas_src>
import functools

import numpy as np
import jax
import jax.numpy as jnp
from jax import lax
from jax.experimental import pallas as pl
from jax.experimental.pallas import tpu as pltpu


class Options:
    inputScale = 16
    numNeighbors = 6
    numScales = 3


# --------------------- in-kernel constant constructors ----------------------
# All selection / pooling matrices are built inside the kernel from broadcasted
# iotas.  Only +, -, *, &, ==, | on int32 vectors are used (no int div / shift),
# which lower cleanly in Mosaic, and nothing is DMA'd from HBM.

def _iota2(shape, dim):
    return lax.broadcasted_iota(jnp.int32, shape, dim)


def _pool_row_mat(d):
    """(d//2, d) matrix R with R[r, s] = 1 iff s in {2r, 2r+1}  (sum over D-pairs)."""
    r = _iota2((d // 2, d), 0)
    s = _iota2((d // 2, d), 1)
    return ((s == 2 * r) | (s == 2 * r + 1)).astype(jnp.float32)


def _pool_col_mat(h, w):
    """(h*w, (h//2)*(w//2)) matrix C summing the 2x2 (h, w) children of each
    coarse cell of the flattened lane axis (column index = h*w + w)."""
    hw, w2 = h * w, w // 2
    hw4 = (h // 2) * w2
    s = _iota2((hw, hw4), 0)            # fine column index   = h_s*w  + w_s
    c = _iota2((hw, hw4), 1)            # coarse column index = h_c*w2 + w_c
    ws = s & (w - 1)                    # w_s
    sh = s - ws                         # h_s * w
    wc = c & (w2 - 1)                   # w_c
    ch = 4 * (c - wc)                   # 2 * h_c * w   (since w == 2*w2)
    cond_h = (sh == ch) | (sh == ch + w)            # h_s in {2*h_c, 2*h_c+1}
    cond_w = (ws == 2 * wc) | (ws == 2 * wc + 1)    # w_s in {2*w_c, 2*w_c+1}
    return (cond_h & cond_w).astype(jnp.float32)


def _row_shift_mats(d):
    """(d, d) one-hot matrices picking row d-1 / d+1 (zero fill at the boundary)."""
    r = _iota2((d, d), 0)
    s = _iota2((d, d), 1)
    return (s == r - 1).astype(jnp.float32), (s == r + 1).astype(jnp.float32)


def _col_shift_mats(h, w):
    """(h*w, h*w) one-hot matrices picking the h-1 / h+1 / w-1 / w+1 neighbour
    along the flattened (h*w) lane axis, zero-filled at the grid boundary."""
    hw = h * w
    s = _iota2((hw, hw), 0)
    c = _iota2((hw, hw), 1)
    wcol = c & (w - 1)                  # w coordinate of the destination column
    m_hm = (s == c - w).astype(jnp.float32)
    m_hp = (s == c + w).astype(jnp.float32)
    m_wm = ((s == c - 1) & (wcol != 0)).astype(jnp.float32)
    m_wp = ((s == c + 1) & (wcol != w - 1)).astype(jnp.float32)
    return m_hm, m_hp, m_wm, m_wp


# ----------------------------- fused Pallas kernel --------------------------

def _neighbor_gt_kernel(num_scales, size, lblsum_ref, ptcnt_ref, *out_refs):
    """All scales in one shot.  Layout of every 2-D grid array is (D, H*W) so
    the lane axis is 256-wide at scale 0.  out_refs alternate
    (features (2*nn, d, h*w), count (d, h*w)) per scale."""
    f32 = jnp.float32
    lbl_sum = lblsum_ref[...]           # raw per-voxel label sums from the scatter
    pt_cnt = ptcnt_ref[...]             # raw per-voxel point counts

    # scn.InputLayer(mode=4): duplicate coordinates average their labels.
    ls = jnp.where(pt_cnt > 0.0, lbl_sum / jnp.maximum(pt_cnt, 1.0), 0.0)
    cnt = (pt_cnt > 0.0).astype(f32)    # active-site indicator / pooled count

    d = h = w = size
    for scale in range(num_scales):
        if scale > 0:
            # AveragePooling(2**scale) + "features[:,:1]/features[:,1:2]" ==
            # cascaded 2x2x2 SUM pools of (label_mean, active_count), divide later.
            rmat = _pool_row_mat(d)                  # (d/2, d)
            cmat = _pool_col_mat(h, w)               # (h*w, h*w/4)
            ls = jnp.dot(jnp.dot(rmat, ls, preferred_element_type=f32), cmat,
                         preferred_element_type=f32)
            cnt = jnp.dot(jnp.dot(rmat, cnt, preferred_element_type=f32), cmat,
                          preferred_element_type=f32)
            d, h, w = d // 2, h // 2, w // 2

        act = (cnt > 0.0).astype(f32)
        # NOTE: exact divide on purpose -- the |.|<0.01 affinity threshold is
        # precision sensitive, so no approx reciprocal / bf16 for the labels.
        lbl = jnp.where(cnt > 0.0, ls / jnp.maximum(cnt, 1.0), 0.0)

        # 6-neighbour one-hot "submanifold conv": D-shifts are left matmuls with
        # tiny (d, d) one-hots, H/W-shifts are lane-dense right matmuls with
        # (h*w, h*w) one-hots.  Matrices are iota-built above (no HBM traffic).
        m_dm, m_dp = _row_shift_mats(d)
        m_hm, m_hp, m_wm, m_wp = _col_shift_mats(h, w)
        nbrs = jnp.stack(
            [jnp.dot(m_dm, lbl, preferred_element_type=f32),   # d-1
             jnp.dot(m_dp, lbl, preferred_element_type=f32),   # d+1
             jnp.dot(lbl, m_hm, preferred_element_type=f32),   # h-1
             jnp.dot(lbl, m_hp, preferred_element_type=f32),   # h+1
             jnp.dot(lbl, m_wm, preferred_element_type=f32),   # w-1
             jnp.dot(lbl, m_wp, preferred_element_type=f32)],  # w+1
            axis=0)                                            # (6, d, h*w)

        aff = (jnp.abs(nbrs - lbl[None]) < 0.01).astype(f32) * act[None]
        msk = (nbrs > 0.0).astype(f32) * act[None]
        out_refs[2 * scale][...] = jnp.concatenate([aff, msk], axis=0)  # one store
        out_refs[2 * scale + 1][...] = cnt


# ----------------------------- wrapper ---------------------------------------

def _full_spec(shape):
    n = len(shape)
    return pl.BlockSpec(shape, lambda *_: (0,) * n)


def neighbor_gt_forward(coords, instance_gt, options):
    """Returns, per scale, (dense features (2*numNeighbors, D, H*W), active count)."""
    s = options.inputScale
    nn_ = options.numNeighbors
    ns = options.numScales
    assert nn_ == 6                      # the PyTorch module only defines 6 offsets
    assert (s & (s - 1)) == 0 and s % (1 << (ns - 1)) == 0

    # scn.InputLayer scatter stays as a tiny XLA scatter in front of the kernel.
    labels = instance_gt.astype(jnp.float32) + 1.0
    flat = (coords[:, 0] * s + coords[:, 1]) * s + coords[:, 2]
    lbl_sum = jnp.zeros((s * s * s,), jnp.float32).at[flat].add(labels)
    pt_cnt = jnp.zeros((s * s * s,), jnp.float32).at[flat].add(1.0)
    # Lane-dense (D, H*W) layout: 256 voxels on the lane axis at scale 0.
    lbl_sum = lbl_sum.reshape(s, s * s)
    pt_cnt = pt_cnt.reshape(s, s * s)

    out_shapes, out_specs = [], []
    for scale in range(ns):
        dd = s >> scale
        feat_shape = (2 * nn_, dd, dd * dd)
        cnt_shape = (dd, dd * dd)
        out_shapes += [jax.ShapeDtypeStruct(feat_shape, jnp.float32),
                       jax.ShapeDtypeStruct(cnt_shape, jnp.float32)]
        out_specs += [_full_spec(feat_shape), _full_spec(cnt_shape)]

    outs = pl.pallas_call(
        functools.partial(_neighbor_gt_kernel, ns, s),
        out_shape=tuple(out_shapes),
        grid=(1,),
        in_specs=[_full_spec((s, s * s)), _full_spec((s, s * s))],
        out_specs=tuple(out_specs),
        compiler_params=pltpu.CompilerParams(dimension_semantics=("arbitrary",)),
    )(lbl_sum, pt_cnt)
    return [(outs[2 * i], outs[2 * i + 1]) for i in range(ns)]


# --------------------------- numpy reference --------------------------------

def ref_forward(coords_np, gt_np, options):
    s = options.inputScale
    lbl_sum = np.zeros((s, s, s), np.float32)
    pt_cnt = np.zeros((s, s, s), np.float32)
    for (d, h, w), g in zip(coords_np, gt_np):
        lbl_sum[d, h, w] += float(g) + 1.0
        pt_cnt[d, h, w] += 1.0
    ls = np.where(pt_cnt > 0, lbl_sum / np.maximum(pt_cnt, 1.0), 0.0).astype(np.float32)
    cnt = (pt_cnt > 0).astype(np.float32)

    offsets = [(-1, 0, 0), (1, 0, 0), (0, -1, 0), (0, 1, 0), (0, 0, -1), (0, 0, 1)]
    outs = []
    for scale in range(options.numScales):
        if scale > 0:
            dd, hh, ww = ls.shape
            ls = ls.reshape(dd // 2, 2, hh // 2, 2, ww // 2, 2).sum(axis=(1, 3, 5))
            cnt = cnt.reshape(dd // 2, 2, hh // 2, 2, ww // 2, 2).sum(axis=(1, 3, 5))
        dd, hh, ww = ls.shape
        active = cnt > 0
        lbl = np.where(active, ls / np.maximum(cnt, 1.0), 0.0).astype(np.float32)
        lp = np.zeros((dd + 2, hh + 2, ww + 2), np.float32)
        lp[1:-1, 1:-1, 1:-1] = lbl
        out = np.zeros((2 * options.numNeighbors, dd, hh, ww), np.float32)
        for k, (od, oh, ow) in enumerate(offsets):
            nv = lp[1 + od:1 + od + dd, 1 + oh:1 + oh + hh, 1 + ow:1 + ow + ww]
            out[k] = ((np.abs(nv - lbl) < 0.01) & active).astype(np.float32)
            out[options.numNeighbors + k] = ((nv > 0) & active).astype(np.float32)
        outs.append(out)
    return outs


# ------------------------------- main ---------------------------------------

if __name__ == "__main__":
    opts = Options()
    key = jax.random.PRNGKey(0)
    k1, k2 = jax.random.split(key)
    n_pts = 128
    coords = jax.random.randint(k1, (n_pts, 3), 0, opts.inputScale, dtype=jnp.int32)
    instance_gt = jax.random.randint(k2, (n_pts,), 0, 5, dtype=jnp.int32)

    fwd = jax.jit(lambda c, g: neighbor_gt_forward(c, g, opts))
    outs = jax.block_until_ready(fwd(coords, instance_gt))

    # verify against a dense numpy reference of the same semantics
    refs = ref_forward(np.asarray(coords), np.asarray(instance_gt), opts)
    for scale, ((dense, _cnt), ref) in enumerate(zip(outs, refs)):
        dim = opts.inputScale >> scale
        got = np.asarray(dense).reshape(2 * opts.numNeighbors, dim, dim, dim)
        assert got.shape == ref.shape
        assert np.allclose(got, ref), f"mismatch at scale {scale}"

    print("KERNEL_OK")
</pallas_src>

<mosaic_0001>
module attributes {stable_mosaic.version = 11 : i64} {
  func.func private @main(%arg0: i32) attributes {dimension_semantics = [#tpu.dimension_semantics<core_parallel>], iteration_bounds = array<i64: 2>, tpu.core_type = #tpu.core_type<sc_scalar_subcore>, window_params = []} {
    return
  }
}

module attributes {stable_mosaic.version = 11 : i64} {
  func.func private @main(%arg0: i32) attributes {dimension_semantics = [#tpu.dimension_semantics<core_parallel>], iteration_bounds = array<i64: 2>, tpu.core_type = #tpu.core_type<sc_scalar_subcore>, window_params = []} {
    return
  }
}

module attributes {stable_mosaic.version = 11 : i64} {
  func.func @_neighbor_gt_kernel(%arg0: i32, %arg1: memref<16x256xf32, #tpu.memory_space<vmem>>, %arg2: memref<16x256xf32, #tpu.memory_space<vmem>>, %arg3: memref<12x16x256xf32, #tpu.memory_space<vmem>>, %arg4: memref<16x256xf32, #tpu.memory_space<vmem>>, %arg5: memref<12x8x64xf32, #tpu.memory_space<vmem>>, %arg6: memref<8x64xf32, #tpu.memory_space<vmem>>, %arg7: memref<12x4x16xf32, #tpu.memory_space<vmem>>, %arg8: memref<4x16xf32, #tpu.memory_space<vmem>>) attributes {dimension_semantics = [#tpu.dimension_semantics<arbitrary>], iteration_bounds = array<i64: 1>, scalar_prefetch = 0 : i64, scratch_operands = 0 : i64, tpu.core_type = #tpu.core_type<tc>, window_params = [{pipeline_mode = #tpu.pipeline_mode<synchronous>, transform_indices = @transform_0, window_bounds = array<i64: 16, 256>}, {pipeline_mode = #tpu.pipeline_mode<synchronous>, transform_indices = @transform_1, window_bounds = array<i64: 16, 256>}, {pipeline_mode = #tpu.pipeline_mode<synchronous>, transform_indices = @transform_2, window_bounds = array<i64: 12, 16, 256>}, {pipeline_mode = #tpu.pipeline_mode<synchronous>, transform_indices = @transform_3, window_bounds = array<i64: 16, 256>}, {pipeline_mode = #tpu.pipeline_mode<synchronous>, transform_indices = @transform_4, window_bounds = array<i64: 12, 8, 64>}, {pipeline_mode = #tpu.pipeline_mode<synchronous>, transform_indices = @transform_5, window_bounds = array<i64: 8, 64>}, {pipeline_mode = #tpu.pipeline_mode<synchronous>, transform_indices = @transform_6, window_bounds = array<i64: 12, 4, 16>}, {pipeline_mode = #tpu.pipeline_mode<synchronous>, transform_indices = @transform_7, window_bounds = array<i64: 4, 16>}]} {
    %c0 = arith.constant 0 : index
    %c0_0 = arith.constant 0 : index
    %0 = vector.load %arg1[%c0, %c0_0] : memref<16x256xf32, #tpu.memory_space<vmem>>, vector<16x256xf32>
    %c0_1 = arith.constant 0 : index
    %c0_2 = arith.constant 0 : index
    %1 = vector.load %arg2[%c0_1, %c0_2] : memref<16x256xf32, #tpu.memory_space<vmem>>, vector<16x256xf32>
    %cst = arith.constant 0.000000e+00 : f32
    %2 = vector.broadcast %cst : f32 to vector<16x256xf32>
    %3 = arith.cmpf ogt, %1, %2 : vector<16x256xf32>
    %cst_3 = arith.constant 1.000000e+00 : f32
    %4 = vector.broadcast %cst_3 : f32 to vector<16x256xf32>
    %5 = arith.maximumf %1, %4 : vector<16x256xf32>
    %6 = arith.divf %0, %5 : vector<16x256xf32>
    %cst_4 = arith.constant 0.000000e+00 : f32
    %7 = vector.broadcast %cst_4 : f32 to vector<16x256xf32>
    %8 = arith.select %3, %6, %7 : vector<16x256xi1>, vector<16x256xf32>
    %cst_5 = arith.constant 0.000000e+00 : f32
    %9 = vector.broadcast %cst_5 : f32 to vector<16x256xf32>
    %10 = arith.cmpf ogt, %1, %9 : vector<16x256xf32>
    %11 = arith.extui %10 : vector<16x256xi1> to vector<16x256xi32>
    %12 = arith.sitofp %11 : vector<16x256xi32> to vector<16x256xf32>
    %cst_6 = arith.constant 0.000000e+00 : f32
    %13 = vector.broadcast %cst_6 : f32 to vector<16x256xf32>
    %14 = arith.cmpf ogt, %12, %13 : vector<16x256xf32>
    %15 = arith.extui %14 : vector<16x256xi1> to vector<16x256xi32>
    %16 = arith.sitofp %15 : vector<16x256xi32> to vector<16x256xf32>
    %cst_7 = arith.constant 0.000000e+00 : f32
    %17 = vector.broadcast %cst_7 : f32 to vector<16x256xf32>
    %18 = arith.cmpf ogt, %12, %17 : vector<16x256xf32>
    %cst_8 = arith.constant 1.000000e+00 : f32
    %19 = vector.broadcast %cst_8 : f32 to vector<16x256xf32>
    %20 = arith.maximumf %12, %19 : vector<16x256xf32>
    %21 = arith.divf %8, %20 : vector<16x256xf32>
    %cst_9 = arith.constant 0.000000e+00 : f32
    %22 = vector.broadcast %cst_9 : f32 to vector<16x256xf32>
    %23 = arith.select %18, %21, %22 : vector<16x256xi1>, vector<16x256xf32>
    %24 = tpu.iota {dimensions = array<i32: 0>} : vector<16x16xi32>
    %25 = tpu.iota {dimensions = array<i32: 1>} : vector<16x16xi32>
    %c1_i32 = arith.constant 1 : i32
    %26 = vector.broadcast %c1_i32 : i32 to vector<16x16xi32>
    %27 = arith.subi %24, %26 : vector<16x16xi32>
    %28 = arith.cmpi eq, %25, %27 : vector<16x16xi32>
    %29 = arith.extui %28 : vector<16x16xi1> to vector<16x16xi32>
    %30 = arith.sitofp %29 : vector<16x16xi32> to vector<16x16xf32>
    %c1_i32_10 = arith.constant 1 : i32
    %31 = vector.broadcast %c1_i32_10 : i32 to vector<16x16xi32>
    %32 = arith.addi %24, %31 : vector<16x16xi32>
    %33 = arith.cmpi eq, %25, %32 : vector<16x16xi32>
    %34 = arith.extui %33 : vector<16x16xi1> to vector<16x16xi32>
    %35 = arith.sitofp %34 : vector<16x16xi32> to vector<16x16xf32>
    %36 = tpu.iota {dimensions = array<i32: 0>} : vector<256x256xi32>
    %37 = tpu.iota {dimensions = array<i32: 1>} : vector<256x256xi32>
    %c15_i32 = arith.constant 15 : i32
    %38 = vector.broadcast %c15_i32 : i32 to vector<256x256xi32>
    %39 = arith.andi %37, %38 : vector<256x256xi32>
    %c16_i32 = arith.constant 16 : i32
    %40 = vector.broadcast %c16_i32 : i32 to vector<256x256xi32>
    %41 = arith.subi %37, %40 : vector<256x256xi32>
    %42 = arith.cmpi eq, %36, %41 : vector<256x256xi32>
    %43 = arith.extui %42 : vector<256x256xi1> to vector<256x256xi32>
    %44 = arith.sitofp %43 : vector<256x256xi32> to vector<256x256xf32>
    %c16_i32_11 = arith.constant 16 : i32
    %45 = vector.broadcast %c16_i32_11 : i32 to vector<256x256xi32>
    %46 = arith.addi %37, %45 : vector<256x256xi32>
    %47 = arith.cmpi eq, %36, %46 : vector<256x256xi32>
    %48 = arith.extui %47 : vector<256x256xi1> to vector<256x256xi32>
    %49 = arith.sitofp %48 : vector<256x256xi32> to vector<256x256xf32>
    %c1_i32_12 = arith.constant 1 : i32
    %50 = vector.broadcast %c1_i32_12 : i32 to vector<256x256xi32>
    %51 = arith.subi %37, %50 : vector<256x256xi32>
    %52 = arith.cmpi eq, %36, %51 : vector<256x256xi32>
    %c0_i32 = arith.constant 0 : i32
    %53 = vector.broadcast %c0_i32 : i32 to vector<256x256xi32>
    %54 = arith.cmpi ne, %39, %53 : vector<256x256xi32>
    %55 = arith.andi %52, %54 : vector<256x256xi1>
    %56 = arith.extui %55 : vector<256x256xi1> to vector<256x256xi32>
    %57 = arith.sitofp %56 : vector<256x256xi32> to vector<256x256xf32>
    %c1_i32_13 = arith.constant 1 : i32
    %58 = vector.broadcast %c1_i32_13 : i32 to vector<256x256xi32>
    %59 = arith.addi %37, %58 : vector<256x256xi32>
    %60 = arith.cmpi eq, %36, %59 : vector<256x256xi32>
    %c15_i32_14 = arith.constant 15 : i32
    %61 = vector.broadcast %c15_i32_14 : i32 to vector<256x256xi32>
    %62 = arith.cmpi ne, %39, %61 : vector<256x256xi32>
    %63 = arith.andi %60, %62 : vector<256x256xi1>
    %64 = arith.extui %63 : vector<256x256xi1> to vector<256x256xi32>
    %65 = arith.sitofp %64 : vector<256x256xi32> to vector<256x256xf32>
    %cst_15 = arith.constant dense<0.000000e+00> : vector<16x256xf32>
    %66 = tpu.matmul %30, %23, %cst_15 {dimension_numbers = #tpu.dot_dimension_numbers<[1], [0], [0], [1], [0, 0, 1, 1], [], []>} : vector<16x16xf32>, vector<16x256xf32>, vector<16x256xf32> -> vector<16x256xf32>
    %cst_16 = arith.constant dense<0.000000e+00> : vector<16x256xf32>
    %67 = tpu.matmul %35, %23, %cst_16 {dimension_numbers = #tpu.dot_dimension_numbers<[1], [0], [0], [1], [0, 0, 1, 1], [], []>} : vector<16x16xf32>, vector<16x256xf32>, vector<16x256xf32> -> vector<16x256xf32>
    %cst_17 = arith.constant dense<0.000000e+00> : vector<16x256xf32>
    %68 = tpu.matmul %23, %44, %cst_17 {dimension_numbers = #tpu.dot_dimension_numbers<[1], [0], [0], [1], [0, 0, 1, 1], [], []>} : vector<16x256xf32>, vector<256x256xf32>, vector<16x256xf32> -> vector<16x256xf32>
    %cst_18 = arith.constant dense<0.000000e+00> : vector<16x256xf32>
    %69 = tpu.matmul %23, %49, %cst_18 {dimension_numbers = #tpu.dot_dimension_numbers<[1], [0], [0], [1], [0, 0, 1, 1], [], []>} : vector<16x256xf32>, vector<256x256xf32>, vector<16x256xf32> -> vector<16x256xf32>
    %cst_19 = arith.constant dense<0.000000e+00> : vector<16x256xf32>
    %70 = tpu.matmul %23, %57, %cst_19 {dimension_numbers = #tpu.dot_dimension_numbers<[1], [0], [0], [1], [0, 0, 1, 1], [], []>} : vector<16x256xf32>, vector<256x256xf32>, vector<16x256xf32> -> vector<16x256xf32>
    %cst_20 = arith.constant dense<0.000000e+00> : vector<16x256xf32>
    %71 = tpu.matmul %23, %65, %cst_20 {dimension_numbers = #tpu.dot_dimension_numbers<[1], [0], [0], [1], [0, 0, 1, 1], [], []>} : vector<16x256xf32>, vector<256x256xf32>, vector<16x256xf32> -> vector<16x256xf32>
    %72 = vector.shape_cast %66 : vector<16x256xf32> to vector<1x16x256xf32>
    %73 = vector.shape_cast %67 : vector<16x256xf32> to vector<1x16x256xf32>
    %74 = vector.shape_cast %68 : vector<16x256xf32> to vector<1x16x256xf32>
    %75 = vector.shape_cast %69 : vector<16x256xf32> to vector<1x16x256xf32>
    %76 = vector.shape_cast %70 : vector<16x256xf32> to vector<1x16x256xf32>
    %77 = vector.shape_cast %71 : vector<16x256xf32> to vector<1x16x256xf32>
    %78 = tpu.concatenate %72, %73, %74, %75, %76, %77 in 0 : vector<1x16x256xf32>, vector<1x16x256xf32>, vector<1x16x256xf32>, vector<1x16x256xf32>, vector<1x16x256xf32>, vector<1x16x256xf32> -> vector<6x16x256xf32>
    %79 = vector.shape_cast %23 : vector<16x256xf32> to vector<1x16x256xf32>
    %80 = vector.broadcast %79 : vector<1x16x256xf32> to vector<6x16x256xf32>
    %81 = arith.subf %78, %80 : vector<6x16x256xf32>
    %82 = math.absf %81 : vector<6x16x256xf32>
    %cst_21 = arith.constant 0.00999999977 : f32
    %83 = vector.broadcast %cst_21 : f32 to vector<6x16x256xf32>
    %84 = arith.cmpf olt, %82, %83 : vector<6x16x256xf32>
    %85 = arith.extui %84 : vector<6x16x256xi1> to vector<6x16x256xi32>
    %86 = arith.sitofp %85 : vector<6x16x256xi32> to vector<6x16x256xf32>
    %87 = vector.shape_cast %16 : vector<16x256xf32> to vector<1x16x256xf32>
    %88 = vector.broadcast %87 : vector<1x16x256xf32> to vector<6x16x256xf32>
    %89 = arith.mulf %86, %88 : vector<6x16x256xf32>
    %cst_22 = arith.constant 0.000000e+00 : f32
    %90 = vector.broadcast %cst_22 : f32 to vector<6x16x256xf32>
    %91 = arith.cmpf ogt, %78, %90 : vector<6x16x256xf32>
    %92 = arith.extui %91 : vector<6x16x256xi1> to vector<6x16x256xi32>
    %93 = arith.sitofp %92 : vector<6x16x256xi32> to vector<6x16x256xf32>
    %94 = vector.shape_cast %16 : vector<16x256xf32> to vector<1x16x256xf32>
    %95 = vector.broadcast %94 : vector<1x16x256xf32> to vector<6x16x256xf32>
    %96 = arith.mulf %93, %95 : vector<6x16x256xf32>
    %97 = tpu.concatenate %89, %96 in 0 : vector<6x16x256xf32>, vector<6x16x256xf32> -> vector<12x16x256xf32>
    %c0_23 = arith.constant 0 : index
    %c0_24 = arith.constant 0 : index
    %c0_25 = arith.constant 0 : index
    %98 = vector.load %arg3[%c0_23, %c0_24, %c0_25] : memref<12x16x256xf32, #tpu.memory_space<vmem>>, vector<12x16x256xf32>
    tpu.vector_store %arg3[%c0_23, %c0_24, %c0_25], %97 {strides = array<i32>} : memref<12x16x256xf32, #tpu.memory_space<vmem>>, vector<12x16x256xf32>,
    %c0_26 = arith.constant 0 : index
    %c0_27 = arith.constant 0 : index
    %99 = vector.load %arg4[%c0_26, %c0_27] : memref<16x256xf32, #tpu.memory_space<vmem>>, vector<16x256xf32>
    tpu.vector_store %arg4[%c0_26, %c0_27], %12 {strides = array<i32>} : memref<16x256xf32, #tpu.memory_space<vmem>>, vector<16x256xf32>,
    %100 = tpu.iota {dimensions = array<i32: 0>} : vector<8x16xi32>
    %101 = tpu.iota {dimensions = array<i32: 1>} : vector<8x16xi32>
    %c2_i32 = arith.constant 2 : i32
    %102 = vector.broadcast %c2_i32 : i32 to vector<8x16xi32>
    %103 = arith.muli %102, %100 : vector<8x16xi32>
    %104 = arith.cmpi eq, %101, %103 : vector<8x16xi32>
    %c2_i32_28 = arith.constant 2 : i32
    %105 = vector.broadcast %c2_i32_28 : i32 to vector<8x16xi32>
    %106 = arith.muli %105, %100 : vector<8x16xi32>
    %c1_i32_29 = arith.constant 1 : i32
    %107 = vector.broadcast %c1_i32_29 : i32 to vector<8x16xi32>
    %108 = arith.addi %106, %107 : vector<8x16xi32>
    %109 = arith.cmpi eq, %101, %108 : vector<8x16xi32>
    %110 = arith.ori %104, %109 : vector<8x16xi1>
    %111 = arith.extui %110 : vector<8x16xi1> to vector<8x16xi32>
    %112 = arith.sitofp %111 : vector<8x16xi32> to vector<8x16xf32>
    %113 = tpu.iota {dimensions = array<i32: 0>} : vector<256x64xi32>
    %114 = tpu.iota {dimensions = array<i32: 1>} : vector<256x64xi32>
    %c15_i32_30 = arith.constant 15 : i32
    %115 = vector.broadcast %c15_i32_30 : i32 to vector<256x64xi32>
    %116 = arith.andi %113, %115 : vector<256x64xi32>
    %117 = arith.subi %113, %116 : vector<256x64xi32>
    %c7_i32 = arith.constant 7 : i32
    %118 = vector.broadcast %c7_i32 : i32 to vector<256x64xi32>
    %119 = arith.andi %114, %118 : vector<256x64xi32>
    %120 = arith.subi %114, %119 : vector<256x64xi32>
    %c4_i32 = arith.constant 4 : i32
    %121 = vector.broadcast %c4_i32 : i32 to vector<256x64xi32>
    %122 = arith.muli %121, %120 : vector<256x64xi32>
    %123 = arith.cmpi eq, %117, %122 : vector<256x64xi32>
    %c16_i32_31 = arith.constant 16 : i32
    %124 = vector.broadcast %c16_i32_31 : i32 to vector<256x64xi32>
    %125 = arith.addi %122, %124 : vector<256x64xi32>
    %126 = arith.cmpi eq, %117, %125 : vector<256x64xi32>
    %127 = arith.ori %123, %126 : vector<256x64xi1>
    %c2_i32_32 = arith.constant 2 : i32
    %128 = vector.broadcast %c2_i32_32 : i32 to vector<256x64xi32>
    %129 = arith.muli %128, %119 : vector<256x64xi32>
    %130 = arith.cmpi eq, %116, %129 : vector<256x64xi32>
    %c2_i32_33 = arith.constant 2 : i32
    %131 = vector.broadcast %c2_i32_33 : i32 to vector<256x64xi32>
    %132 = arith.muli %131, %119 : vector<256x64xi32>
    %c1_i32_34 = arith.constant 1 : i32
    %133 = vector.broadcast %c1_i32_34 : i32 to vector<256x64xi32>
    %134 = arith.addi %132, %133 : vector<256x64xi32>
    %135 = arith.cmpi eq, %116, %134 : vector<256x64xi32>
    %136 = arith.ori %130, %135 : vector<256x64xi1>
    %137 = arith.andi %127, %136 : vector<256x64xi1>
    %138 = arith.extui %137 : vector<256x64xi1> to vector<256x64xi32>
    %139 = arith.sitofp %138 : vector<256x64xi32> to vector<256x64xf32>
    %cst_35 = arith.constant dense<0.000000e+00> : vector<8x256xf32>
    %140 = tpu.matmul %112, %8, %cst_35 {dimension_numbers = #tpu.dot_dimension_numbers<[1], [0], [0], [1], [0, 0, 1, 1], [], []>} : vector<8x16xf32>, vector<16x256xf32>, vector<8x256xf32> -> vector<8x256xf32>
    %cst_36 = arith.constant dense<0.000000e+00> : vector<8x64xf32>
    %141 = tpu.matmul %140, %139, %cst_36 {dimension_numbers = #tpu.dot_dimension_numbers<[1], [0], [0], [1], [0, 0, 1, 1], [], []>} : vector<8x256xf32>, vector<256x64xf32>, vector<8x64xf32> -> vector<8x64xf32>
    %cst_37 = arith.constant dense<0.000000e+00> : vector<8x256xf32>
    %142 = tpu.matmul %112, %12, %cst_37 {dimension_numbers = #tpu.dot_dimension_numbers<[1], [0], [0], [1], [0, 0, 1, 1], [], []>} : vector<8x16xf32>, vector<16x256xf32>, vector<8x256xf32> -> vector<8x256xf32>
    %cst_38 = arith.constant dense<0.000000e+00> : vector<8x64xf32>
    %143 = tpu.matmul %142, %139, %cst_38 {dimension_numbers = #tpu.dot_dimension_numbers<[1], [0], [0], [1], [0, 0, 1, 1], [], []>} : vector<8x256xf32>, vector<256x64xf32>, vector<8x64xf32> -> vector<8x64xf32>
    %cst_39 = arith.constant 0.000000e+00 : f32
    %144 = vector.broadcast %cst_39 : f32 to vector<8x64xf32>
    %145 = arith.cmpf ogt, %143, %144 : vector<8x64xf32>
    %146 = arith.extui %145 : vector<8x64xi1> to vector<8x64xi32>
    %147 = arith.sitofp %146 : vector<8x64xi32> to vector<8x64xf32>
    %cst_40 = arith.constant 0.000000e+00 : f32
    %148 = vector.broadcast %cst_40 : f32 to vector<8x64xf32>
    %149 = arith.cmpf ogt, %143, %148 : vector<8x64xf32>
    %cst_41 = arith.constant 1.000000e+00 : f32
    %150 = vector.broadcast %cst_41 : f32 to vector<8x64xf32>
    %151 = arith.maximumf %143, %150 : vector<8x64xf32>
    %152 = arith.divf %141, %151 : vector<8x64xf32>
    %cst_42 = arith.constant 0.000000e+00 : f32
    %153 = vector.broadcast %cst_42 : f32 to vector<8x64xf32>
    %154 = arith.select %149, %152, %153 : vector<8x64xi1>, vector<8x64xf32>
    %155 = tpu.iota {dimensions = array<i32: 0>} : vector<8x8xi32>
    %156 = tpu.iota {dimensions = array<i32: 1>} : vector<8x8xi32>
    %c1_i32_43 = arith.constant 1 : i32
    %157 = vector.broadcast %c1_i32_43 : i32 to vector<8x8xi32>
    %158 = arith.subi %155, %157 : vector<8x8xi32>
    %159 = arith.cmpi eq, %156, %158 : vector<8x8xi32>
    %160 = arith.extui %159 : vector<8x8xi1> to vector<8x8xi32>
    %161 = arith.sitofp %160 : vector<8x8xi32> to vector<8x8xf32>
    %c1_i32_44 = arith.constant 1 : i32
    %162 = vector.broadcast %c1_i32_44 : i32 to vector<8x8xi32>
    %163 = arith.addi %155, %162 : vector<8x8xi32>
    %164 = arith.cmpi eq, %156, %163 : vector<8x8xi32>
    %165 = arith.extui %164 : vector<8x8xi1> to vector<8x8xi32>
    %166 = arith.sitofp %165 : vector<8x8xi32> to vector<8x8xf32>
    %167 = tpu.iota {dimensions = array<i32: 0>} : vector<64x64xi32>
    %168 = tpu.iota {dimensions = array<i32: 1>} : vector<64x64xi32>
    %c7_i32_45 = arith.constant 7 : i32
    %169 = vector.broadcast %c7_i32_45 : i32 to vector<64x64xi32>
    %170 = arith.andi %168, %169 : vector<64x64xi32>
    %c8_i32 = arith.constant 8 : i32
    %171 = vector.broadcast %c8_i32 : i32 to vector<64x64xi32>
    %172 = arith.subi %168, %171 : vector<64x64xi32>
    %173 = arith.cmpi eq, %167, %172 : vector<64x64xi32>
    %174 = arith.extui %173 : vector<64x64xi1> to vector<64x64xi32>
    %175 = arith.sitofp %174 : vector<64x64xi32> to vector<64x64xf32>
    %c8_i32_46 = arith.constant 8 : i32
    %176 = vector.broadcast %c8_i32_46 : i32 to vector<64x64xi32>
    %177 = arith.addi %168, %176 : vector<64x64xi32>
    %178 = arith.cmpi eq, %167, %177 : vector<64x64xi32>
    %179 = arith.extui %178 : vector<64x64xi1> to vector<64x64xi32>
    %180 = arith.sitofp %179 : vector<64x64xi32> to vector<64x64xf32>
    %c1_i32_47 = arith.constant 1 : i32
    %181 = vector.broadcast %c1_i32_47 : i32 to vector<64x64xi32>
    %182 = arith.subi %168, %181 : vector<64x64xi32>
    %183 = arith.cmpi eq, %167, %182 : vector<64x64xi32>
    %c0_i32_48 = arith.constant 0 : i32
    %184 = vector.broadcast %c0_i32_48 : i32 to vector<64x64xi32>
    %185 = arith.cmpi ne, %170, %184 : vector<64x64xi32>
    %186 = arith.andi %183, %185 : vector<64x64xi1>
    %187 = arith.extui %186 : vector<64x64xi1> to vector<64x64xi32>
    %188 = arith.sitofp %187 : vector<64x64xi32> to vector<64x64xf32>
    %c1_i32_49 = arith.constant 1 : i32
    %189 = vector.broadcast %c1_i32_49 : i32 to vector<64x64xi32>
    %190 = arith.addi %168, %189 : vector<64x64xi32>
    %191 = arith.cmpi eq, %167, %190 : vector<64x64xi32>
    %c7_i32_50 = arith.constant 7 : i32
    %192 = vector.broadcast %c7_i32_50 : i32 to vector<64x64xi32>
    %193 = arith.cmpi ne, %170, %192 : vector<64x64xi32>
    %194 = arith.andi %191, %193 : vector<64x64xi1>
    %195 = arith.extui %194 : vector<64x64xi1> to vector<64x64xi32>
    %196 = arith.sitofp %195 : vector<64x64xi32> to vector<64x64xf32>
    %cst_51 = arith.constant dense<0.000000e+00> : vector<8x64xf32>
    %197 = tpu.matmul %161, %154, %cst_51 {dimension_numbers = #tpu.dot_dimension_numbers<[1], [0], [0], [1], [0, 0, 1, 1], [], []>} : vector<8x8xf32>, vector<8x64xf32>, vector<8x64xf32> -> vector<8x64xf32>
    %cst_52 = arith.constant dense<0.000000e+00> : vector<8x64xf32>
    %198 = tpu.matmul %166, %154, %cst_52 {dimension_numbers = #tpu.dot_dimension_numbers<[1], [0], [0], [1], [0, 0, 1, 1], [], []>} : vector<8x8xf32>, vector<8x64xf32>, vector<8x64xf32> -> vector<8x64xf32>
    %cst_53 = arith.constant dense<0.000000e+00> : vector<8x64xf32>
    %199 = tpu.matmul %154, %175, %cst_53 {dimension_numbers = #tpu.dot_dimension_numbers<[1], [0], [0], [1], [0, 0, 1, 1], [], []>} : vector<8x64xf32>, vector<64x64xf32>, vector<8x64xf32> -> vector<8x64xf32>
    %cst_54 = arith.constant dense<0.000000e+00> : vector<8x64xf32>
    %200 = tpu.matmul %154, %180, %cst_54 {dimension_numbers = #tpu.dot_dimension_numbers<[1], [0], [0], [1], [0, 0, 1, 1], [], []>} : vector<8x64xf32>, vector<64x64xf32>, vector<8x64xf32> -> vector<8x64xf32>
    %cst_55 = arith.constant dense<0.000000e+00> : vector<8x64xf32>
    %201 = tpu.matmul %154, %188, %cst_55 {dimension_numbers = #tpu.dot_dimension_numbers<[1], [0], [0], [1], [0, 0, 1, 1], [], []>} : vector<8x64xf32>, vector<64x64xf32>, vector<8x64xf32> -> vector<8x64xf32>
    %cst_56 = arith.constant dense<0.000000e+00> : vector<8x64xf32>
    %202 = tpu.matmul %154, %196, %cst_56 {dimension_numbers = #tpu.dot_dimension_numbers<[1], [0], [0], [1], [0, 0, 1, 1], [], []>} : vector<8x64xf32>, vector<64x64xf32>, vector<8x64xf32> -> vector<8x64xf32>
    %203 = vector.shape_cast %197 : vector<8x64xf32> to vector<1x8x64xf32>
    %204 = vector.shape_cast %198 : vector<8x64xf32> to vector<1x8x64xf32>
    %205 = vector.shape_cast %199 : vector<8x64xf32> to vector<1x8x64xf32>
    %206 = vector.shape_cast %200 : vector<8x64xf32> to vector<1x8x64xf32>
    %207 = vector.shape_cast %201 : vector<8x64xf32> to vector<1x8x64xf32>
    %208 = vector.shape_cast %202 : vector<8x64xf32> to vector<1x8x64xf32>
    %209 = tpu.concatenate %203, %204, %205, %206, %207, %208 in 0 : vector<1x8x64xf32>, vector<1x8x64xf32>, vector<1x8x64xf32>, vector<1x8x64xf32>, vector<1x8x64xf32>, vector<1x8x64xf32> -> vector<6x8x64xf32>
    %210 = vector.shape_cast %154 : vector<8x64xf32> to vector<1x8x64xf32>
    %211 = vector.broadcast %210 : vector<1x8x64xf32> to vector<6x8x64xf32>
    %212 = arith.subf %209, %211 : vector<6x8x64xf32>
    %213 = math.absf %212 : vector<6x8x64xf32>
    %cst_57 = arith.constant 0.00999999977 : f32
    %214 = vector.broadcast %cst_57 : f32 to vector<6x8x64xf32>
    %215 = arith.cmpf olt, %213, %214 : vector<6x8x64xf32>
    %216 = arith.extui %215 : vector<6x8x64xi1> to vector<6x8x64xi32>
    %217 = arith.sitofp %216 : vector<6x8x64xi32> to vector<6x8x64xf32>
    %218 = vector.shape_cast %147 : vector<8x64xf32> to vector<1x8x64xf32>
    %219 = vector.broadcast %218 : vector<1x8x64xf32> to vector<6x8x64xf32>
    %220 = arith.mulf %217, %219 : vector<6x8x64xf32>
    %cst_58 = arith.constant 0.000000e+00 : f32
    %221 = vector.broadcast %cst_58 : f32 to vector<6x8x64xf32>
    %222 = arith.cmpf ogt, %209, %221 : vector<6x8x64xf32>
    %223 = arith.extui %222 : vector<6x8x64xi1> to vector<6x8x64xi32>
    %224 = arith.sitofp %223 : vector<6x8x64xi32> to vector<6x8x64xf32>
    %225 = vector.shape_cast %147 : vector<8x64xf32> to vector<1x8x64xf32>
    %226 = vector.broadcast %225 : vector<1x8x64xf32> to vector<6x8x64xf32>
    %227 = arith.mulf %224, %226 : vector<6x8x64xf32>
    %228 = tpu.concatenate %220, %227 in 0 : vector<6x8x64xf32>, vector<6x8x64xf32> -> vector<12x8x64xf32>
    %c0_59 = arith.constant 0 : index
    %c0_60 = arith.constant 0 : index
    %c0_61 = arith.constant 0 : index
    %229 = vector.load %arg5[%c0_59, %c0_60, %c0_61] : memref<12x8x64xf32, #tpu.memory_space<vmem>>, vector<12x8x64xf32>
    tpu.vector_store %arg5[%c0_59, %c0_60, %c0_61], %228 {strides = array<i32>} : memref<12x8x64xf32, #tpu.memory_space<vmem>>, vector<12x8x64xf32>,
    %c0_62 = arith.constant 0 : index
    %c0_63 = arith.constant 0 : index
    %230 = vector.load %arg6[%c0_62, %c0_63] : memref<8x64xf32, #tpu.memory_space<vmem>>, vector<8x64xf32>
    tpu.vector_store %arg6[%c0_62, %c0_63], %143 {strides = array<i32>} : memref<8x64xf32, #tpu.memory_space<vmem>>, vector<8x64xf32>,
    %231 = tpu.iota {dimensions = array<i32: 0>} : vector<4x8xi32>
    %232 = tpu.iota {dimensions = array<i32: 1>} : vector<4x8xi32>
    %c2_i32_64 = arith.constant 2 : i32
    %233 = vector.broadcast %c2_i32_64 : i32 to vector<4x8xi32>
    %234 = arith.muli %233, %231 : vector<4x8xi32>
    %235 = arith.cmpi eq, %232, %234 : vector<4x8xi32>
    %c2_i32_65 = arith.constant 2 : i32
    %236 = vector.broadcast %c2_i32_65 : i32 to vector<4x8xi32>
    %237 = arith.muli %236, %231 : vector<4x8xi32>
    %c1_i32_66 = arith.constant 1 : i32
    %238 = vector.broadcast %c1_i32_66 : i32 to vector<4x8xi32>
    %239 = arith.addi %237, %238 : vector<4x8xi32>
    %240 = arith.cmpi eq, %232, %239 : vector<4x8xi32>
    %241 = arith.ori %235, %240 : vector<4x8xi1>
    %242 = arith.extui %241 : vector<4x8xi1> to vector<4x8xi32>
    %243 = arith.sitofp %242 : vector<4x8xi32> to vector<4x8xf32>
    %244 = tpu.iota {dimensions = array<i32: 0>} : vector<64x16xi32>
    %245 = tpu.iota {dimensions = array<i32: 1>} : vector<64x16xi32>
    %c7_i32_67 = arith.constant 7 : i32
    %246 = vector.broadcast %c7_i32_67 : i32 to vector<64x16xi32>
    %247 = arith.andi %244, %246 : vector<64x16xi32>
    %248 = arith.subi %244, %247 : vector<64x16xi32>
    %c3_i32 = arith.constant 3 : i32
    %249 = vector.broadcast %c3_i32 : i32 to vector<64x16xi32>
    %250 = arith.andi %245, %249 : vector<64x16xi32>
    %251 = arith.subi %245, %250 : vector<64x16xi32>
    %c4_i32_68 = arith.constant 4 : i32
    %252 = vector.broadcast %c4_i32_68 : i32 to vector<64x16xi32>
    %253 = arith.muli %252, %251 : vector<64x16xi32>
    %254 = arith.cmpi eq, %248, %253 : vector<64x16xi32>
    %c8_i32_69 = arith.constant 8 : i32
    %255 = vector.broadcast %c8_i32_69 : i32 to vector<64x16xi32>
    %256 = arith.addi %253, %255 : vector<64x16xi32>
    %257 = arith.cmpi eq, %248, %256 : vector<64x16xi32>
    %258 = arith.ori %254, %257 : vector<64x16xi1>
    %c2_i32_70 = arith.constant 2 : i32
    %259 = vector.broadcast %c2_i32_70 : i32 to vector<64x16xi32>
    %260 = arith.muli %259, %250 : vector<64x16xi32>
    %261 = arith.cmpi eq, %247, %260 : vector<64x16xi32>
    %c2_i32_71 = arith.constant 2 : i32
    %262 = vector.broadcast %c2_i32_71 : i32 to vector<64x16xi32>
    %263 = arith.muli %262, %250 : vector<64x16xi32>
    %c1_i32_72 = arith.constant 1 : i32
    %264 = vector.broadcast %c1_i32_72 : i32 to vector<64x16xi32>
    %265 = arith.addi %263, %264 : vector<64x16xi32>
    %266 = arith.cmpi eq, %247, %265 : vector<64x16xi32>
    %267 = arith.ori %261, %266 : vector<64x16xi1>
    %268 = arith.andi %258, %267 : vector<64x16xi1>
    %269 = arith.extui %268 : vector<64x16xi1> to vector<64x16xi32>
    %270 = arith.sitofp %269 : vector<64x16xi32> to vector<64x16xf32>
    %cst_73 = arith.constant dense<0.000000e+00> : vector<4x64xf32>
    %271 = tpu.matmul %243, %141, %cst_73 {dimension_numbers = #tpu.dot_dimension_numbers<[1], [0], [0], [1], [0, 0, 1, 1], [], []>} : vector<4x8xf32>, vector<8x64xf32>, vector<4x64xf32> -> vector<4x64xf32>
    %cst_74 = arith.constant dense<0.000000e+00> : vector<4x16xf32>
    %272 = tpu.matmul %271, %270, %cst_74 {dimension_numbers = #tpu.dot_dimension_numbers<[1], [0], [0], [1], [0, 0, 1, 1], [], []>} : vector<4x64xf32>, vector<64x16xf32>, vector<4x16xf32> -> vector<4x16xf32>
    %cst_75 = arith.constant dense<0.000000e+00> : vector<4x64xf32>
    %273 = tpu.matmul %243, %143, %cst_75 {dimension_numbers = #tpu.dot_dimension_numbers<[1], [0], [0], [1], [0, 0, 1, 1], [], []>} : vector<4x8xf32>, vector<8x64xf32>, vector<4x64xf32> -> vector<4x64xf32>
    %cst_76 = arith.constant dense<0.000000e+00> : vector<4x16xf32>
    %274 = tpu.matmul %273, %270, %cst_76 {dimension_numbers = #tpu.dot_dimension_numbers<[1], [0], [0], [1], [0, 0, 1, 1], [], []>} : vector<4x64xf32>, vector<64x16xf32>, vector<4x16xf32> -> vector<4x16xf32>
    %cst_77 = arith.constant 0.000000e+00 : f32
    %275 = vector.broadcast %cst_77 : f32 to vector<4x16xf32>
    %276 = arith.cmpf ogt, %274, %275 : vector<4x16xf32>
    %277 = arith.extui %276 : vector<4x16xi1> to vector<4x16xi32>
    %278 = arith.sitofp %277 : vector<4x16xi32> to vector<4x16xf32>
    %cst_78 = arith.constant 0.000000e+00 : f32
    %279 = vector.broadcast %cst_78 : f32 to vector<4x16xf32>
    %280 = arith.cmpf ogt, %274, %279 : vector<4x16xf32>
    %cst_79 = arith.constant 1.000000e+00 : f32
    %281 = vector.broadcast %cst_79 : f32 to vector<4x16xf32>
    %282 = arith.maximumf %274, %281 : vector<4x16xf32>
    %283 = arith.divf %272, %282 : vector<4x16xf32>
    %cst_80 = arith.constant 0.000000e+00 : f32
    %284 = vector.broadcast %cst_80 : f32 to vector<4x16xf32>
    %285 = arith.select %280, %283, %284 : vector<4x16xi1>, vector<4x16xf32>
    %286 = tpu.iota {dimensions = array<i32: 0>} : vector<4x4xi32>
    %287 = tpu.iota {dimensions = array<i32: 1>} : vector<4x4xi32>
    %c1_i32_81 = arith.constant 1 : i32
    %288 = vector.broadcast %c1_i32_81 : i32 to vector<4x4xi32>
    %289 = arith.subi %286, %288 : vector<4x4xi32>
    %290 = arith.cmpi eq, %287, %289 : vector<4x4xi32>
    %291 = arith.extui %290 : vector<4x4xi1> to vector<4x4xi32>
    %292 = arith.sitofp %291 : vector<4x4xi32> to vector<4x4xf32>
    %c1_i32_82 = arith.constant 1 : i32
    %293 = vector.broadcast %c1_i32_82 : i32 to vector<4x4xi32>
    %294 = arith.addi %286, %293 : vector<4x4xi32>
    %295 = arith.cmpi eq, %287, %294 : vector<4x4xi32>
    %296 = arith.extui %295 : vector<4x4xi1> to vector<4x4xi32>
    %297 = arith.sitofp %296 : vector<4x4xi32> to vector<4x4xf32>
    %298 = tpu.iota {dimensions = array<i32: 0>} : vector<16x16xi32>
    %299 = tpu.iota {dimensions = array<i32: 1>} : vector<16x16xi32>
    %c3_i32_83 = arith.constant 3 : i32
    %300 = vector.broadcast %c3_i32_83 : i32 to vector<16x16xi32>
    %301 = arith.andi %299, %300 : vector<16x16xi32>
    %c4_i32_84 = arith.constant 4 : i32
    %302 = vector.broadcast %c4_i32_84 : i32 to vector<16x16xi32>
    %303 = arith.subi %299, %302 : vector<16x16xi32>
    %304 = arith.cmpi eq, %298, %303 : vector<16x16xi32>
    %305 = arith.extui %304 : vector<16x16xi1> to vector<16x16xi32>
    %306 = arith.sitofp %305 : vector<16x16xi32> to vector<16x16xf32>
    %c4_i32_85 = arith.constant 4 : i32
    %307 = vector.broadcast %c4_i32_85 : i32 to vector<16x16xi32>
    %308 = arith.addi %299, %307 : vector<16x16xi32>
    %309 = arith.cmpi eq, %298, %308 : vector<16x16xi32>
    %310 = arith.extui %309 : vector<16x16xi1> to vector<16x16xi32>
    %311 = arith.sitofp %310 : vector<16x16xi32> to vector<16x16xf32>
    %c1_i32_86 = arith.constant 1 : i32
    %312 = vector.broadcast %c1_i32_86 : i32 to vector<16x16xi32>
    %313 = arith.subi %299, %312 : vector<16x16xi32>
    %314 = arith.cmpi eq, %298, %313 : vector<16x16xi32>
    %c0_i32_87 = arith.constant 0 : i32
    %315 = vector.broadcast %c0_i32_87 : i32 to vector<16x16xi32>
    %316 = arith.cmpi ne, %301, %315 : vector<16x16xi32>
    %317 = arith.andi %314, %316 : vector<16x16xi1>
    %318 = arith.extui %317 : vector<16x16xi1> to vector<16x16xi32>
    %319 = arith.sitofp %318 : vector<16x16xi32> to vector<16x16xf32>
    %c1_i32_88 = arith.constant 1 : i32
    %320 = vector.broadcast %c1_i32_88 : i32 to vector<16x16xi32>
    %321 = arith.addi %299, %320 : vector<16x16xi32>
    %322 = arith.cmpi eq, %298, %321 : vector<16x16xi32>
    %c3_i32_89 = arith.constant 3 : i32
    %323 = vector.broadcast %c3_i32_89 : i32 to vector<16x16xi32>
    %324 = arith.cmpi ne, %301, %323 : vector<16x16xi32>
    %325 = arith.andi %322, %324 : vector<16x16xi1>
    %326 = arith.extui %325 : vector<16x16xi1> to vector<16x16xi32>
    %327 = arith.sitofp %326 : vector<16x16xi32> to vector<16x16xf32>
    %cst_90 = arith.constant dense<0.000000e+00> : vector<4x16xf32>
    %328 = tpu.matmul %292, %285, %cst_90 {dimension_numbers = #tpu.dot_dimension_numbers<[1], [0], [0], [1], [0, 0, 1, 1], [], []>} : vector<4x4xf32>, vector<4x16xf32>, vector<4x16xf32> -> vector<4x16xf32>
    %cst_91 = arith.constant dense<0.000000e+00> : vector<4x16xf32>
    %329 = tpu.matmul %297, %285, %cst_91 {dimension_numbers = #tpu.dot_dimension_numbers<[1], [0], [0], [1], [0, 0, 1, 1], [], []>} : vector<4x4xf32>, vector<4x16xf32>, vector<4x16xf32> -> vector<4x16xf32>
    %cst_92 = arith.constant dense<0.000000e+00> : vector<4x16xf32>
    %330 = tpu.matmul %285, %306, %cst_92 {dimension_numbers = #tpu.dot_dimension_numbers<[1], [0], [0], [1], [0, 0, 1, 1], [], []>} : vector<4x16xf32>, vector<16x16xf32>, vector<4x16xf32> -> vector<4x16xf32>
    %cst_93 = arith.constant dense<0.000000e+00> : vector<4x16xf32>
    %331 = tpu.matmul %285, %311, %cst_93 {dimension_numbers = #tpu.dot_dimension_numbers<[1], [0], [0], [1], [0, 0, 1, 1], [], []>} : vector<4x16xf32>, vector<16x16xf32>, vector<4x16xf32> -> vector<4x16xf32>
    %cst_94 = arith.constant dense<0.000000e+00> : vector<4x16xf32>
    %332 = tpu.matmul %285, %319, %cst_94 {dimension_numbers = #tpu.dot_dimension_numbers<[1], [0], [0], [1], [0, 0, 1, 1], [], []>} : vector<4x16xf32>, vector<16x16xf32>, vector<4x16xf32> -> vector<4x16xf32>
    %cst_95 = arith.constant dense<0.000000e+00> : vector<4x16xf32>
    %333 = tpu.matmul %285, %327, %cst_95 {dimension_numbers = #tpu.dot_dimension_numbers<[1], [0], [0], [1], [0, 0, 1, 1], [], []>} : vector<4x16xf32>, vector<16x16xf32>, vector<4x16xf32> -> vector<4x16xf32>
    %334 = vector.shape_cast %328 : vector<4x16xf32> to vector<1x4x16xf32>
    %335 = vector.shape_cast %329 : vector<4x16xf32> to vector<1x4x16xf32>
    %336 = vector.shape_cast %330 : vector<4x16xf32> to vector<1x4x16xf32>
    %337 = vector.shape_cast %331 : vector<4x16xf32> to vector<1x4x16xf32>
    %338 = vector.shape_cast %332 : vector<4x16xf32> to vector<1x4x16xf32>
    %339 = vector.shape_cast %333 : vector<4x16xf32> to vector<1x4x16xf32>
    %340 = tpu.concatenate %334, %335, %336, %337, %338, %339 in 0 : vector<1x4x16xf32>, vector<1x4x16xf32>, vector<1x4x16xf32>, vector<1x4x16xf32>, vector<1x4x16xf32>, vector<1x4x16xf32> -> vector<6x4x16xf32>
    %341 = vector.shape_cast %285 : vector<4x16xf32> to vector<1x4x16xf32>
    %342 = vector.broadcast %341 : vector<1x4x16xf32> to vector<6x4x16xf32>
    %343 = arith.subf %340, %342 : vector<6x4x16xf32>
    %344 = math.absf %343 : vector<6x4x16xf32>
    %cst_96 = arith.constant 0.00999999977 : f32
    %345 = vector.broadcast %cst_96 : f32 to vector<6x4x16xf32>
    %346 = arith.cmpf olt, %344, %345 : vector<6x4x16xf32>
    %347 = arith.extui %346 : vector<6x4x16xi1> to vector<6x4x16xi32>
    %348 = arith.sitofp %347 : vector<6x4x16xi32> to vector<6x4x16xf32>
    %349 = vector.shape_cast %278 : vector<4x16xf32> to vector<1x4x16xf32>
    %350 = vector.broadcast %349 : vector<1x4x16xf32> to vector<6x4x16xf32>
    %351 = arith.mulf %348, %350 : vector<6x4x16xf32>
    %cst_97 = arith.constant 0.000000e+00 : f32
    %352 = vector.broadcast %cst_97 : f32 to vector<6x4x16xf32>
    %353 = arith.cmpf ogt, %340, %352 : vector<6x4x16xf32>
    %354 = arith.extui %353 : vector<6x4x16xi1> to vector<6x4x16xi32>
    %355 = arith.sitofp %354 : vector<6x4x16xi32> to vector<6x4x16xf32>
    %356 = vector.shape_cast %278 : vector<4x16xf32> to vector<1x4x16xf32>
    %357 = vector.broadcast %356 : vector<1x4x16xf32> to vector<6x4x16xf32>
    %358 = arith.mulf %355, %357 : vector<6x4x16xf32>
    %359 = tpu.concatenate %351, %358 in 0 : vector<6x4x16xf32>, vector<6x4x16xf32> -> vector<12x4x16xf32>
    %c0_98 = arith.constant 0 : index
    %c0_99 = arith.constant 0 : index
    %c0_100 = arith.constant 0 : index
    %360 = vector.load %arg7[%c0_98, %c0_99, %c0_100] : memref<12x4x16xf32, #tpu.memory_space<vmem>>, vector<12x4x16xf32>
    tpu.vector_store %arg7[%c0_98, %c0_99, %c0_100], %359 {strides = array<i32>} : memref<12x4x16xf32, #tpu.memory_space<vmem>>, vector<12x4x16xf32>,
    %c0_101 = arith.constant 0 : index
    %c0_102 = arith.constant 0 : index
    %361 = vector.load %arg8[%c0_101, %c0_102] : memref<4x16xf32, #tpu.memory_space<vmem>>, vector<4x16xf32>
    tpu.vector_store %arg8[%c0_101, %c0_102], %274 {strides = array<i32>} : memref<4x16xf32, #tpu.memory_space<vmem>>, vector<4x16xf32>,
    return
  }
  func.func @transform_0(%arg0: i32) -> (i32, i32) {
    %c0_i32 = arith.constant 0 : i32
    %c0_i32_0 = arith.constant 0 : i32
    %c0_i32_1 = arith.constant 0 : i32
    return %c0_i32, %c0_i32_0 : i32, i32
  }
  func.func @transform_1(%arg0: i32) -> (i32, i32) {
    %c0_i32 = arith.constant 0 : i32
    %c0_i32_0 = arith.constant 0 : i32
    %c0_i32_1 = arith.constant 0 : i32
    return %c0_i32, %c0_i32_0 : i32, i32
  }
  func.func @transform_2(%arg0: i32) -> (i32, i32, i32) {
    %c0_i32 = arith.constant 0 : i32
    %c0_i32_0 = arith.constant 0 : i32
    %c0_i32_1 = arith.constant 0 : i32
    %c0_i32_2 = arith.constant 0 : i32
    return %c0_i32, %c0_i32_0, %c0_i32_1 : i32, i32, i32
  }
  func.func @transform_3(%arg0: i32) -> (i32, i32) {
    %c0_i32 = arith.constant 0 : i32
    %c0_i32_0 = arith.constant 0 : i32
    %c0_i32_1 = arith.constant 0 : i32
    return %c0_i32, %c0_i32_0 : i32, i32
  }
  func.func @transform_4(%arg0: i32) -> (i32, i32, i32) {
    %c0_i32 = arith.constant 0 : i32
    %c0_i32_0 = arith.constant 0 : i32
    %c0_i32_1 = arith.constant 0 : i32
    %c0_i32_2 = arith.constant 0 : i32
    return %c0_i32, %c0_i32_0, %c0_i32_1 : i32, i32, i32
  }
  func.func @transform_5(%arg0: i32) -> (i32, i32) {
    %c0_i32 = arith.constant 0 : i32
    %c0_i32_0 = arith.constant 0 : i32
    %c0_i32_1 = arith.constant 0 : i32
    return %c0_i32, %c0_i32_0 : i32, i32
  }
  func.func @transform_6(%arg0: i32) -> (i32, i32, i32) {
    %c0_i32 = arith.constant 0 : i32
    %c0_i32_0 = arith.constant 0 : i32
    %c0_i32_1 = arith.constant 0 : i32
    %c0_i32_2 = arith.constant 0 : i32
    return %c0_i32, %c0_i32_0, %c0_i32_1 : i32, i32, i32
  }
  func.func @transform_7(%arg0: i32) -> (i32, i32) {
    %c0_i32 = arith.constant 0 : i32
    %c0_i32_0 = arith.constant 0 : i32
    %c0_i32_1 = arith.constant 0 : i32
    return %c0_i32, %c0_i32_0 : i32, i32
  }
}

</mosaic_0001>

<llo_original>
// kernel: _lambda_.1
$region0: #{_lambda_.1}
  #allocation0 [shape = 'u32[]', space=smem, size = 0x4, offset = 0x4, fixed_abs, tag = 'smem constant byte address 0x4 - core index']
  #allocation1 [shape = 'u32[144,128]{1,0:T(1,128)}', space=vmem, size = 0x12000, scoped, tag = 'internal scratch']
  %s0 = inlined_call_operand.vmem [shape: f32[16,256], index: 0, kind: input, shape index: {}]
  %s1 = inlined_call_operand.vmem [shape: f32[16,256], index: 1, kind: input, shape index: {}]
  %s2 = inlined_call_operand.hbm [shape: f32[12,16,256], index: 2, kind: output, shape index: {0}]
  %s3 = inlined_call_operand.hbm [shape: f32[16,256], index: 3, kind: output, shape index: {1}]
  %s4 = inlined_call_operand.hbm [shape: f32[12,8,64], index: 4, kind: output, shape index: {2}]
  %s5 = inlined_call_operand.hbm [shape: f32[8,64], index: 5, kind: output, shape index: {3}]
  %s6 = inlined_call_operand.hbm [shape: f32[12,4,16], index: 6, kind: output, shape index: {4}]
  %s7 = inlined_call_operand.hbm [shape: f32[4,16], index: 7, kind: output, shape index: {5}]
  %8 = xla_tuple %s2, %s3, %s4, %s5, %s6, %s7
  %s9 = sld [smem:[#allocation0]]
  $region58: #{_lambda_.1} parent=0
    _
  %s11 = ssub.s32 1, %s9
  %s12 = scalar_select 0, %s11, %s9
  $region1: #{_lambda_.1} parent=0
    #allocation2 [shape = 'u8[196608]{0}', space=vmem, size = 0x30000, scoped, tag = 'output window, operand 0, single buffered']
    #allocation3 [shape = 's32[1]{0}', space=sflag, size = 0x4, scoped, tag = 'scoped memory for _lambda_.1']
    #allocation4 [shape = 'u8[16384]{0}', space=vmem, size = 0x4000, scoped, tag = 'output window, operand 1, single buffered']
    #allocation5 [shape = 's32[1]{0}', space=sflag, size = 0x4, scoped, tag = 'scoped memory for _lambda_.1']
    #allocation6 [shape = 'u8[49152]{0}', space=vmem, size = 0xc000, scoped, tag = 'output window, operand 2, single buffered']
    #allocation7 [shape = 'u8[4096]{0}', space=vmem, size = 0x1000, scoped, tag = 'output window, operand 3, single buffered']
    #allocation8 [shape = 's32[1]{0}', space=sflag, size = 0x4, scoped, tag = 'scoped memory for _lambda_.1']
    #allocation9 [shape = 'u8[24576]{0}', space=vmem, size = 0x6000, scoped, tag = 'output window, operand 4, single buffered']
    #allocation10 [shape = 'u8[2048]{0}', space=vmem, size = 0x800, scoped, tag = 'output window, operand 5, single buffered']
    #allocation11 [shape = 's32[1]{0}', space=sflag, size = 0x4, scoped, tag = 'scoped memory for _lambda_.1']
    %13 = vsyncpa [#allocation3], 0
    %14 = vsyncpa [#allocation5], 0
    %15 = vsyncpa [#allocation8], 0
    %16 = vsyncpa [#allocation11], 0
    // Predicated region
    $region2: #{_lambda_.1} parent=1 // pred_check
      _
    $region3: #{_lambda_.1} parent=1 // pred_check_branch
      %18 = sbr.rel (0) target = $region5
    $region4: #{_lambda_.1} parent=1 // pred_region
      _
    $region5: #{_lambda_.1} parent=1 // pred_fallthru
      _
    // Predicated region
    $region6: #{_lambda_.1} parent=1 // pred_check
      _
    $region7: #{_lambda_.1} parent=1 // pred_check_branch
      %20 = sbr.rel (0) target = $region9
    $region8: #{_lambda_.1} parent=1 // pred_region
      _
    $region9: #{_lambda_.1} parent=1 // pred_fallthru
      _
    %v21 = vld [vmem:[%s0] sm:$0xff]
    %v22 = vld [vmem:[%s0 + $0x8] sm:$0xff]
    %v23 = vld [vmem:[%s0 + $0x10] sm:$0xff]
    %v24 = vld [vmem:[%s0 + $0x18] sm:$0xff]
    %v25 = vld [vmem:[%s1] sm:$0xff]
    %v26 = vld [vmem:[%s1 + $0x8] sm:$0xff]
    %v27 = vld [vmem:[%s1 + $0x10] sm:$0xff]
    %v28 = vld [vmem:[%s1 + $0x18] sm:$0xff]
    %vm29 = vcmp.gt.f32.partialorder %v25, 0.0
    %vm30 = vcmp.gt.f32.partialorder %v26, 0.0
    %vm31 = vcmp.gt.f32.partialorder %v27, 0.0
    %vm32 = vcmp.gt.f32.partialorder %v28, 0.0
    %v33 = vmax.f32 %v25, 1.0
    %v34 = vmax.f32 %v26, 1.0
    %v35 = vmax.f32 %v27, 1.0
    %v36 = vmax.f32 %v28, 1.0
    %v37 = vrcp.pop %v33
    %v38 = vmul.f32 %v21, %v37
    %v39 = vrcp.pop %v34
    %v40 = vmul.f32 %v22, %v39
    %v41 = vrcp.pop %v35
    %v42 = vmul.f32 %v23, %v41
    %v43 = vrcp.pop %v36
    %v44 = vmul.f32 %v24, %v43
    %v45 = vsel %vm29, %v38, 0.0
    %v46 = vsel %vm30, %v40, 0.0
    %v47 = vsel %vm31, %v42, 0.0
    %v48 = vsel %vm32, %v44, 0.0
    %v49 = vsel %vm29, 1, 0
    %v50 = vsel %vm30, 1, 0
    %v51 = vsel %vm31, 1, 0
    %v52 = vsel %vm32, 1, 0
    %v53 = vcvt.s32.f32 %v49
    %v54 = vcvt.s32.f32 %v50
    %v55 = vcvt.s32.f32 %v51
    %v56 = vcvt.s32.f32 %v52
    %vm57 = vcmp.gt.f32.partialorder %v53, 0.0
    %vm58 = vcmp.gt.f32.partialorder %v54, 0.0
    %vm59 = vcmp.gt.f32.partialorder %v55, 0.0
    %vm60 = vcmp.gt.f32.partialorder %v56, 0.0
    %v61 = vsel %vm57, 1, 0
    %v62 = vsel %vm58, 1, 0
    %v63 = vsel %vm59, 1, 0
    %v64 = vsel %vm60, 1, 0
    %v65 = vcvt.s32.f32 %v61
    %v66 = vcvt.s32.f32 %v62
    %v67 = vcvt.s32.f32 %v63
    %v68 = vcvt.s32.f32 %v64
    %v69 = vmax.f32 %v53, 1.0
    %v70 = vmax.f32 %v54, 1.0
    %v71 = vmax.f32 %v55, 1.0
    %v72 = vmax.f32 %v56, 1.0
    %v73 = vrcp.pop %v69
    %v74 = vmul.f32 %v45, %v73
    %v75 = vrcp.pop %v70
    %v76 = vmul.f32 %v46, %v75
    %v77 = vrcp.pop %v71
    %v78 = vmul.f32 %v47, %v77
    %v79 = vrcp.pop %v72
    %v80 = vmul.f32 %v48, %v79
    %v81 = vsel %vm57, %v74, 0.0
    %v82 = vsel %vm58, %v76, 0.0
    %v83 = vsel %vm59, %v78, 0.0
    %v84 = vsel %vm60, %v80, 0.0
    %v85 = vlaneseq
    %v86 = vshrl.u32 %v85, 7
    %v87 = vadd.s32 %v86, 8
    %v88 = vlaneseq
    %v89 = vand.u32 %v88, 127
    %v90 = vsub.s32 %v86, 1
    %v91 = vsub.s32 %v87, 1
    %vm92 = vcmp.eq.s32.totalorder %v89, %v90
    %vm93 = vcmp.eq.s32.totalorder %v89, %v91
    %v94 = vsel %vm92, 1, 0
    %v95 = vsel %vm93, 1, 0
    %v96 = vcvt.s32.f32 %v94
    %v97 = vcvt.s32.f32 %v95
    %v98 = vadd.s32 %v86, 1
    %v99 = vadd.s32 %v87, 1
    %vm100 = vcmp.eq.s32.totalorder %v89, %v98
    %vm101 = vcmp.eq.s32.totalorder %v89, %v99
    %v102 = vsel %vm100, 1, 0
    %v103 = vsel %vm101, 1, 0
    %v104 = vcvt.s32.f32 %v102
    %v105 = vcvt.s32.f32 %v103
    %v106 = vadd.s32 %v86, 16
    %v107 = vadd.s32 %v86, 24
    %v108 = vadd.s32 %v86, 32
    %v109 = vadd.s32 %v86, 40
    %v110 = vadd.s32 %v86, 48
    %v111 = vadd.s32 %v86, 56
    %v112 = vadd.s32 %v86, 64
    %v113 = vadd.s32 %v86, 72
    %v114 = vadd.s32 %v86, 80
    %v115 = vadd.s32 %v86, 88
    %v116 = vadd.s32 %v86, 96
    %v117 = vadd.s32 %v86, 104
    %v118 = vadd.s32 %v86, 112
    %v119 = vadd.s32 %v86, 120
    %v120 = vadd.s32 %v86, 128
    %v121 = vadd.s32 %v86, 136
    %v122 = vadd.s32 %v86, 144
    %v123 = vadd.s32 %v86, 152
    %v124 = vadd.s32 %v86, 160
    %v125 = vadd.s32 %v86, 168
    %v126 = vadd.s32 %v86, 176
    %v127 = vadd.s32 %v86, 184
    %v128 = vadd.s32 %v86, 192
    %v129 = vadd.s32 %v86, 200
    %v130 = vadd.s32 %v86, 208
    %v131 = vadd.s32 %v86, 216
    %v132 = vadd.s32 %v86, 224
    %v133 = vadd.s32 %v86, 232
    %v134 = vadd.s32 %v86, 240
    %v135 = vadd.s32 %v86, 248
    %v136 = vadd.s32 %v89, 128
    %v137 = vand.u32 %v89, 15
    %v138 = vand.u32 %v136, 15
    %v139 = vsub.s32 %v89, 16
    %v140 = vsub.s32 %v136, 16
    %vm141 = vcmp.eq.s32.totalorder %v86, %v139
    %vm142 = vcmp.eq.s32.totalorder %v86, %v140
    %vm143 = vcmp.eq.s32.totalorder %v87, %v139
    %vm144 = vcmp.eq.s32.totalorder %v87, %v140
    %vm145 = vcmp.eq.s32.totalorder %v106, %v139
    %vm146 = vcmp.eq.s32.totalorder %v106, %v140
    %vm147 = vcmp.eq.s32.totalorder %v107, %v139
    %vm148 = vcmp.eq.s32.totalorder %v107, %v140
    %vm149 = vcmp.eq.s32.totalorder %v108, %v139
    %vm150 = vcmp.eq.s32.totalorder %v108, %v140
    %vm151 = vcmp.eq.s32.totalorder %v109, %v139
    %vm152 = vcmp.eq.s32.totalorder %v109, %v140
    %vm153 = vcmp.eq.s32.totalorder %v110, %v139
    %vm154 = vcmp.eq.s32.totalorder %v110, %v140
    %vm155 = vcmp.eq.s32.totalorder %v111, %v139
    %vm156 = vcmp.eq.s32.totalorder %v111, %v140
    %vm157 = vcmp.eq.s32.totalorder %v112, %v139
    %vm158 = vcmp.eq.s32.totalorder %v112, %v140
    %vm159 = vcmp.eq.s32.totalorder %v113, %v139
    %vm160 = vcmp.eq.s32.totalorder %v113, %v140
    %vm161 = vcmp.eq.s32.totalorder %v114, %v139
    %vm162 = vcmp.eq.s32.totalorder %v114, %v140
    %vm163 = vcmp.eq.s32.totalorder %v115, %v139
    %vm164 = vcmp.eq.s32.totalorder %v115, %v140
    %vm165 = vcmp.eq.s32.totalorder %v116, %v139
    %vm166 = vcmp.eq.s32.totalorder %v116, %v140
    %vm167 = vcmp.eq.s32.totalorder %v117, %v139
    %vm168 = vcmp.eq.s32.totalorder %v117, %v140
    %vm169 = vcmp.eq.s32.totalorder %v118, %v139
    %vm170 = vcmp.eq.s32.totalorder %v118, %v140
    %vm171 = vcmp.eq.s32.totalorder %v119, %v139
    %vm172 = vcmp.eq.s32.totalorder %v119, %v140
    %vm173 = vcmp.eq.s32.totalorder %v120, %v139
    %vm174 = vcmp.eq.s32.totalorder %v120, %v140
    %vm175 = vcmp.eq.s32.totalorder %v121, %v139
    %vm176 = vcmp.eq.s32.totalorder %v121, %v140
    %vm177 = vcmp.eq.s32.totalorder %v122, %v139
    %vm178 = vcmp.eq.s32.totalorder %v122, %v140
    %vm179 = vcmp.eq.s32.totalorder %v123, %v139
    %vm180 = vcmp.eq.s32.totalorder %v123, %v140
    %vm181 = vcmp.eq.s32.totalorder %v124, %v139
    %vm182 = vcmp.eq.s32.totalorder %v124, %v140
    %vm183 = vcmp.eq.s32.totalorder %v125, %v139
    %vm184 = vcmp.eq.s32.totalorder %v125, %v140
    %vm185 = vcmp.eq.s32.totalorder %v126, %v139
    %vm186 = vcmp.eq.s32.totalorder %v126, %v140
    %vm187 = vcmp.eq.s32.totalorder %v127, %v139
    %vm188 = vcmp.eq.s32.totalorder %v127, %v140
    %vm189 = vcmp.eq.s32.totalorder %v128, %v139
    %vm190 = vcmp.eq.s32.totalorder %v128, %v140
    %vm191 = vcmp.eq.s32.totalorder %v129, %v139
    %vm192 = vcmp.eq.s32.totalorder %v129, %v140
    %vm193 = vcmp.eq.s32.totalorder %v130, %v139
    %vm194 = vcmp.eq.s32.totalorder %v130, %v140
    %vm195 = vcmp.eq.s32.totalorder %v131, %v139
    %vm196 = vcmp.eq.s32.totalorder %v131, %v140
    %vm197 = vcmp.eq.s32.totalorder %v132, %v139
    %vm198 = vcmp.eq.s32.totalorder %v132, %v140
    %vm199 = vcmp.eq.s32.totalorder %v133, %v139
    %vm200 = vcmp.eq.s32.totalorder %v133, %v140
    %vm201 = vcmp.eq.s32.totalorder %v134, %v139
    %vm202 = vcmp.eq.s32.totalorder %v134, %v140
    %vm203 = vcmp.eq.s32.totalorder %v135, %v139
    %vm204 = vcmp.eq.s32.totalorder %v135, %v140
    %v205 = vsel %vm141, 1, 0
    %v206 = vsel %vm142, 1, 0
    %v207 = vsel %vm143, 1, 0
    %v208 = vsel %vm144, 1, 0
    %v209 = vsel %vm145, 1, 0
    %v210 = vsel %vm146, 1, 0
    %v211 = vsel %vm147, 1, 0
    %v212 = vsel %vm148, 1, 0
    %v213 = vsel %vm149, 1, 0
    %v214 = vsel %vm150, 1, 0
    %v215 = vsel %vm151, 1, 0
    %v216 = vsel %vm152, 1, 0
    %v217 = vsel %vm153, 1, 0
    %v218 = vsel %vm154, 1, 0
    %v219 = vsel %vm155, 1, 0
    %v220 = vsel %vm156, 1, 0
    %v221 = vsel %vm157, 1, 0
    %v222 = vsel %vm158, 1, 0
    %v223 = vsel %vm159, 1, 0
    %v224 = vsel %vm160, 1, 0
    %v225 = vsel %vm161, 1, 0
    %v226 = vsel %vm162, 1, 0
    %v227 = vsel %vm163, 1, 0
    %v228 = vsel %vm164, 1, 0
    %v229 = vsel %vm165, 1, 0
    %v230 = vsel %vm166, 1, 0
    %v231 = vsel %vm167, 1, 0
    %v232 = vsel %vm168, 1, 0
    %v233 = vsel %vm169, 1, 0
    %v234 = vsel %vm170, 1, 0
    %v235 = vsel %vm171, 1, 0
    %v236 = vsel %vm172, 1, 0
    %v237 = vsel %vm173, 1, 0
    %v238 = vsel %vm174, 1, 0
    %v239 = vsel %vm175, 1, 0
    %v240 = vsel %vm176, 1, 0
    %v241 = vsel %vm177, 1, 0
    %v242 = vsel %vm178, 1, 0
    %v243 = vsel %vm179, 1, 0
    %v244 = vsel %vm180, 1, 0
    %v245 = vsel %vm181, 1, 0
    %v246 = vsel %vm182, 1, 0
    %v247 = vsel %vm183, 1, 0
    %v248 = vsel %vm184, 1, 0
    %v249 = vsel %vm185, 1, 0
    %v250 = vsel %vm186, 1, 0
    %v251 = vsel %vm187, 1, 0
    %v252 = vsel %vm188, 1, 0
    %v253 = vsel %vm189, 1, 0
    %v254 = vsel %vm190, 1, 0
    %v255 = vsel %vm191, 1, 0
    %v256 = vsel %vm192, 1, 0
    %v257 = vsel %vm193, 1, 0
    %v258 = vsel %vm194, 1, 0
    %v259 = vsel %vm195, 1, 0
    %v260 = vsel %vm196, 1, 0
    %v261 = vsel %vm197, 1, 0
    %v262 = vsel %vm198, 1, 0
    %v263 = vsel %vm199, 1, 0
    %v264 = vsel %vm200, 1, 0
    %v265 = vsel %vm201, 1, 0
    %v266 = vsel %vm202, 1, 0
    %v267 = vsel %vm203, 1, 0
    %v268 = vsel %vm204, 1, 0
    %v269 = vcvt.s32.f32 %v205
    %v270 = vcvt.s32.f32 %v206
    %v271 = vcvt.s32.f32 %v207
    %v272 = vcvt.s32.f32 %v208
    %v273 = vcvt.s32.f32 %v209
    %v274 = vcvt.s32.f32 %v210
    %v275 = vcvt.s32.f32 %v211
    %v276 = vcvt.s32.f32 %v212
    %v277 = vcvt.s32.f32 %v213
    %v278 = vcvt.s32.f32 %v214
    %v279 = vcvt.s32.f32 %v215
    %v280 = vcvt.s32.f32 %v216
    %v281 = vcvt.s32.f32 %v217
    %v282 = vcvt.s32.f32 %v218
    %v283 = vcvt.s32.f32 %v219
    %v284 = vcvt.s32.f32 %v220
    %v285 = vcvt.s32.f32 %v221
    %v286 = vcvt.s32.f32 %v222
    %v287 = vcvt.s32.f32 %v223
    %v288 = vcvt.s32.f32 %v224
    %v289 = vcvt.s32.f32 %v225
    %v290 = vcvt.s32.f32 %v226
    %v291 = vcvt.s32.f32 %v227
    %v292 = vcvt.s32.f32 %v228
    %v293 = vcvt.s32.f32 %v229
    %v294 = vcvt.s32.f32 %v230
    %v295 = vcvt.s32.f32 %v231
    %v296 = vcvt.s32.f32 %v232
    %v297 = vcvt.s32.f32 %v233
    %v298 = vcvt.s32.f32 %v234
    %v299 = vcvt.s32.f32 %v235
    %v300 = vcvt.s32.f32 %v236
    %v301 = vcvt.s32.f32 %v237
    %v302 = vcvt.s32.f32 %v238
    %v303 = vcvt.s32.f32 %v239
    %v304 = vcvt.s32.f32 %v240
    %v305 = vcvt.s32.f32 %v241
    %v306 = vcvt.s32.f32 %v242
    %v307 = vcvt.s32.f32 %v243
    %v308 = vcvt.s32.f32 %v244
    %v309 = vcvt.s32.f32 %v245
    %v310 = vcvt.s32.f32 %v246
    %v311 = vcvt.s32.f32 %v247
    %v312 = vcvt.s32.f32 %v248
    %v313 = vcvt.s32.f32 %v249
    %v314 = vcvt.s32.f32 %v250
    %v315 = vcvt.s32.f32 %v251
    %v316 = vcvt.s32.f32 %v252
    %v317 = vcvt.s32.f32 %v253
    %v318 = vcvt.s32.f32 %v254
    %v319 = vcvt.s32.f32 %v255
    %v320 = vcvt.s32.f32 %v256
    %v321 = vcvt.s32.f32 %v257
    %v322 = vcvt.s32.f32 %v258
    %v323 = vcvt.s32.f32 %v259
    %v324 = vcvt.s32.f32 %v260
    %v325 = vcvt.s32.f32 %v261
    %v326 = vcvt.s32.f32 %v262
    %v327 = vcvt.s32.f32 %v263
    %v328 = vcvt.s32.f32 %v264
    %v329 = vcvt.s32.f32 %v265
    %v330 = vcvt.s32.f32 %v266
    %v331 = vcvt.s32.f32 %v267
    %v332 = vcvt.s32.f32 %v268
    %v333 = vadd.s32 %v89, 16
    %v334 = vadd.s32 %v136, 16
    %vm335 = vcmp.eq.s32.totalorder %v86, %v333
    %vm336 = vcmp.eq.s32.totalorder %v86, %v334
    %vm337 = vcmp.eq.s32.totalorder %v87, %v333
    %vm338 = vcmp.eq.s32.totalorder %v87, %v334
    %vm339 = vcmp.eq.s32.totalorder %v106, %v333
    %vm340 = vcmp.eq.s32.totalorder %v106, %v334
    %vm341 = vcmp.eq.s32.totalorder %v107, %v333
    %vm342 = vcmp.eq.s32.totalorder %v107, %v334
    %vm343 = vcmp.eq.s32.totalorder %v108, %v333
    %vm344 = vcmp.eq.s32.totalorder %v108, %v334
    %vm345 = vcmp.eq.s32.totalorder %v109, %v333
    %vm346 = vcmp.eq.s32.totalorder %v109, %v334
    %vm347 = vcmp.eq.s32.totalorder %v110, %v333
    %vm348 = vcmp.eq.s32.totalorder %v110, %v334
    %vm349 = vcmp.eq.s32.totalorder %v111, %v333
    %vm350 = vcmp.eq.s32.totalorder %v111, %v334
    %vm351 = vcmp.eq.s32.totalorder %v112, %v333
    %vm352 = vcmp.eq.s32.totalorder %v112, %v334
    %vm353 = vcmp.eq.s32.totalorder %v113, %v333
    %vm354 = vcmp.eq.s32.totalorder %v113, %v334
    %vm355 = vcmp.eq.s32.totalorder %v114, %v333
    %vm356 = vcmp.eq.s32.totalorder %v114, %v334
    %vm357 = vcmp.eq.s32.totalorder %v115, %v333
    %vm358 = vcmp.eq.s32.totalorder %v115, %v334
    %vm359 = vcmp.eq.s32.totalorder %v116, %v333
    %vm360 = vcmp.eq.s32.totalorder %v116, %v334
    %vm361 = vcmp.eq.s32.totalorder %v117, %v333
    %vm362 = vcmp.eq.s32.totalorder %v117, %v334
    %vm363 = vcmp.eq.s32.totalorder %v118, %v333
    %vm364 = vcmp.eq.s32.totalorder %v118, %v334
    %vm365 = vcmp.eq.s32.totalorder %v119, %v333
    %vm366 = vcmp.eq.s32.totalorder %v119, %v334
    %vm367 = vcmp.eq.s32.totalorder %v120, %v333
    %vm368 = vcmp.eq.s32.totalorder %v120, %v334
    %vm369 = vcmp.eq.s32.totalorder %v121, %v333
    %vm370 = vcmp.eq.s32.totalorder %v121, %v334
    %vm371 = vcmp.eq.s32.totalorder %v122, %v333
    %vm372 = vcmp.eq.s32.totalorder %v122, %v334
    %vm373 = vcmp.eq.s32.totalorder %v123, %v333
    %vm374 = vcmp.eq.s32.totalorder %v123, %v334
    %vm375 = vcmp.eq.s32.totalorder %v124, %v333
    %vm376 = vcmp.eq.s32.totalorder %v124, %v334
    %vm377 = vcmp.eq.s32.totalorder %v125, %v333
    %vm378 = vcmp.eq.s32.totalorder %v125, %v334
    %vm379 = vcmp.eq.s32.totalorder %v126, %v333
    %vm380 = vcmp.eq.s32.totalorder %v126, %v334
    %vm381 = vcmp.eq.s32.totalorder %v127, %v333
    %vm382 = vcmp.eq.s32.totalorder %v127, %v334
    %vm383 = vcmp.eq.s32.totalorder %v128, %v333
    %vm384 = vcmp.eq.s32.totalorder %v128, %v334
    %vm385 = vcmp.eq.s32.totalorder %v129, %v333
    %vm386 = vcmp.eq.s32.totalorder %v129, %v334
    %vm387 = vcmp.eq.s32.totalorder %v130, %v333
    %vm388 = vcmp.eq.s32.totalorder %v130, %v334
    %vm389 = vcmp.eq.s32.totalorder %v131, %v333
    %vm390 = vcmp.eq.s32.totalorder %v131, %v334
    %vm391 = vcmp.eq.s32.totalorder %v132, %v333
    %vm392 = vcmp.eq.s32.totalorder %v132, %v334
    %vm393 = vcmp.eq.s32.totalorder %v133, %v333
    %vm394 = vcmp.eq.s32.totalorder %v133, %v334
    %vm395 = vcmp.eq.s32.totalorder %v134, %v333
    %vm396 = vcmp.eq.s32.totalorder %v134, %v334
    %vm397 = vcmp.eq.s32.totalorder %v135, %v333
    %vm398 = vcmp.eq.s32.totalorder %v135, %v334
    %v399 = vsel %vm335, 1, 0
    %v400 = vsel %vm336, 1, 0
    %v401 = vsel %vm337, 1, 0
    %v402 = vsel %vm338, 1, 0
    %v403 = vsel %vm339, 1, 0
    %v404 = vsel %vm340, 1, 0
    %v405 = vsel %vm341, 1, 0
    %v406 = vsel %vm342, 1, 0
    %v407 = vsel %vm343, 1, 0
    %v408 = vsel %vm344, 1, 0
    %v409 = vsel %vm345, 1, 0
    %v410 = vsel %vm346, 1, 0
    %v411 = vsel %vm347, 1, 0
    %v412 = vsel %vm348, 1, 0
    %v413 = vsel %vm349, 1, 0
    %v414 = vsel %vm350, 1, 0
    %v415 = vsel %vm351, 1, 0
    %v416 = vsel %vm352, 1, 0
    %v417 = vsel %vm353, 1, 0
    %v418 = vsel %vm354, 1, 0
    %v419 = vsel %vm355, 1, 0
    %v420 = vsel %vm356, 1, 0
    %v421 = vsel %vm357, 1, 0
    %v422 = vsel %vm358, 1, 0
    %v423 = vsel %vm359, 1, 0
    %v424 = vsel %vm360, 1, 0
    %v425 = vsel %vm361, 1, 0
    %v426 = vsel %vm362, 1, 0
    %v427 = vsel %vm363, 1, 0
    %v428 = vsel %vm364, 1, 0
    %v429 = vsel %vm365, 1, 0
    %v430 = vsel %vm366, 1, 0
    %v431 = vsel %vm367, 1, 0
    %v432 = vsel %vm368, 1, 0
    %v433 = vsel %vm369, 1, 0
    %v434 = vsel %vm370, 1, 0
    %v435 = vsel %vm371, 1, 0
    %v436 = vsel %vm372, 1, 0
    %v437 = vsel %vm373, 1, 0
    %v438 = vsel %vm374, 1, 0
    %v439 = vsel %vm375, 1, 0
    %v440 = vsel %vm376, 1, 0
    %v441 = vsel %vm377, 1, 0
    %v442 = vsel %vm378, 1, 0
    %v443 = vsel %vm379, 1, 0
    %v444 = vsel %vm380, 1, 0
    %v445 = vsel %vm381, 1, 0
    %v446 = vsel %vm382, 1, 0
    %v447 = vsel %vm383, 1, 0
    %v448 = vsel %vm384, 1, 0
    %v449 = vsel %vm385, 1, 0
    %v450 = vsel %vm386, 1, 0
    %v451 = vsel %vm387, 1, 0
    %v452 = vsel %vm388, 1, 0
    %v453 = vsel %vm389, 1, 0
    %v454 = vsel %vm390, 1, 0
    %v455 = vsel %vm391, 1, 0
    %v456 = vsel %vm392, 1, 0
    %v457 = vsel %vm393, 1, 0
    %v458 = vsel %vm394, 1, 0
    %v459 = vsel %vm395, 1, 0
    %v460 = vsel %vm396, 1, 0
    %v461 = vsel %vm397, 1, 0
    %v462 = vsel %vm398, 1, 0
    %v463 = vcvt.s32.f32 %v399
    %v464 = vcvt.s32.f32 %v400
    %v465 = vcvt.s32.f32 %v401
    %v466 = vcvt.s32.f32 %v402
    %v467 = vcvt.s32.f32 %v403
    %v468 = vcvt.s32.f32 %v404
    %v469 = vcvt.s32.f32 %v405
    %v470 = vcvt.s32.f32 %v406
    %v471 = vcvt.s32.f32 %v407
    %v472 = vcvt.s32.f32 %v408
    %v473 = vcvt.s32.f32 %v409
    %v474 = vcvt.s32.f32 %v410
    %v475 = vcvt.s32.f32 %v411
    %v476 = vcvt.s32.f32 %v412
    %v477 = vcvt.s32.f32 %v413
    %v478 = vcvt.s32.f32 %v414
    %v479 = vcvt.s32.f32 %v415
    %v480 = vcvt.s32.f32 %v416
    %v481 = vcvt.s32.f32 %v417
    %v482 = vcvt.s32.f32 %v418
    %v483 = vcvt.s32.f32 %v419
    %v484 = vcvt.s32.f32 %v420
    %v485 = vcvt.s32.f32 %v421
    %v486 = vcvt.s32.f32 %v422
    %v487 = vcvt.s32.f32 %v423
    %v488 = vcvt.s32.f32 %v424
    %v489 = vcvt.s32.f32 %v425
    %v490 = vcvt.s32.f32 %v426
    %v491 = vcvt.s32.f32 %v427
    %v492 = vcvt.s32.f32 %v428
    %v493 = vcvt.s32.f32 %v429
    %v494 = vcvt.s32.f32 %v430
    %v495 = vcvt.s32.f32 %v431
    %v496 = vcvt.s32.f32 %v432
    %v497 = vcvt.s32.f32 %v433
    %v498 = vcvt.s32.f32 %v434
    %v499 = vcvt.s32.f32 %v435
    %v500 = vcvt.s32.f32 %v436
    %v501 = vcvt.s32.f32 %v437
    %v502 = vcvt.s32.f32 %v438
    %v503 = vcvt.s32.f32 %v439
    %v504 = vcvt.s32.f32 %v440
    %v505 = vcvt.s32.f32 %v441
    %v506 = vcvt.s32.f32 %v442
    %v507 = vcvt.s32.f32 %v443
    %v508 = vcvt.s32.f32 %v444
    %v509 = vcvt.s32.f32 %v445
    %v510 = vcvt.s32.f32 %v446
    %v511 = vcvt.s32.f32 %v447
    %v512 = vcvt.s32.f32 %v448
    %v513 = vcvt.s32.f32 %v449
    %v514 = vcvt.s32.f32 %v450
    %v515 = vcvt.s32.f32 %v451
    %v516 = vcvt.s32.f32 %v452
    %v517 = vcvt.s32.f32 %v453
    %v518 = vcvt.s32.f32 %v454
    %v519 = vcvt.s32.f32 %v455
    %v520 = vcvt.s32.f32 %v456
    %v521 = vcvt.s32.f32 %v457
    %v522 = vcvt.s32.f32 %v458
    %v523 = vcvt.s32.f32 %v459
    %v524 = vcvt.s32.f32 %v460
    %v525 = vcvt.s32.f32 %v461
    %v526 = vcvt.s32.f32 %v462
    %v527 = vsub.s32 %v89, 1
    %v528 = vsub.s32 %v136, 1
    %vm529 = vcmp.eq.s32.totalorder %v86, %v527
    %vm530 = vcmp.eq.s32.totalorder %v86, %v528
    %vm531 = vcmp.eq.s32.totalorder %v87, %v527
    %vm532 = vcmp.eq.s32.totalorder %v87, %v528
    %vm533 = vcmp.eq.s32.totalorder %v106, %v527
    %vm534 = vcmp.eq.s32.totalorder %v106, %v528
    %vm535 = vcmp.eq.s32.totalorder %v107, %v527
    %vm536 = vcmp.eq.s32.totalorder %v107, %v528
    %vm537 = vcmp.eq.s32.totalorder %v108, %v527
    %vm538 = vcmp.eq.s32.totalorder %v108, %v528
    %vm539 = vcmp.eq.s32.totalorder %v109, %v527
    %vm540 = vcmp.eq.s32.totalorder %v109, %v528
    %vm541 = vcmp.eq.s32.totalorder %v110, %v527
    %vm542 = vcmp.eq.s32.totalorder %v110, %v528
    %vm543 = vcmp.eq.s32.totalorder %v111, %v527
    %vm544 = vcmp.eq.s32.totalorder %v111, %v528
    %vm545 = vcmp.eq.s32.totalorder %v112, %v527
    %vm546 = vcmp.eq.s32.totalorder %v112, %v528
    %vm547 = vcmp.eq.s32.totalorder %v113, %v527
    %vm548 = vcmp.eq.s32.totalorder %v113, %v528
    %vm549 = vcmp.eq.s32.totalorder %v114, %v527
    %vm550 = vcmp.eq.s32.totalorder %v114, %v528
    %vm551 = vcmp.eq.s32.totalorder %v115, %v527
    %vm552 = vcmp.eq.s32.totalorder %v115, %v528
    %vm553 = vcmp.eq.s32.totalorder %v116, %v527
    %vm554 = vcmp.eq.s32.totalorder %v116, %v528
    %vm555 = vcmp.eq.s32.totalorder %v117, %v527
    %vm556 = vcmp.eq.s32.totalorder %v117, %v528
    %vm557 = vcmp.eq.s32.totalorder %v118, %v527
    %vm558 = vcmp.eq.s32.totalorder %v118, %v528
    %vm559 = vcmp.eq.s32.totalorder %v119, %v527
    %vm560 = vcmp.eq.s32.totalorder %v119, %v528
    %vm561 = vcmp.eq.s32.totalorder %v120, %v527
    %vm562 = vcmp.eq.s32.totalorder %v120, %v528
    %vm563 = vcmp.eq.s32.totalorder %v121, %v527
    %vm564 = vcmp.eq.s32.totalorder %v121, %v528
    %vm565 = vcmp.eq.s32.totalorder %v122, %v527
    %vm566 = vcmp.eq.s32.totalorder %v122, %v528
    %vm567 = vcmp.eq.s32.totalorder %v123, %v527
    %vm568 = vcmp.eq.s32.totalorder %v123, %v528
    %vm569 = vcmp.eq.s32.totalorder %v124, %v527
    %vm570 = vcmp.eq.s32.totalorder %v124, %v528
    %vm571 = vcmp.eq.s32.totalorder %v125, %v527
    %vm572 = vcmp.eq.s32.totalorder %v125, %v528
    %vm573 = vcmp.eq.s32.totalorder %v126, %v527
    %vm574 = vcmp.eq.s32.totalorder %v126, %v528
    %vm575 = vcmp.eq.s32.totalorder %v127, %v527
    %vm576 = vcmp.eq.s32.totalorder %v127, %v528
    %vm577 = vcmp.eq.s32.totalorder %v128, %v527
    %vm578 = vcmp.eq.s32.totalorder %v128, %v528
    %vm579 = vcmp.eq.s32.totalorder %v129, %v527
    %vm580 = vcmp.eq.s32.totalorder %v129, %v528
    %vm581 = vcmp.eq.s32.totalorder %v130, %v527
    %vm582 = vcmp.eq.s32.totalorder %v130, %v528
    %vm583 = vcmp.eq.s32.totalorder %v131, %v527
    %vm584 = vcmp.eq.s32.totalorder %v131, %v528
    %vm585 = vcmp.eq.s32.totalorder %v132, %v527
    %vm586 = vcmp.eq.s32.totalorder %v132, %v528
    %vm587 = vcmp.eq.s32.totalorder %v133, %v527
    %vm588 = vcmp.eq.s32.totalorder %v133, %v528
    %vm589 = vcmp.eq.s32.totalorder %v134, %v527
    %vm590 = vcmp.eq.s32.totalorder %v134, %v528
    %vm591 = vcmp.eq.s32.totalorder %v135, %v527
    %vm592 = vcmp.eq.s32.totalorder %v135, %v528
    %vm593 = vcmp.ne.s32.totalorder %v137, 0
    %vm594 = vcmp.ne.s32.totalorder %v138, 0
    %vm595 = vmand %vm529, %vm593
    %vm596 = vmand %vm530, %vm594
    %vm597 = vmand %vm531, %vm593
    %vm598 = vmand %vm532, %vm594
    %vm599 = vmand %vm533, %vm593
    %vm600 = vmand %vm534, %vm594
    %vm601 = vmand %vm535, %vm593
    %vm602 = vmand %vm536, %vm594
    %vm603 = vmand %vm537, %vm593
    %vm604 = vmand %vm538, %vm594
    %vm605 = vmand %vm539, %vm593
    %vm606 = vmand %vm540, %vm594
    %vm607 = vmand %vm541, %vm593
    %vm608 = vmand %vm542, %vm594
    %vm609 = vmand %vm543, %vm593
    %vm610 = vmand %vm544, %vm594
    %vm611 = vmand %vm545, %vm593
    %vm612 = vmand %vm546, %vm594
    %vm613 = vmand %vm547, %vm593
    %vm614 = vmand %vm548, %vm594
    %vm615 = vmand %vm549, %vm593
    %vm616 = vmand %vm550, %vm594
    %vm617 = vmand %vm551, %vm593
    %vm618 = vmand %vm552, %vm594
    %vm619 = vmand %vm553, %vm593
    %vm620 = vmand %vm554, %vm594
    %vm621 = vmand %vm555, %vm593
    %vm622 = vmand %vm556, %vm594
    %vm623 = vmand %vm557, %vm593
    %vm624 = vmand %vm558, %vm594
    %vm625 = vmand %vm559, %vm593
    %vm626 = vmand %vm560, %vm594
    %vm627 = vmand %vm561, %vm593
    %vm628 = vmand %vm562, %vm594
    %vm629 = vmand %vm563, %vm593
    %vm630 = vmand %vm564, %vm594
    %vm631 = vmand %vm565, %vm593
    %vm632 = vmand %vm566, %vm594
    %vm633 = vmand %vm567, %vm593
    %vm634 = vmand %vm568, %vm594
    %vm635 = vmand %vm569, %vm593
    %vm636 = vmand %vm570, %vm594
    %vm637 = vmand %vm571, %vm593
    %vm638 = vmand %vm572, %vm594
    %vm639 = vmand %vm573, %vm593
    %vm640 = vmand %vm574, %vm594
    %vm641 = vmand %vm575, %vm593
    %vm642 = vmand %vm576, %vm594
    %vm643 = vmand %vm577, %vm593
    %vm644 = vmand %vm578, %vm594
    %vm645 = vmand %vm579, %vm593
    %vm646 = vmand %vm580, %vm594
    %vm647 = vmand %vm581, %vm593
    %vm648 = vmand %vm582, %vm594
    %vm649 = vmand %vm583, %vm593
    %vm650 = vmand %vm584, %vm594
    %vm651 = vmand %vm585, %vm593
    %vm652 = vmand %vm586, %vm594
    %vm653 = vmand %vm587, %vm593
    %vm654 = vmand %vm588, %vm594
    %vm655 = vmand %vm589, %vm593
    %vm656 = vmand %vm590, %vm594
    %vm657 = vmand %vm591, %vm593
    %vm658 = vmand %vm592, %vm594
    %v659 = vsel %vm595, 1, 0
    %v660 = vsel %vm596, 1, 0
    %v661 = vsel %vm597, 1, 0
    %v662 = vsel %vm598, 1, 0
    %v663 = vsel %vm599, 1, 0
    %v664 = vsel %vm600, 1, 0
    %v665 = vsel %vm601, 1, 0
    %v666 = vsel %vm602, 1, 0
    %v667 = vsel %vm603, 1, 0
    %v668 = vsel %vm604, 1, 0
    %v669 = vsel %vm605, 1, 0
    %v670 = vsel %vm606, 1, 0
    %v671 = vsel %vm607, 1, 0
    %v672 = vsel %vm608, 1, 0
    %v673 = vsel %vm609, 1, 0
    %v674 = vsel %vm610, 1, 0
    %v675 = vsel %vm611, 1, 0
    %v676 = vsel %vm612, 1, 0
    %v677 = vsel %vm613, 1, 0
    %v678 = vsel %vm614, 1, 0
    %v679 = vsel %vm615, 1, 0
    %v680 = vsel %vm616, 1, 0
    %v681 = vsel %vm617, 1, 0
    %v682 = vsel %vm618, 1, 0
    %v683 = vsel %vm619, 1, 0
    %v684 = vsel %vm620, 1, 0
    %v685 = vsel %vm621, 1, 0
    %v686 = vsel %vm622, 1, 0
    %v687 = vsel %vm623, 1, 0
    %v688 = vsel %vm624, 1, 0
    %v689 = vsel %vm625, 1, 0
    %v690 = vsel %vm626, 1, 0
    %v691 = vsel %vm627, 1, 0
    %v692 = vsel %vm628, 1, 0
    %v693 = vsel %vm629, 1, 0
    %v694 = vsel %vm630, 1, 0
    %v695 = vsel %vm631, 1, 0
    %v696 = vsel %vm632, 1, 0
    %v697 = vsel %vm633, 1, 0
    %v698 = vsel %vm634, 1, 0
    %v699 = vsel %vm635, 1, 0
    %v700 = vsel %vm636, 1, 0
    %v701 = vsel %vm637, 1, 0
    %v702 = vsel %vm638, 1, 0
    %v703 = vsel %vm639, 1, 0
    %v704 = vsel %vm640, 1, 0
    %v705 = vsel %vm641, 1, 0
    %v706 = vsel %vm642, 1, 0
    %v707 = vsel %vm643, 1, 0
    %v708 = vsel %vm644, 1, 0
    %v709 = vsel %vm645, 1, 0
    %v710 = vsel %vm646, 1, 0
    %v711 = vsel %vm647, 1, 0
    %v712 = vsel %vm648, 1, 0
    %v713 = vsel %vm649, 1, 0
    %v714 = vsel %vm650, 1, 0
    %v715 = vsel %vm651, 1, 0
    %v716 = vsel %vm652, 1, 0
    %v717 = vsel %vm653, 1, 0
    %v718 = vsel %vm654, 1, 0
    %v719 = vsel %vm655, 1, 0
    %v720 = vsel %vm656, 1, 0
    %v721 = vsel %vm657, 1, 0
    %v722 = vsel %vm658, 1, 0
    %v723 = vcvt.s32.f32 %v659
    %v724 = vcvt.s32.f32 %v660
    %v725 = vcvt.s32.f32 %v661
    %v726 = vcvt.s32.f32 %v662
    %v727 = vcvt.s32.f32 %v663
    %v728 = vcvt.s32.f32 %v664
    %v729 = vcvt.s32.f32 %v665
    %v730 = vcvt.s32.f32 %v666
    %v731 = vcvt.s32.f32 %v667
    %v732 = vcvt.s32.f32 %v668
    %v733 = vcvt.s32.f32 %v669
    %v734 = vcvt.s32.f32 %v670
    %v735 = vcvt.s32.f32 %v671
    %v736 = vcvt.s32.f32 %v672
    %v737 = vcvt.s32.f32 %v673
    %v738 = vcvt.s32.f32 %v674
    %v739 = vcvt.s32.f32 %v675
    %v740 = vcvt.s32.f32 %v676
    %v741 = vcvt.s32.f32 %v677
    %v742 = vcvt.s32.f32 %v678
    %v743 = vcvt.s32.f32 %v679
    %v744 = vcvt.s32.f32 %v680
    %v745 = vcvt.s32.f32 %v681
    %v746 = vcvt.s32.f32 %v682
    %v747 = vcvt.s32.f32 %v683
    %v748 = vcvt.s32.f32 %v684
    %v749 = vcvt.s32.f32 %v685
    %v750 = vcvt.s32.f32 %v686
    %v751 = vcvt.s32.f32 %v687
    %v752 = vcvt.s32.f32 %v688
    %v753 = vcvt.s32.f32 %v689
    %v754 = vcvt.s32.f32 %v690
    %v755 = vcvt.s32.f32 %v691
    %v756 = vcvt.s32.f32 %v692
    %v757 = vcvt.s32.f32 %v693
    %v758 = vcvt.s32.f32 %v694
    %v759 = vcvt.s32.f32 %v695
    %v760 = vcvt.s32.f32 %v696
    %v761 = vcvt.s32.f32 %v697
    %v762 = vcvt.s32.f32 %v698
    %v763 = vcvt.s32.f32 %v699
    %v764 = vcvt.s32.f32 %v700
    %v765 = vcvt.s32.f32 %v701
    %v766 = vcvt.s32.f32 %v702
    %v767 = vcvt.s32.f32 %v703
    %v768 = vcvt.s32.f32 %v704
    %v769 = vcvt.s32.f32 %v705
    %v770 = vcvt.s32.f32 %v706
    %v771 = vcvt.s32.f32 %v707
    %v772 = vcvt.s32.f32 %v708
    %v773 = vcvt.s32.f32 %v709
    %v774 = vcvt.s32.f32 %v710
    %v775 = vcvt.s32.f32 %v711
    %v776 = vcvt.s32.f32 %v712
    %v777 = vcvt.s32.f32 %v713
    %v778 = vcvt.s32.f32 %v714
    %v779 = vcvt.s32.f32 %v715
    %v780 = vcvt.s32.f32 %v716
    %v781 = vcvt.s32.f32 %v717
    %v782 = vcvt.s32.f32 %v718
    %v783 = vcvt.s32.f32 %v719
    %v784 = vcvt.s32.f32 %v720
    %v785 = vcvt.s32.f32 %v721
    %v786 = vcvt.s32.f32 %v722
    %v787 = vadd.s32 %v89, 1
    %v788 = vadd.s32 %v136, 1
    %vm789 = vcmp.eq.s32.totalorder %v86, %v787
    %vm790 = vcmp.eq.s32.totalorder %v86, %v788
    %vm791 = vcmp.eq.s32.totalorder %v87, %v787
    %vm792 = vcmp.eq.s32.totalorder %v87, %v788
    %vm793 = vcmp.eq.s32.totalorder %v106, %v787
    %vm794 = vcmp.eq.s32.totalorder %v106, %v788
    %vm795 = vcmp.eq.s32.totalorder %v107, %v787
    %vm796 = vcmp.eq.s32.totalorder %v107, %v788
    %vm797 = vcmp.eq.s32.totalorder %v108, %v787
    %vm798 = vcmp.eq.s32.totalorder %v108, %v788
    %vm799 = vcmp.eq.s32.totalorder %v109, %v787
    %vm800 = vcmp.eq.s32.totalorder %v109, %v788
    %vm801 = vcmp.eq.s32.totalorder %v110, %v787
    %vm802 = vcmp.eq.s32.totalorder %v110, %v788
    %vm803 = vcmp.eq.s32.totalorder %v111, %v787
    %vm804 = vcmp.eq.s32.totalorder %v111, %v788
    %vm805 = vcmp.eq.s32.totalorder %v112, %v787
    %vm806 = vcmp.eq.s32.totalorder %v112, %v788
    %vm807 = vcmp.eq.s32.totalorder %v113, %v787
    %vm808 = vcmp.eq.s32.totalorder %v113, %v788
    %vm809 = vcmp.eq.s32.totalorder %v114, %v787
    %vm810 = vcmp.eq.s32.totalorder %v114, %v788
    %vm811 = vcmp.eq.s32.totalorder %v115, %v787
    %vm812 = vcmp.eq.s32.totalorder %v115, %v788
    %vm813 = vcmp.eq.s32.totalorder %v116, %v787
    %vm814 = vcmp.eq.s32.totalorder %v116, %v788
    %vm815 = vcmp.eq.s32.totalorder %v117, %v787
    %vm816 = vcmp.eq.s32.totalorder %v117, %v788
    %vm817 = vcmp.eq.s32.totalorder %v118, %v787
    %vm818 = vcmp.eq.s32.totalorder %v118, %v788
    %vm819 = vcmp.eq.s32.totalorder %v119, %v787
    %vm820 = vcmp.eq.s32.totalorder %v119, %v788
    %vm821 = vcmp.eq.s32.totalorder %v120, %v787
    %vm822 = vcmp.eq.s32.totalorder %v120, %v788
    %vm823 = vcmp.eq.s32.totalorder %v121, %v787
    %vm824 = vcmp.eq.s32.totalorder %v121, %v788
    %vm825 = vcmp.eq.s32.totalorder %v122, %v787
    %vm826 = vcmp.eq.s32.totalorder %v122, %v788
    %vm827 = vcmp.eq.s32.totalorder %v123, %v787
    %vm828 = vcmp.eq.s32.totalorder %v123, %v788
    %vm829 = vcmp.eq.s32.totalorder %v124, %v787
    %vm830 = vcmp.eq.s32.totalorder %v124, %v788
    %vm831 = vcmp.eq.s32.totalorder %v125, %v787
    %vm832 = vcmp.eq.s32.totalorder %v125, %v788
    %vm833 = vcmp.eq.s32.totalorder %v126, %v787
    %vm834 = vcmp.eq.s32.totalorder %v126, %v788
    %vm835 = vcmp.eq.s32.totalorder %v127, %v787
    %vm836 = vcmp.eq.s32.totalorder %v127, %v788
    %vm837 = vcmp.eq.s32.totalorder %v128, %v787
    %vm838 = vcmp.eq.s32.totalorder %v128, %v788
    %vm839 = vcmp.eq.s32.totalorder %v129, %v787
    %vm840 = vcmp.eq.s32.totalorder %v129, %v788
    %vm841 = vcmp.eq.s32.totalorder %v130, %v787
    %vm842 = vcmp.eq.s32.totalorder %v130, %v788
    %vm843 = vcmp.eq.s32.totalorder %v131, %v787
    %vm844 = vcmp.eq.s32.totalorder %v131, %v788
    %vm845 = vcmp.eq.s32.totalorder %v132, %v787
    %vm846 = vcmp.eq.s32.totalorder %v132, %v788
    %vm847 = vcmp.eq.s32.totalorder %v133, %v787
    %vm848 = vcmp.eq.s32.totalorder %v133, %v788
    %vm849 = vcmp.eq.s32.totalorder %v134, %v787
    %vm850 = vcmp.eq.s32.totalorder %v134, %v788
    %vm851 = vcmp.eq.s32.totalorder %v135, %v787
    %vm852 = vcmp.eq.s32.totalorder %v135, %v788
    %vm853 = vcmp.ne.s32.totalorder %v137, 15
    %vm854 = vcmp.ne.s32.totalorder %v138, 15
    %vm855 = vmand %vm789, %vm853
    %vm856 = vmand %vm790, %vm854
    %vm857 = vmand %vm791, %vm853
    %vm858 = vmand %vm792, %vm854
    %vm859 = vmand %vm793, %vm853
    %vm860 = vmand %vm794, %vm854
    %vm861 = vmand %vm795, %vm853
    %vm862 = vmand %vm796, %vm854
    %vm863 = vmand %vm797, %vm853
    %vm864 = vmand %vm798, %vm854
    %vm865 = vmand %vm799, %vm853
    %vm866 = vmand %vm800, %vm854
    %vm867 = vmand %vm801, %vm853
    %vm868 = vmand %vm802, %vm854
    %vm869 = vmand %vm803, %vm853
    %vm870 = vmand %vm804, %vm854
    %vm871 = vmand %vm805, %vm853
    %vm872 = vmand %vm806, %vm854
    %vm873 = vmand %vm807, %vm853
    %vm874 = vmand %vm808, %vm854
    %vm875 = vmand %vm809, %vm853
    %vm876 = vmand %vm810, %vm854
    %vm877 = vmand %vm811, %vm853
    %vm878 = vmand %vm812, %vm854
    %vm879 = vmand %vm813, %vm853
    %vm880 = vmand %vm814, %vm854
    %vm881 = vmand %vm815, %vm853
    %vm882 = vmand %vm816, %vm854
    %vm883 = vmand %vm817, %vm853
    %vm884 = vmand %vm818, %vm854
    %vm885 = vmand %vm819, %vm853
    %vm886 = vmand %vm820, %vm854
    %vm887 = vmand %vm821, %vm853
    %vm888 = vmand %vm822, %vm854
    %vm889 = vmand %vm823, %vm853
    %vm890 = vmand %vm824, %vm854
    %vm891 = vmand %vm825, %vm853
    %vm892 = vmand %vm826, %vm854
    %vm893 = vmand %vm827, %vm853
    %vm894 = vmand %vm828, %vm854
    %vm895 = vmand %vm829, %vm853
    %vm896 = vmand %vm830, %vm854
    %vm897 = vmand %vm831, %vm853
    %vm898 = vmand %vm832, %vm854
    %vm899 = vmand %vm833, %vm853
    %vm900 = vmand %vm834, %vm854
    %vm901 = vmand %vm835, %vm853
    %vm902 = vmand %vm836, %vm854
    %vm903 = vmand %vm837, %vm853
    %vm904 = vmand %vm838, %vm854
    %vm905 = vmand %vm839, %vm853
    %vm906 = vmand %vm840, %vm854
    %vm907 = vmand %vm841, %vm853
    %vm908 = vmand %vm842, %vm854
    %vm909 = vmand %vm843, %vm853
    %vm910 = vmand %vm844, %vm854
    %vm911 = vmand %vm845, %vm853
    %vm912 = vmand %vm846, %vm854
    %vm913 = vmand %vm847, %vm853
    %vm914 = vmand %vm848, %vm854
    %vm915 = vmand %vm849, %vm853
    %vm916 = vmand %vm850, %vm854
    %vm917 = vmand %vm851, %vm853
    %vm918 = vmand %vm852, %vm854
    %v919 = vsel %vm855, 1, 0
    %v920 = vsel %vm856, 1, 0
    %v921 = vsel %vm857, 1, 0
    %v922 = vsel %vm858, 1, 0
    %v923 = vsel %vm859, 1, 0
    %v924 = vsel %vm860, 1, 0
    %v925 = vsel %vm861, 1, 0
    %v926 = vsel %vm862, 1, 0
    %v927 = vsel %vm863, 1, 0
    %v928 = vsel %vm864, 1, 0
    %v929 = vsel %vm865, 1, 0
    %v930 = vsel %vm866, 1, 0
    %v931 = vsel %vm867, 1, 0
    %v932 = vsel %vm868, 1, 0
    %v933 = vsel %vm869, 1, 0
    %v934 = vsel %vm870, 1, 0
    %v935 = vsel %vm871, 1, 0
    %v936 = vsel %vm872, 1, 0
    %v937 = vsel %vm873, 1, 0
    %v938 = vsel %vm874, 1, 0
    %v939 = vsel %vm875, 1, 0
    %v940 = vsel %vm876, 1, 0
    %v941 = vsel %vm877, 1, 0
    %v942 = vsel %vm878, 1, 0
    %v943 = vsel %vm879, 1, 0
    %v944 = vsel %vm880, 1, 0
    %v945 = vsel %vm881, 1, 0
    %v946 = vsel %vm882, 1, 0
    %v947 = vsel %vm883, 1, 0
    %v948 = vsel %vm884, 1, 0
    %v949 = vsel %vm885, 1, 0
    %v950 = vsel %vm886, 1, 0
    %v951 = vsel %vm887, 1, 0
    %v952 = vsel %vm888, 1, 0
    %v953 = vsel %vm889, 1, 0
    %v954 = vsel %vm890, 1, 0
    %v955 = vsel %vm891, 1, 0
    %v956 = vsel %vm892, 1, 0
    %v957 = vsel %vm893, 1, 0
    %v958 = vsel %vm894, 1, 0
    %v959 = vsel %vm895, 1, 0
    %v960 = vsel %vm896, 1, 0
    %v961 = vsel %vm897, 1, 0
    %v962 = vsel %vm898, 1, 0
    %v963 = vsel %vm899, 1, 0
    %v964 = vsel %vm900, 1, 0
    %v965 = vsel %vm901, 1, 0
    %v966 = vsel %vm902, 1, 0
    %v967 = vsel %vm903, 1, 0
    %v968 = vsel %vm904, 1, 0
    %v969 = vsel %vm905, 1, 0
    %v970 = vsel %vm906, 1, 0
    %v971 = vsel %vm907, 1, 0
    %v972 = vsel %vm908, 1, 0
    %v973 = vsel %vm909, 1, 0
    %v974 = vsel %vm910, 1, 0
    %v975 = vsel %vm911, 1, 0
    %v976 = vsel %vm912, 1, 0
    %v977 = vsel %vm913, 1, 0
    %v978 = vsel %vm914, 1, 0
    %v979 = vsel %vm915, 1, 0
    %v980 = vsel %vm916, 1, 0
    %v981 = vsel %vm917, 1, 0
    %v982 = vsel %vm918, 1, 0
    %v983 = vcvt.s32.f32 %v919
    %v984 = vcvt.s32.f32 %v920
    %v985 = vcvt.s32.f32 %v921
    %v986 = vcvt.s32.f32 %v922
    %v987 = vcvt.s32.f32 %v923
    %v988 = vcvt.s32.f32 %v924
    %v989 = vcvt.s32.f32 %v925
    %v990 = vcvt.s32.f32 %v926
    %v991 = vcvt.s32.f32 %v927
    %v992 = vcvt.s32.f32 %v928
    %v993 = vcvt.s32.f32 %v929
    %v994 = vcvt.s32.f32 %v930
    %v995 = vcvt.s32.f32 %v931
    %v996 = vcvt.s32.f32 %v932
    %v997 = vcvt.s32.f32 %v933
    %v998 = vcvt.s32.f32 %v934
    %v999 = vcvt.s32.f32 %v935
    %v1000 = vcvt.s32.f32 %v936
    %v1001 = vcvt.s32.f32 %v937
    %v1002 = vcvt.s32.f32 %v938
    %v1003 = vcvt.s32.f32 %v939
    %v1004 = vcvt.s32.f32 %v940
    %v1005 = vcvt.s32.f32 %v941
    %v1006 = vcvt.s32.f32 %v942
    %v1007 = vcvt.s32.f32 %v943
    %v1008 = vcvt.s32.f32 %v944
    %v1009 = vcvt.s32.f32 %v945
    %v1010 = vcvt.s32.f32 %v946
    %v1011 = vcvt.s32.f32 %v947
    %v1012 = vcvt.s32.f32 %v948
    %v1013 = vcvt.s32.f32 %v949
    %v1014 = vcvt.s32.f32 %v950
    %v1015 = vcvt.s32.f32 %v951
    %v1016 = vcvt.s32.f32 %v952
    %v1017 = vcvt.s32.f32 %v953
    %v1018 = vcvt.s32.f32 %v954
    %v1019 = vcvt.s32.f32 %v955
    %v1020 = vcvt.s32.f32 %v956
    %v1021 = vcvt.s32.f32 %v957
    %v1022 = vcvt.s32.f32 %v958
    %v1023 = vcvt.s32.f32 %v959
    %v1024 = vcvt.s32.f32 %v960
    %v1025 = vcvt.s32.f32 %v961
    %v1026 = vcvt.s32.f32 %v962
    %v1027 = vcvt.s32.f32 %v963
    %v1028 = vcvt.s32.f32 %v964
    %v1029 = vcvt.s32.f32 %v965
    %v1030 = vcvt.s32.f32 %v966
    %v1031 = vcvt.s32.f32 %v967
    %v1032 = vcvt.s32.f32 %v968
    %v1033 = vcvt.s32.f32 %v969
    %v1034 = vcvt.s32.f32 %v970
    %v1035 = vcvt.s32.f32 %v971
    %v1036 = vcvt.s32.f32 %v972
    %v1037 = vcvt.s32.f32 %v973
    %v1038 = vcvt.s32.f32 %v974
    %v1039 = vcvt.s32.f32 %v975
    %v1040 = vcvt.s32.f32 %v976
    %v1041 = vcvt.s32.f32 %v977
    %v1042 = vcvt.s32.f32 %v978
    %v1043 = vcvt.s32.f32 %v979
    %v1044 = vcvt.s32.f32 %v980
    %v1045 = vcvt.s32.f32 %v981
    %v1046 = vcvt.s32.f32 %v982
    %vm1047 = vcmask 130048
    %v1049 = vsel %vm1047, %v96, 0
    %v1052 = vsel %vm1047, %v97, 0
    %1054 = vmatprep.subr.mxu0 %v82
    %1055 = vmatpush1.msra.mxu0 %v81
    %1056 = vmatprep.subr.mxu0 %v84
    %1057 = vmatpush1.msra.mxu0 %v83
    %1058 = vmatprep.subr.mxu0 0.0
    %1059 = vmatpush1.msra.mxu0 0.0
    %1060 = vmatprep.subr.mxu0 0.0
    %1061 = vmatpush1.msra.mxu0 0.0
    %1062 = vmatprep.subr.mxu0 0.0
    %1063 = vmatpush1.msra.mxu0 0.0
    %1064 = vmatprep.subr.mxu0 0.0
    %1065 = vmatpush1.msra.mxu0 0.0
    %1066 = vmatprep.subr.mxu0 0.0
    %1067 = vmatpush1.msra.mxu0 0.0
    %1068 = vmatprep.subr.mxu0 0.0
    %1069 = vmatpush1.msra.mxu0 0.0
    %1070 = vmatprep.subr.mxu0 0.0
    %1071 = vmatpush1.msra.mxu0 0.0
    %1072 = vmatprep.subr.mxu0 0.0
    %1073 = vmatpush1.msra.mxu0 0.0
    %1074 = vmatprep.subr.mxu0 0.0
    %1075 = vmatpush1.msra.mxu0 0.0
    %1076 = vmatprep.subr.mxu0 0.0
    %1077 = vmatpush1.msra.mxu0 0.0
    %1078 = vmatprep.subr.mxu0 0.0
    %1079 = vmatpush1.msra.mxu0 0.0
    %1080 = vmatprep.subr.mxu0 0.0
    %1081 = vmatpush1.msra.mxu0 0.0
    %1082 = vmatprep.subr.mxu0 0.0
    %1083 = vmatpush1.msra.mxu0 0.0
    %1084 = vmatprep.subr.mxu0 0.0
    %1085 = vmatpush1.msra.mxu0 0.0
    %1086 = vmatprep.subr.mxu0 0.0
    %1087 = vmatpush1.msra.mxu0 0.0
    %1088 = vmatprep.subr.mxu0 0.0
    %1089 = vmatpush1.msra.mxu0 0.0
    %1090 = vmatprep.subr.mxu0 0.0
    %1091 = vmatpush1.msra.mxu0 0.0
    %1092 = vmatprep.subr.mxu0 0.0
    %1093 = vmatpush1.msra.mxu0 0.0
    %1094 = vmatprep.subr.mxu0 0.0
    %1095 = vmatpush1.msra.mxu0 0.0
    %1096 = vmatprep.subr.mxu0 0.0
    %1097 = vmatpush1.msra.mxu0 0.0
    %1098 = vmatprep.subr.mxu0 0.0
    %1099 = vmatpush1.msra.mxu0 0.0
    %1100 = vmatprep.subr.mxu0 0.0
    %1101 = vmatpush1.msra.mxu0 0.0
    %1102 = vmatprep.subr.mxu0 0.0
    %1103 = vmatpush1.msra.mxu0 0.0
    %1104 = vmatprep.subr.mxu0 0.0
    %1105 = vmatpush1.msra.mxu0 0.0
    %1106 = vmatprep.subr.mxu0 0.0
    %1107 = vmatpush1.msra.mxu0 0.0
    %1108 = vmatprep.subr.mxu0 0.0
    %1109 = vmatpush1.msra.mxu0 0.0
    %1110 = vmatprep.subr.mxu0 0.0
    %1111 = vmatpush1.msra.mxu0 0.0
    %1112 = vmatprep.subr.mxu0 0.0
    %1113 = vmatpush1.msra.mxu0 0.0
    %1114 = vmatprep.subr.mxu0 0.0
    %1115 = vmatpush1.msra.mxu0 0.0
    %1116 = vmatprep.subr.mxu0 0.0
    %1117 = vmatpush1.msra.mxu0 0.0
    %1118 = vmatprep.mubr.f32.mxu0 0.0
    %1119 = vmatmul.mubr.f32.gmra.mrb[0].mxu0 %v1049
    %v1120 = vpop.f32.mrb[0].mxu0
    %v1121 = vadd.f32 0.0, %v1120
    %v1122 = vpop.f32.mrb[0].mxu0
    %v1123 = vadd.f32 0.0, %v1122
    %1124 = vmatprep.mubr.f32.mxu0 0.0
    %1125 = vmatmul.mubr.f32.gmra.mrb[0].mxu0 %v1052
    %v1126 = vpop.f32.mrb[0].mxu0
    %v1127 = vadd.f32 0.0, %v1126
    %v1128 = vpop.f32.mrb[0].mxu0
    %v1129 = vadd.f32 0.0, %v1128
    %1130 = vdwg.mxu0
    %v1132 = vsel %vm1047, %v104, 0
    %v1135 = vsel %vm1047, %v105, 0
    %1137 = vmatprep.subr.mxu0 %v82
    %1138 = vmatpush1.msra.mxu0 %v81
    %1139 = vmatprep.subr.mxu0 %v84
    %1140 = vmatpush1.msra.mxu0 %v83
    %1141 = vmatprep.subr.mxu0 0.0
    %1142 = vmatpush1.msra.mxu0 0.0
    %1143 = vmatprep.subr.mxu0 0.0
    %1144 = vmatpush1.msra.mxu0 0.0
    %1145 = vmatprep.subr.mxu0 0.0
    %1146 = vmatpush1.msra.mxu0 0.0
    %1147 = vmatprep.subr.mxu0 0.0
    %1148 = vmatpush1.msra.mxu0 0.0
    %1149 = vmatprep.subr.mxu0 0.0
    %1150 = vmatpush1.msra.mxu0 0.0
    %1151 = vmatprep.subr.mxu0 0.0
    %1152 = vmatpush1.msra.mxu0 0.0
    %1153 = vmatprep.subr.mxu0 0.0
    %1154 = vmatpush1.msra.mxu0 0.0
    %1155 = vmatprep.subr.mxu0 0.0
    %1156 = vmatpush1.msra.mxu0 0.0
    %1157 = vmatprep.subr.mxu0 0.0
    %1158 = vmatpush1.msra.mxu0 0.0
    %1159 = vmatprep.subr.mxu0 0.0
    %1160 = vmatpush1.msra.mxu0 0.0
    %1161 = vmatprep.subr.mxu0 0.0
    %1162 = vmatpush1.msra.mxu0 0.0
    %1163 = vmatprep.subr.mxu0 0.0
    %1164 = vmatpush1.msra.mxu0 0.0
    %1165 = vmatprep.subr.mxu0 0.0
    %1166 = vmatpush1.msra.mxu0 0.0
    %1167 = vmatprep.subr.mxu0 0.0
    %1168 = vmatpush1.msra.mxu0 0.0
    %1169 = vmatprep.subr.mxu0 0.0
    %1170 = vmatpush1.msra.mxu0 0.0
    %1171 = vmatprep.subr.mxu0 0.0
    %1172 = vmatpush1.msra.mxu0 0.0
    %1173 = vmatprep.subr.mxu0 0.0
    %1174 = vmatpush1.msra.mxu0 0.0
    %1175 = vmatprep.subr.mxu0 0.0
    %1176 = vmatpush1.msra.mxu0 0.0
    %1177 = vmatprep.subr.mxu0 0.0
    %1178 = vmatpush1.msra.mxu0 0.0
    %1179 = vmatprep.subr.mxu0 0.0
    %1180 = vmatpush1.msra.mxu0 0.0
    %1181 = vmatprep.subr.mxu0 0.0
    %1182 = vmatpush1.msra.mxu0 0.0
    %1183 = vmatprep.subr.mxu0 0.0
    %1184 = vmatpush1.msra.mxu0 0.0
    %1185 = vmatprep.subr.mxu0 0.0
    %1186 = vmatpush1.msra.mxu0 0.0
    %1187 = vmatprep.subr.mxu0 0.0
    %1188 = vmatpush1.msra.mxu0 0.0
    %1189 = vmatprep.subr.mxu0 0.0
    %1190 = vmatpush1.msra.mxu0 0.0
    %1191 = vmatprep.subr.mxu0 0.0
    %1192 = vmatpush1.msra.mxu0 0.0
    %1193 = vmatprep.subr.mxu0 0.0
    %1194 = vmatpush1.msra.mxu0 0.0
    %1195 = vmatprep.subr.mxu0 0.0
    %1196 = vmatpush1.msra.mxu0 0.0
    %1197 = vmatprep.subr.mxu0 0.0
    %1198 = vmatpush1.msra.mxu0 0.0
    %1199 = vmatprep.subr.mxu0 0.0
    %1200 = vmatpush1.msra.mxu0 0.0
    %1201 = vmatprep.mubr.f32.mxu0 0.0
    %1202 = vmatmul.mubr.f32.gmra.mrb[0].mxu0 %v1132
    %v1203 = vpop.f32.mrb[0].mxu0
    %v1204 = vadd.f32 0.0, %v1203
    %v1205 = vpop.f32.mrb[0].mxu0
    %v1206 = vadd.f32 0.0, %v1205
    %1207 = vmatprep.mubr.f32.mxu0 0.0
    %1208 = vmatmul.mubr.f32.gmra.mrb[0].mxu0 %v1135
    %v1209 = vpop.f32.mrb[0].mxu0
    %v1210 = vadd.f32 0.0, %v1209
    %v1211 = vpop.f32.mrb[0].mxu0
    %v1212 = vadd.f32 0.0, %v1211
    %1213 = vdwg.mxu0
    %1214 = vmatprep.subr.mxu0 %v270
    %1215 = vmatpush1.msra.mxu0 %v269
    %1216 = vmatprep.subr.mxu0 %v272
    %1217 = vmatpush1.msra.mxu0 %v271
    %1218 = vmatprep.subr.mxu0 %v274
    %1219 = vmatpush1.msra.mxu0 %v273
    %1220 = vmatprep.subr.mxu0 %v276
    %1221 = vmatpush1.msra.mxu0 %v275
    %1222 = vmatprep.subr.mxu0 %v278
    %1223 = vmatpush1.msra.mxu0 %v277
    %1224 = vmatprep.subr.mxu0 %v280
    %1225 = vmatpush1.msra.mxu0 %v279
    %1226 = vmatprep.subr.mxu0 %v282
    %1227 = vmatpush1.msra.mxu0 %v281
    %1228 = vmatprep.subr.mxu0 %v284
    %1229 = vmatpush1.msra.mxu0 %v283
    %1230 = vmatprep.subr.mxu0 %v286
    %1231 = vmatpush1.msra.mxu0 %v285
    %1232 = vmatprep.subr.mxu0 %v288
    %1233 = vmatpush1.msra.mxu0 %v287
    %1234 = vmatprep.subr.mxu0 %v290
    %1235 = vmatpush1.msra.mxu0 %v289
    %1236 = vmatprep.subr.mxu0 %v292
    %1237 = vmatpush1.msra.mxu0 %v291
    %1238 = vmatprep.subr.mxu0 %v294
    %1239 = vmatpush1.msra.mxu0 %v293
    %1240 = vmatprep.subr.mxu0 %v296
    %1241 = vmatpush1.msra.mxu0 %v295
    %1242 = vmatprep.subr.mxu0 %v298
    %1243 = vmatpush1.msra.mxu0 %v297
    %1244 = vmatprep.subr.mxu0 %v300
    %1245 = vmatpush1.msra.mxu0 %v299
    %1246 = vmatprep.subr.mxu0 %v302
    %1247 = vmatpush1.msra.mxu0 %v301
    %1248 = vmatprep.subr.mxu0 %v304
    %1249 = vmatpush1.msra.mxu0 %v303
    %1250 = vmatprep.subr.mxu0 %v306
    %1251 = vmatpush1.msra.mxu0 %v305
    %1252 = vmatprep.subr.mxu0 %v308
    %1253 = vmatpush1.msra.mxu0 %v307
    %1254 = vmatprep.subr.mxu0 %v310
    %1255 = vmatpush1.msra.mxu0 %v309
    %1256 = vmatprep.subr.mxu0 %v312
    %1257 = vmatpush1.msra.mxu0 %v311
    %1258 = vmatprep.subr.mxu0 %v314
    %1259 = vmatpush1.msra.mxu0 %v313
    %1260 = vmatprep.subr.mxu0 %v316
    %1261 = vmatpush1.msra.mxu0 %v315
    %1262 = vmatprep.subr.mxu0 %v318
    %1263 = vmatpush1.msra.mxu0 %v317
    %1264 = vmatprep.subr.mxu0 %v320
    %1265 = vmatpush1.msra.mxu0 %v319
    %1266 = vmatprep.subr.mxu0 %v322
    %1267 = vmatpush1.msra.mxu0 %v321
    %1268 = vmatprep.subr.mxu0 %v324
    %1269 = vmatpush1.msra.mxu0 %v323
    %1270 = vmatprep.subr.mxu0 %v326
    %1271 = vmatpush1.msra.mxu0 %v325
    %1272 = vmatprep.subr.mxu0 %v328
    %1273 = vmatpush1.msra.mxu0 %v327
    %1274 = vmatprep.subr.mxu0 %v330
    %1275 = vmatpush1.msra.mxu0 %v329
    %1276 = vmatprep.subr.mxu0 %v332
    %1277 = vmatpush1.msra.mxu0 %v331
    %1278 = vmatprep.mubr.f32.mxu0 %v82
    %1279 = vmatmul.mubr.f32.gmra.mrb[0].mxu0 %v81
    %v1280 = vpop.f32.mrb[0].mxu0
    %v1281 = vadd.f32 0.0, %v1280
    %v1282 = vpop.f32.mrb[0].mxu0
    %v1283 = vadd.f32 0.0, %v1282
    %1284 = vmatprep.mubr.f32.mxu0 %v84
    %1285 = vmatmul.mubr.f32.gmra.mrb[0].mxu0 %v83
    %v1286 = vpop.f32.mrb[0].mxu0
    %v1287 = vadd.f32 0.0, %v1286
    %v1288 = vpop.f32.mrb[0].mxu0
    %v1289 = vadd.f32 0.0, %v1288
    %1290 = vdwg.mxu0
    %1291 = vmatprep.subr.mxu0 %v464
    %1292 = vmatpush1.msra.mxu0 %v463
    %1293 = vmatprep.subr.mxu0 %v466
    %1294 = vmatpush1.msra.mxu0 %v465
    %1295 = vmatprep.subr.mxu0 %v468
    %1296 = vmatpush1.msra.mxu0 %v467
    %1297 = vmatprep.subr.mxu0 %v470
    %1298 = vmatpush1.msra.mxu0 %v469
    %1299 = vmatprep.subr.mxu0 %v472
    %1300 = vmatpush1.msra.mxu0 %v471
    %1301 = vmatprep.subr.mxu0 %v474
    %1302 = vmatpush1.msra.mxu0 %v473
    %1303 = vmatprep.subr.mxu0 %v476
    %1304 = vmatpush1.msra.mxu0 %v475
    %1305 = vmatprep.subr.mxu0 %v478
    %1306 = vmatpush1.msra.mxu0 %v477
    %1307 = vmatprep.subr.mxu0 %v480
    %1308 = vmatpush1.msra.mxu0 %v479
    %1309 = vmatprep.subr.mxu0 %v482
    %1310 = vmatpush1.msra.mxu0 %v481
    %1311 = vmatprep.subr.mxu0 %v484
    %1312 = vmatpush1.msra.mxu0 %v483
    %1313 = vmatprep.subr.mxu0 %v486
    %1314 = vmatpush1.msra.mxu0 %v485
    %1315 = vmatprep.subr.mxu0 %v488
    %1316 = vmatpush1.msra.mxu0 %v487
    %1317 = vmatprep.subr.mxu0 %v490
    %1318 = vmatpush1.msra.mxu0 %v489
    %1319 = vmatprep.subr.mxu0 %v492
    %1320 = vmatpush1.msra.mxu0 %v491
    %1321 = vmatprep.subr.mxu0 %v494
    %1322 = vmatpush1.msra.mxu0 %v493
    %1323 = vmatprep.subr.mxu0 %v496
    %1324 = vmatpush1.msra.mxu0 %v495
    %1325 = vmatprep.subr.mxu0 %v498
    %1326 = vmatpush1.msra.mxu0 %v497
    %1327 = vmatprep.subr.mxu0 %v500
    %1328 = vmatpush1.msra.mxu0 %v499
    %1329 = vmatprep.subr.mxu0 %v502
    %1330 = vmatpush1.msra.mxu0 %v501
    %1331 = vmatprep.subr.mxu0 %v504
    %1332 = vmatpush1.msra.mxu0 %v503
    %1333 = vmatprep.subr.mxu0 %v506
    %1334 = vmatpush1.msra.mxu0 %v505
    %1335 = vmatprep.subr.mxu0 %v508
    %1336 = vmatpush1.msra.mxu0 %v507
    %1337 = vmatprep.subr.mxu0 %v510
    %1338 = vmatpush1.msra.mxu0 %v509
    %1339 = vmatprep.subr.mxu0 %v512
    %1340 = vmatpush1.msra.mxu0 %v511
    %1341 = vmatprep.subr.mxu0 %v514
    %1342 = vmatpush1.msra.mxu0 %v513
    %1343 = vmatprep.subr.mxu0 %v516
    %1344 = vmatpush1.msra.mxu0 %v515
    %1345 = vmatprep.subr.mxu0 %v518
    %1346 = vmatpush1.msra.mxu0 %v517
    %1347 = vmatprep.subr.mxu0 %v520
    %1348 = vmatpush1.msra.mxu0 %v519
    %1349 = vmatprep.subr.mxu0 %v522
    %1350 = vmatpush1.msra.mxu0 %v521
    %1351 = vmatprep.subr.mxu0 %v524
    %1352 = vmatpush1.msra.mxu0 %v523
    %1353 = vmatprep.subr.mxu0 %v526
    %1354 = vmatpush1.msra.mxu0 %v525
    %1355 = vmatprep.mubr.f32.mxu0 %v82
    %1356 = vmatmul.mubr.f32.gmra.mrb[0].mxu0 %v81
    %v1357 = vpop.f32.mrb[0].mxu0
    %v1358 = vadd.f32 0.0, %v1357
    %v1359 = vpop.f32.mrb[0].mxu0
    %v1360 = vadd.f32 0.0, %v1359
    %1361 = vmatprep.mubr.f32.mxu0 %v84
    %1362 = vmatmul.mubr.f32.gmra.mrb[0].mxu0 %v83
    %v1363 = vpop.f32.mrb[0].mxu0
    %v1364 = vadd.f32 0.0, %v1363
    %v1365 = vpop.f32.mrb[0].mxu0
    %v1366 = vadd.f32 0.0, %v1365
    %1367 = vdwg.mxu0
    %1368 = vmatprep.subr.mxu0 %v724
    %1369 = vmatpush1.msra.mxu0 %v723
    %1370 = vmatprep.subr.mxu0 %v726
    %1371 = vmatpush1.msra.mxu0 %v725
    %1372 = vmatprep.subr.mxu0 %v728
    %1373 = vmatpush1.msra.mxu0 %v727
    %1374 = vmatprep.subr.mxu0 %v730
    %1375 = vmatpush1.msra.mxu0 %v729
    %1376 = vmatprep.subr.mxu0 %v732
    %1377 = vmatpush1.msra.mxu0 %v731
    %1378 = vmatprep.subr.mxu0 %v734
    %1379 = vmatpush1.msra.mxu0 %v733
    %1380 = vmatprep.subr.mxu0 %v736
    %1381 = vmatpush1.msra.mxu0 %v735
    %1382 = vmatprep.subr.mxu0 %v738
    %1383 = vmatpush1.msra.mxu0 %v737
    %1384 = vmatprep.subr.mxu0 %v740
    %1385 = vmatpush1.msra.mxu0 %v739
    %1386 = vmatprep.subr.mxu0 %v742
    %1387 = vmatpush1.msra.mxu0 %v741
    %1388 = vmatprep.subr.mxu0 %v744
    %1389 = vmatpush1.msra.mxu0 %v743
    %1390 = vmatprep.subr.mxu0 %v746
    %1391 = vmatpush1.msra.mxu0 %v745
    %1392 = vmatprep.subr.mxu0 %v748
    %1393 = vmatpush1.msra.mxu0 %v747
    %1394 = vmatprep.subr.mxu0 %v750
    %1395 = vmatpush1.msra.mxu0 %v749
    %1396 = vmatprep.subr.mxu0 %v752
    %1397 = vmatpush1.msra.mxu0 %v751
    %1398 = vmatprep.subr.mxu0 %v754
    %1399 = vmatpush1.msra.mxu0 %v753
    %1400 = vmatprep.subr.mxu0 %v756
    %1401 = vmatpush1.msra.mxu0 %v755
    %1402 = vmatprep.subr.mxu0 %v758
    %1403 = vmatpush1.msra.mxu0 %v757
    %1404 = vmatprep.subr.mxu0 %v760
    %1405 = vmatpush1.msra.mxu0 %v759
    %1406 = vmatprep.subr.mxu0 %v762
    %1407 = vmatpush1.msra.mxu0 %v761
    %1408 = vmatprep.subr.mxu0 %v764
    %1409 = vmatpush1.msra.mxu0 %v763
    %1410 = vmatprep.subr.mxu0 %v766
    %1411 = vmatpush1.msra.mxu0 %v765
    %1412 = vmatprep.subr.mxu0 %v768
    %1413 = vmatpush1.msra.mxu0 %v767
    %1414 = vmatprep.subr.mxu0 %v770
    %1415 = vmatpush1.msra.mxu0 %v769
    %1416 = vmatprep.subr.mxu0 %v772
    %1417 = vmatpush1.msra.mxu0 %v771
    %1418 = vmatprep.subr.mxu0 %v774
    %1419 = vmatpush1.msra.mxu0 %v773
    %1420 = vmatprep.subr.mxu0 %v776
    %1421 = vmatpush1.msra.mxu0 %v775
    %1422 = vmatprep.subr.mxu0 %v778
    %1423 = vmatpush1.msra.mxu0 %v777
    %1424 = vmatprep.subr.mxu0 %v780
    %1425 = vmatpush1.msra.mxu0 %v779
    %1426 = vmatprep.subr.mxu0 %v782
    %1427 = vmatpush1.msra.mxu0 %v781
    %1428 = vmatprep.subr.mxu0 %v784
    %1429 = vmatpush1.msra.mxu0 %v783
    %1430 = vmatprep.subr.mxu0 %v786
    %1431 = vmatpush1.msra.mxu0 %v785
    %1432 = vmatprep.mubr.f32.mxu0 %v82
    %1433 = vmatmul.mubr.f32.gmra.mrb[0].mxu0 %v81
    %v1434 = vpop.f32.mrb[0].mxu0
    %v1435 = vadd.f32 0.0, %v1434
    %v1436 = vpop.f32.mrb[0].mxu0
    %v1437 = vadd.f32 0.0, %v1436
    %1438 = vmatprep.mubr.f32.mxu0 %v84
    %1439 = vmatmul.mubr.f32.gmra.mrb[0].mxu0 %v83
    %v1440 = vpop.f32.mrb[0].mxu0
    %v1441 = vadd.f32 0.0, %v1440
    %v1442 = vpop.f32.mrb[0].mxu0
    %v1443 = vadd.f32 0.0, %v1442
    %1444 = vdwg.mxu0
    %1445 = vmatprep.subr.mxu0 %v984
    %1446 = vmatpush1.msra.mxu0 %v983
    %1447 = vmatprep.subr.mxu0 %v986
    %1448 = vmatpush1.msra.mxu0 %v985
    %1449 = vmatprep.subr.mxu0 %v988
    %1450 = vmatpush1.msra.mxu0 %v987
    %1451 = vmatprep.subr.mxu0 %v990
    %1452 = vmatpush1.msra.mxu0 %v989
    %1453 = vmatprep.subr.mxu0 %v992
    %1454 = vmatpush1.msra.mxu0 %v991
    %1455 = vmatprep.subr.mxu0 %v994
    %1456 = vmatpush1.msra.mxu0 %v993
    %1457 = vmatprep.subr.mxu0 %v996
    %1458 = vmatpush1.msra.mxu0 %v995
    %1459 = vmatprep.subr.mxu0 %v998
    %1460 = vmatpush1.msra.mxu0 %v997
    %1461 = vmatprep.subr.mxu0 %v1000
    %1462 = vmatpush1.msra.mxu0 %v999
    %1463 = vmatprep.subr.mxu0 %v1002
    %1464 = vmatpush1.msra.mxu0 %v1001
    %1465 = vmatprep.subr.mxu0 %v1004
    %1466 = vmatpush1.msra.mxu0 %v1003
    %1467 = vmatprep.subr.mxu0 %v1006
    %1468 = vmatpush1.msra.mxu0 %v1005
    %1469 = vmatprep.subr.mxu0 %v1008
    %1470 = vmatpush1.msra.mxu0 %v1007
    %1471 = vmatprep.subr.mxu0 %v1010
    %1472 = vmatpush1.msra.mxu0 %v1009
    %1473 = vmatprep.subr.mxu0 %v1012
    %1474 = vmatpush1.msra.mxu0 %v1011
    %1475 = vmatprep.subr.mxu0 %v1014
    %1476 = vmatpush1.msra.mxu0 %v1013
    %1477 = vmatprep.subr.mxu0 %v1016
    %1478 = vmatpush1.msra.mxu0 %v1015
    %1479 = vmatprep.subr.mxu0 %v1018
    %1480 = vmatpush1.msra.mxu0 %v1017
    %1481 = vmatprep.subr.mxu0 %v1020
    %1482 = vmatpush1.msra.mxu0 %v1019
    %1483 = vmatprep.subr.mxu0 %v1022
    %1484 = vmatpush1.msra.mxu0 %v1021
    %1485 = vmatprep.subr.mxu0 %v1024
    %1486 = vmatpush1.msra.mxu0 %v1023
    %1487 = vmatprep.subr.mxu0 %v1026
    %1488 = vmatpush1.msra.mxu0 %v1025
    %1489 = vmatprep.subr.mxu0 %v1028
    %1490 = vmatpush1.msra.mxu0 %v1027
    %1491 = vmatprep.subr.mxu0 %v1030
    %1492 = vmatpush1.msra.mxu0 %v1029
    %1493 = vmatprep.subr.mxu0 %v1032
    %1494 = vmatpush1.msra.mxu0 %v1031
    %1495 = vmatprep.subr.mxu0 %v1034
    %1496 = vmatpush1.msra.mxu0 %v1033
    %1497 = vmatprep.subr.mxu0 %v1036
    %1498 = vmatpush1.msra.mxu0 %v1035
    %1499 = vmatprep.subr.mxu0 %v1038
    %1500 = vmatpush1.msra.mxu0 %v1037
    %1501 = vmatprep.subr.mxu0 %v1040
    %1502 = vmatpush1.msra.mxu0 %v1039
    %1503 = vmatprep.subr.mxu0 %v1042
    %1504 = vmatpush1.msra.mxu0 %v1041
    %1505 = vmatprep.subr.mxu0 %v1044
    %1506 = vmatpush1.msra.mxu0 %v1043
    %1507 = vmatprep.subr.mxu0 %v1046
    %1508 = vmatpush1.msra.mxu0 %v1045
    %1509 = vmatprep.mubr.f32.mxu0 %v82
    %1510 = vmatmul.mubr.f32.gmra.mrb[0].mxu0 %v81
    %v1511 = vpop.f32.mrb[0].mxu0
    %v1512 = vadd.f32 0.0, %v1511
    %v1513 = vpop.f32.mrb[0].mxu0
    %v1514 = vadd.f32 0.0, %v1513
    %1515 = vmatprep.mubr.f32.mxu0 %v84
    %1516 = vmatmul.mubr.f32.gmra.mrb[0].mxu0 %v83
    %v1517 = vpop.f32.mrb[0].mxu0
    %v1518 = vadd.f32 0.0, %v1517
    %v1519 = vpop.f32.mrb[0].mxu0
    %v1520 = vadd.f32 0.0, %v1519
    %1521 = vdwg.mxu0
    %v1522 = vsub.f32 %v1121, %v81
    %v1523 = vsub.f32 %v1123, %v82
    %v1524 = vsub.f32 %v1127, %v83
    %v1525 = vsub.f32 %v1129, %v84
    %v1526 = vsub.f32 %v1204, %v81
    %v1527 = vsub.f32 %v1206, %v82
    %v1528 = vsub.f32 %v1210, %v83
    %v1529 = vsub.f32 %v1212, %v84
    %v1530 = vsub.f32 %v1281, %v81
    %v1531 = vsub.f32 %v1283, %v82
    %v1532 = vsub.f32 %v1287, %v83
    %v1533 = vsub.f32 %v1289, %v84
    %v1534 = vsub.f32 %v1358, %v81
    %v1535 = vsub.f32 %v1360, %v82
    %v1536 = vsub.f32 %v1364, %v83
    %v1537 = vsub.f32 %v1366, %v84
    %v1538 = vsub.f32 %v1435, %v81
    %v1539 = vsub.f32 %v1437, %v82
    %v1540 = vsub.f32 %v1441, %v83
    %v1541 = vsub.f32 %v1443, %v84
    %v1542 = vsub.f32 %v1512, %v81
    %v1543 = vsub.f32 %v1514, %v82
    %v1544 = vsub.f32 %v1518, %v83
    %v1545 = vsub.f32 %v1520, %v84
    %v1546 = vand.u32 2147483647, %v1522
    %v1547 = vand.u32 2147483647, %v1523
    %v1548 = vand.u32 2147483647, %v1524
    %v1549 = vand.u32 2147483647, %v1525
    %v1550 = vand.u32 2147483647, %v1526
    %v1551 = vand.u32 2147483647, %v1527
    %v1552 = vand.u32 2147483647, %v1528
    %v1553 = vand.u32 2147483647, %v1529
    %v1554 = vand.u32 2147483647, %v1530
    %v1555 = vand.u32 2147483647, %v1531
    %v1556 = vand.u32 2147483647, %v1532
    %v1557 = vand.u32 2147483647, %v1533
    %v1558 = vand.u32 2147483647, %v1534
    %v1559 = vand.u32 2147483647, %v1535
    %v1560 = vand.u32 2147483647, %v1536
    %v1561 = vand.u32 2147483647, %v1537
    %v1562 = vand.u32 2147483647, %v1538
    %v1563 = vand.u32 2147483647, %v1539
    %v1564 = vand.u32 2147483647, %v1540
    %v1565 = vand.u32 2147483647, %v1541
    %v1566 = vand.u32 2147483647, %v1542
    %v1567 = vand.u32 2147483647, %v1543
    %v1568 = vand.u32 2147483647, %v1544
    %v1569 = vand.u32 2147483647, %v1545
    %vm1570 = vcmp.lt.f32.partialorder %v1546, 0.01
    %vm1571 = vcmp.lt.f32.partialorder %v1547, 0.01
    %vm1572 = vcmp.lt.f32.partialorder %v1548, 0.01
    %vm1573 = vcmp.lt.f32.partialorder %v1549, 0.01
    %vm1574 = vcmp.lt.f32.partialorder %v1550, 0.01
    %vm1575 = vcmp.lt.f32.partialorder %v1551, 0.01
    %vm1576 = vcmp.lt.f32.partialorder %v1552, 0.01
    %vm1577 = vcmp.lt.f32.partialorder %v1553, 0.01
    %vm1578 = vcmp.lt.f32.partialorder %v1554, 0.01
    %vm1579 = vcmp.lt.f32.partialorder %v1555, 0.01
    %vm1580 = vcmp.lt.f32.partialorder %v1556, 0.01
    %vm1581 = vcmp.lt.f32.partialorder %v1557, 0.01
    %vm1582 = vcmp.lt.f32.partialorder %v1558, 0.01
    %vm1583 = vcmp.lt.f32.partialorder %v1559, 0.01
    %vm1584 = vcmp.lt.f32.partialorder %v1560, 0.01
    %vm1585 = vcmp.lt.f32.partialorder %v1561, 0.01
    %vm1586 = vcmp.lt.f32.partialorder %v1562, 0.01
    %vm1587 = vcmp.lt.f32.partialorder %v1563, 0.01
    %vm1588 = vcmp.lt.f32.partialorder %v1564, 0.01
    %vm1589 = vcmp.lt.f32.partialorder %v1565, 0.01
    %vm1590 = vcmp.lt.f32.partialorder %v1566, 0.01
    %vm1591 = vcmp.lt.f32.partialorder %v1567, 0.01
    %vm1592 = vcmp.lt.f32.partialorder %v1568, 0.01
    %vm1593 = vcmp.lt.f32.partialorder %v1569, 0.01
    %v1594 = vsel %vm1570, 1, 0
    %v1595 = vsel %vm1571, 1, 0
    %v1596 = vsel %vm1572, 1, 0
    %v1597 = vsel %vm1573, 1, 0
    %v1598 = vsel %vm1574, 1, 0
    %v1599 = vsel %vm1575, 1, 0
    %v1600 = vsel %vm1576, 1, 0
    %v1601 = vsel %vm1577, 1, 0
    %v1602 = vsel %vm1578, 1, 0
    %v1603 = vsel %vm1579, 1, 0
    %v1604 = vsel %vm1580, 1, 0
    %v1605 = vsel %vm1581, 1, 0
    %v1606 = vsel %vm1582, 1, 0
    %v1607 = vsel %vm1583, 1, 0
    %v1608 = vsel %vm1584, 1, 0
    %v1609 = vsel %vm1585, 1, 0
    %v1610 = vsel %vm1586, 1, 0
    %v1611 = vsel %vm1587, 1, 0
    %v1612 = vsel %vm1588, 1, 0
    %v1613 = vsel %vm1589, 1, 0
    %v1614 = vsel %vm1590, 1, 0
    %v1615 = vsel %vm1591, 1, 0
    %v1616 = vsel %vm1592, 1, 0
    %v1617 = vsel %vm1593, 1, 0
    %v1618 = vcvt.s32.f32 %v1594
    %v1619 = vcvt.s32.f32 %v1595
    %v1620 = vcvt.s32.f32 %v1596
    %v1621 = vcvt.s32.f32 %v1597
    %v1622 = vcvt.s32.f32 %v1598
    %v1623 = vcvt.s32.f32 %v1599
    %v1624 = vcvt.s32.f32 %v1600
    %v1625 = vcvt.s32.f32 %v1601
    %v1626 = vcvt.s32.f32 %v1602
    %v1627 = vcvt.s32.f32 %v1603
    %v1628 = vcvt.s32.f32 %v1604
    %v1629 = vcvt.s32.f32 %v1605
    %v1630 = vcvt.s32.f32 %v1606
    %v1631 = vcvt.s32.f32 %v1607
    %v1632 = vcvt.s32.f32 %v1608
    %v1633 = vcvt.s32.f32 %v1609
    %v1634 = vcvt.s32.f32 %v1610
    %v1635 = vcvt.s32.f32 %v1611
    %v1636 = vcvt.s32.f32 %v1612
    %v1637 = vcvt.s32.f32 %v1613
    %v1638 = vcvt.s32.f32 %v1614
    %v1639 = vcvt.s32.f32 %v1615
    %v1640 = vcvt.s32.f32 %v1616
    %v1641 = vcvt.s32.f32 %v1617
    %v1642 = vmul.f32 %v1618, %v65
    %v1643 = vmul.f32 %v1619, %v66
    %v1644 = vmul.f32 %v1620, %v67
    %v1645 = vmul.f32 %v1621, %v68
    %v1646 = vmul.f32 %v1622, %v65
    %v1647 = vmul.f32 %v1623, %v66
    %v1648 = vmul.f32 %v1624, %v67
    %v1649 = vmul.f32 %v1625, %v68
    %v1650 = vmul.f32 %v1626, %v65
    %v1651 = vmul.f32 %v1627, %v66
    %v1652 = vmul.f32 %v1628, %v67
    %v1653 = vmul.f32 %v1629, %v68
    %v1654 = vmul.f32 %v1630, %v65
    %v1655 = vmul.f32 %v1631, %v66
    %v1656 = vmul.f32 %v1632, %v67
    %v1657 = vmul.f32 %v1633, %v68
    %v1658 = vmul.f32 %v1634, %v65
    %v1659 = vmul.f32 %v1635, %v66
    %v1660 = vmul.f32 %v1636, %v67
    %v1661 = vmul.f32 %v1637, %v68
    %v1662 = vmul.f32 %v1638, %v65
    %v1663 = vmul.f32 %v1639, %v66
    %v1664 = vmul.f32 %v1640, %v67
    %v1665 = vmul.f32 %v1641, %v68
    %vm1666 = vcmp.gt.f32.partialorder %v1121, 0.0
    %vm1667 = vcmp.gt.f32.partialorder %v1123, 0.0
    %vm1668 = vcmp.gt.f32.partialorder %v1127, 0.0
    %vm1669 = vcmp.gt.f32.partialorder %v1129, 0.0
    %vm1670 = vcmp.gt.f32.partialorder %v1204, 0.0
    %vm1671 = vcmp.gt.f32.partialorder %v1206, 0.0
    %vm1672 = vcmp.gt.f32.partialorder %v1210, 0.0
    %vm1673 = vcmp.gt.f32.partialorder %v1212, 0.0
    %vm1674 = vcmp.gt.f32.partialorder %v1281, 0.0
    %vm1675 = vcmp.gt.f32.partialorder %v1283, 0.0
    %vm1676 = vcmp.gt.f32.partialorder %v1287, 0.0
    %vm1677 = vcmp.gt.f32.partialorder %v1289, 0.0
    %vm1678 = vcmp.gt.f32.partialorder %v1358, 0.0
    %vm1679 = vcmp.gt.f32.partialorder %v1360, 0.0
    %vm1680 = vcmp.gt.f32.partialorder %v1364, 0.0
    %vm1681 = vcmp.gt.f32.partialorder %v1366, 0.0
    %vm1682 = vcmp.gt.f32.partialorder %v1435, 0.0
    %vm1683 = vcmp.gt.f32.partialorder %v1437, 0.0
    %vm1684 = vcmp.gt.f32.partialorder %v1441, 0.0
    %vm1685 = vcmp.gt.f32.partialorder %v1443, 0.0
    %vm1686 = vcmp.gt.f32.partialorder %v1512, 0.0
    %vm1687 = vcmp.gt.f32.partialorder %v1514, 0.0
    %vm1688 = vcmp.gt.f32.partialorder %v1518, 0.0
    %vm1689 = vcmp.gt.f32.partialorder %v1520, 0.0
    %v1690 = vsel %vm1666, 1, 0
    %v1691 = vsel %vm1667, 1, 0
    %v1692 = vsel %vm1668, 1, 0
    %v1693 = vsel %vm1669, 1, 0
    %v1694 = vsel %vm1670, 1, 0
    %v1695 = vsel %vm1671, 1, 0
    %v1696 = vsel %vm1672, 1, 0
    %v1697 = vsel %vm1673, 1, 0
    %v1698 = vsel %vm1674, 1, 0
    %v1699 = vsel %vm1675, 1, 0
    %v1700 = vsel %vm1676, 1, 0
    %v1701 = vsel %vm1677, 1, 0
    %v1702 = vsel %vm1678, 1, 0
    %v1703 = vsel %vm1679, 1, 0
    %v1704 = vsel %vm1680, 1, 0
    %v1705 = vsel %vm1681, 1, 0
    %v1706 = vsel %vm1682, 1, 0
    %v1707 = vsel %vm1683, 1, 0
    %v1708 = vsel %vm1684, 1, 0
    %v1709 = vsel %vm1685, 1, 0
    %v1710 = vsel %vm1686, 1, 0
    %v1711 = vsel %vm1687, 1, 0
    %v1712 = vsel %vm1688, 1, 0
    %v1713 = vsel %vm1689, 1, 0
    %v1714 = vcvt.s32.f32 %v1690
    %v1715 = vcvt.s32.f32 %v1691
    %v1716 = vcvt.s32.f32 %v1692
    %v1717 = vcvt.s32.f32 %v1693
    %v1718 = vcvt.s32.f32 %v1694
    %v1719 = vcvt.s32.f32 %v1695
    %v1720 = vcvt.s32.f32 %v1696
    %v1721 = vcvt.s32.f32 %v1697
    %v1722 = vcvt.s32.f32 %v1698
    %v1723 = vcvt.s32.f32 %v1699
    %v1724 = vcvt.s32.f32 %v1700
    %v1725 = vcvt.s32.f32 %v1701
    %v1726 = vcvt.s32.f32 %v1702
    %v1727 = vcvt.s32.f32 %v1703
    %v1728 = vcvt.s32.f32 %v1704
    %v1729 = vcvt.s32.f32 %v1705
    %v1730 = vcvt.s32.f32 %v1706
    %v1731 = vcvt.s32.f32 %v1707
    %v1732 = vcvt.s32.f32 %v1708
    %v1733 = vcvt.s32.f32 %v1709
    %v1734 = vcvt.s32.f32 %v1710
    %v1735 = vcvt.s32.f32 %v1711
    %v1736 = vcvt.s32.f32 %v1712
    %v1737 = vcvt.s32.f32 %v1713
    %v1738 = vmul.f32 %v1714, %v65
    %v1739 = vmul.f32 %v1715, %v66
    %v1740 = vmul.f32 %v1716, %v67
    %v1741 = vmul.f32 %v1717, %v68
    %v1742 = vmul.f32 %v1718, %v65
    %v1743 = vmul.f32 %v1719, %v66
    %v1744 = vmul.f32 %v1720, %v67
    %v1745 = vmul.f32 %v1721, %v68
    %v1746 = vmul.f32 %v1722, %v65
    %v1747 = vmul.f32 %v1723, %v66
    %v1748 = vmul.f32 %v1724, %v67
    %v1749 = vmul.f32 %v1725, %v68
    %v1750 = vmul.f32 %v1726, %v65
    %v1751 = vmul.f32 %v1727, %v66
    %v1752 = vmul.f32 %v1728, %v67
    %v1753 = vmul.f32 %v1729, %v68
    %v1754 = vmul.f32 %v1730, %v65
    %v1755 = vmul.f32 %v1731, %v66
    %v1756 = vmul.f32 %v1732, %v67
    %v1757 = vmul.f32 %v1733, %v68
    %v1758 = vmul.f32 %v1734, %v65
    %v1759 = vmul.f32 %v1735, %v66
    %v1760 = vmul.f32 %v1736, %v67
    %v1761 = vmul.f32 %v1737, %v68
    %1762 = vst [vmem:[#allocation2] sm:$0xff] %v1642
    %1763 = vst [vmem:[#allocation2 + $0x8] sm:$0xff] %v1643
    %1764 = vst [vmem:[#allocation2 + $0x10] sm:$0xff] %v1644
    %1765 = vst [vmem:[#allocation2 + $0x18] sm:$0xff] %v1645
    %1766 = vst [vmem:[#allocation2 + $0x20] sm:$0xff] %v1646
    %1767 = vst [vmem:[#allocation2 + $0x28] sm:$0xff] %v1647
    %1768 = vst [vmem:[#allocation2 + $0x30] sm:$0xff] %v1648
    %1769 = vst [vmem:[#allocation2 + $0x38] sm:$0xff] %v1649
    %1770 = vst [vmem:[#allocation2 + $0x40] sm:$0xff] %v1650
    %1771 = vst [vmem:[#allocation2 + $0x48] sm:$0xff] %v1651
    %1772 = vst [vmem:[#allocation2 + $0x50] sm:$0xff] %v1652
    %1773 = vst [vmem:[#allocation2 + $0x58] sm:$0xff] %v1653
    %1774 = vst [vmem:[#allocation2 + $0x60] sm:$0xff] %v1654
    %1775 = vst [vmem:[#allocation2 + $0x68] sm:$0xff] %v1655
    %1776 = vst [vmem:[#allocation2 + $0x70] sm:$0xff] %v1656
    %1777 = vst [vmem:[#allocation2 + $0x78] sm:$0xff] %v1657
    %1778 = vst [vmem:[#allocation2 + $0x80] sm:$0xff] %v1658
    %1779 = vst [vmem:[#allocation2 + $0x88] sm:$0xff] %v1659
    %1780 = vst [vmem:[#allocation2 + $0x90] sm:$0xff] %v1660
    %1781 = vst [vmem:[#allocation2 + $0x98] sm:$0xff] %v1661
    %1782 = vst [vmem:[#allocation2 + $0xa0] sm:$0xff] %v1662
    %1783 = vst [vmem:[#allocation2 + $0xa8] sm:$0xff] %v1663
    %1784 = vst [vmem:[#allocation2 + $0xb0] sm:$0xff] %v1664
    %1785 = vst [vmem:[#allocation2 + $0xb8] sm:$0xff] %v1665
    %1786 = vst [vmem:[#allocation2 + $0xc0] sm:$0xff] %v1738
    %1787 = vst [vmem:[#allocation2 + $0xc8] sm:$0xff] %v1739
    %1788 = vst [vmem:[#allocation2 + $0xd0] sm:$0xff] %v1740
    %1789 = vst [vmem:[#allocation2 + $0xd8] sm:$0xff] %v1741
    %1790 = vst [vmem:[#allocation2 + $0xe0] sm:$0xff] %v1742
    %1791 = vst [vmem:[#allocation2 + $0xe8] sm:$0xff] %v1743
    %1792 = vst [vmem:[#allocation2 + $0xf0] sm:$0xff] %v1744
    %1793 = vst [vmem:[#allocation2 + $0xf8] sm:$0xff] %v1745
    %1794 = vst [vmem:[#allocation2 + $0x100] sm:$0xff] %v1746
    %1795 = vst [vmem:[#allocation2 + $0x108] sm:$0xff] %v1747
    %1796 = vst [vmem:[#allocation2 + $0x110] sm:$0xff] %v1748
    %1797 = vst [vmem:[#allocation2 + $0x118] sm:$0xff] %v1749
    %1798 = vst [vmem:[#allocation2 + $0x120] sm:$0xff] %v1750
    %1799 = vst [vmem:[#allocation2 + $0x128] sm:$0xff] %v1751
    %1800 = vst [vmem:[#allocation2 + $0x130] sm:$0xff] %v1752
    %1801 = vst [vmem:[#allocation2 + $0x138] sm:$0xff] %v1753
    %1802 = vst [vmem:[#allocation2 + $0x140] sm:$0xff] %v1754
    %1803 = vst [vmem:[#allocation2 + $0x148] sm:$0xff] %v1755
    %1804 = vst [vmem:[#allocation2 + $0x150] sm:$0xff] %v1756
    %1805 = vst [vmem:[#allocation2 + $0x158] sm:$0xff] %v1757
    %1806 = vst [vmem:[#allocation2 + $0x160] sm:$0xff] %v1758
    %1807 = vst [vmem:[#allocation2 + $0x168] sm:$0xff] %v1759
    %1808 = vst [vmem:[#allocation2 + $0x170] sm:$0xff] %v1760
    %1809 = vst [vmem:[#allocation2 + $0x178] sm:$0xff] %v1761
    %1810 = vst [vmem:[#allocation4] sm:$0xff] %v53
    %1811 = vst [vmem:[#allocation4 + $0x8] sm:$0xff] %v54
    %1812 = vst [vmem:[#allocation4 + $0x10] sm:$0xff] %v55
    %1813 = vst [vmem:[#allocation4 + $0x18] sm:$0xff] %v56
    %v1814 = vmul.u32 %v86, 2
    %vm1815 = vcmp.eq.s32.totalorder %v89, %v1814
    %v1816 = vadd.s32 %v1814, 1
    %vm1817 = vcmp.eq.s32.totalorder %v89, %v1816
    %vm1818 = vmor %vm1815, %vm1817
    %v1819 = vsel %vm1818, 1, 0
    %v1820 = vcvt.s32.f32 %v1819
    %v1821 = vand.u32 %v86, 15
    %v1822 = vand.u32 %v87, 15
    %v1823 = vand.u32 %v106, 15
    %v1824 = vand.u32 %v107, 15
    %v1825 = vand.u32 %v108, 15
    %v1826 = vand.u32 %v109, 15
    %v1827 = vand.u32 %v110, 15
    %v1828 = vand.u32 %v111, 15
    %v1829 = vand.u32 %v112, 15
    %v1830 = vand.u32 %v113, 15
    %v1831 = vand.u32 %v114, 15
    %v1832 = vand.u32 %v115, 15
    %v1833 = vand.u32 %v116, 15
    %v1834 = vand.u32 %v117, 15
    %v1835 = vand.u32 %v118, 15
    %v1836 = vand.u32 %v119, 15
    %v1837 = vand.u32 %v120, 15
    %v1838 = vand.u32 %v121, 15
    %v1839 = vand.u32 %v122, 15
    %v1840 = vand.u32 %v123, 15
    %v1841 = vand.u32 %v124, 15
    %v1842 = vand.u32 %v125, 15
    %v1843 = vand.u32 %v126, 15
    %v1844 = vand.u32 %v127, 15
    %v1845 = vand.u32 %v128, 15
    %v1846 = vand.u32 %v129, 15
    %v1847 = vand.u32 %v130, 15
    %v1848 = vand.u32 %v131, 15
    %v1849 = vand.u32 %v132, 15
    %v1850 = vand.u32 %v133, 15
    %v1851 = vand.u32 %v134, 15
    %v1852 = vand.u32 %v135, 15
    %v1853 = vsub.s32 %v86, %v1821
    %v1854 = vsub.s32 %v87, %v1822
    %v1855 = vsub.s32 %v106, %v1823
    %v1856 = vsub.s32 %v107, %v1824
    %v1857 = vsub.s32 %v108, %v1825
    %v1858 = vsub.s32 %v109, %v1826
    %v1859 = vsub.s32 %v110, %v1827
    %v1860 = vsub.s32 %v111, %v1828
    %v1861 = vsub.s32 %v112, %v1829
    %v1862 = vsub.s32 %v113, %v1830
    %v1863 = vsub.s32 %v114, %v1831
    %v1864 = vsub.s32 %v115, %v1832
    %v1865 = vsub.s32 %v116, %v1833
    %v1866 = vsub.s32 %v117, %v1834
    %v1867 = vsub.s32 %v118, %v1835
    %v1868 = vsub.s32 %v119, %v1836
    %v1869 = vsub.s32 %v120, %v1837
    %v1870 = vsub.s32 %v121, %v1838
    %v1871 = vsub.s32 %v122, %v1839
    %v1872 = vsub.s32 %v123, %v1840
    %v1873 = vsub.s32 %v124, %v1841
    %v1874 = vsub.s32 %v125, %v1842
    %v1875 = vsub.s32 %v126, %v1843
    %v1876 = vsub.s32 %v127, %v1844
    %v1877 = vsub.s32 %v128, %v1845
    %v1878 = vsub.s32 %v129, %v1846
    %v1879 = vsub.s32 %v130, %v1847
    %v1880 = vsub.s32 %v131, %v1848
    %v1881 = vsub.s32 %v132, %v1849
    %v1882 = vsub.s32 %v133, %v1850
    %v1883 = vsub.s32 %v134, %v1851
    %v1884 = vsub.s32 %v135, %v1852
    %v1885 = vand.u32 %v89, 7
    %v1886 = vsub.s32 %v89, %v1885
    %v1887 = vmul.u32 %v1886, 4
    %vm1888 = vcmp.eq.s32.totalorder %v1853, %v1887
    %vm1889 = vcmp.eq.s32.totalorder %v1854, %v1887
    %vm1890 = vcmp.eq.s32.totalorder %v1855, %v1887
    %vm1891 = vcmp.eq.s32.totalorder %v1856, %v1887
    %vm1892 = vcmp.eq.s32.totalorder %v1857, %v1887
    %vm1893 = vcmp.eq.s32.totalorder %v1858, %v1887
    %vm1894 = vcmp.eq.s32.totalorder %v1859, %v1887
    %vm1895 = vcmp.eq.s32.totalorder %v1860, %v1887
    %vm1896 = vcmp.eq.s32.totalorder %v1861, %v1887
    %vm1897 = vcmp.eq.s32.totalorder %v1862, %v1887
    %vm1898 = vcmp.eq.s32.totalorder %v1863, %v1887
    %vm1899 = vcmp.eq.s32.totalorder %v1864, %v1887
    %vm1900 = vcmp.eq.s32.totalorder %v1865, %v1887
    %vm1901 = vcmp.eq.s32.totalorder %v1866, %v1887
    %vm1902 = vcmp.eq.s32.totalorder %v1867, %v1887
    %vm1903 = vcmp.eq.s32.totalorder %v1868, %v1887
    %vm1904 = vcmp.eq.s32.totalorder %v1869, %v1887
    %vm1905 = vcmp.eq.s32.totalorder %v1870, %v1887
    %vm1906 = vcmp.eq.s32.totalorder %v1871, %v1887
    %vm1907 = vcmp.eq.s32.totalorder %v1872, %v1887
    %vm1908 = vcmp.eq.s32.totalorder %v1873, %v1887
    %vm1909 = vcmp.eq.s32.totalorder %v1874, %v1887
    %vm1910 = vcmp.eq.s32.totalorder %v1875, %v1887
    %vm1911 = vcmp.eq.s32.totalorder %v1876, %v1887
    %vm1912 = vcmp.eq.s32.totalorder %v1877, %v1887
    %vm1913 = vcmp.eq.s32.totalorder %v1878, %v1887
    %vm1914 = vcmp.eq.s32.totalorder %v1879, %v1887
    %vm1915 = vcmp.eq.s32.totalorder %v1880, %v1887
    %vm1916 = vcmp.eq.s32.totalorder %v1881, %v1887
    %vm1917 = vcmp.eq.s32.totalorder %v1882, %v1887
    %vm1918 = vcmp.eq.s32.totalorder %v1883, %v1887
    %vm1919 = vcmp.eq.s32.totalorder %v1884, %v1887
    %v1920 = vadd.s32 %v1887, 16
    %vm1921 = vcmp.eq.s32.totalorder %v1853, %v1920
    %vm1922 = vcmp.eq.s32.totalorder %v1854, %v1920
    %vm1923 = vcmp.eq.s32.totalorder %v1855, %v1920
    %vm1924 = vcmp.eq.s32.totalorder %v1856, %v1920
    %vm1925 = vcmp.eq.s32.totalorder %v1857, %v1920
    %vm1926 = vcmp.eq.s32.totalorder %v1858, %v1920
    %vm1927 = vcmp.eq.s32.totalorder %v1859, %v1920
    %vm1928 = vcmp.eq.s32.totalorder %v1860, %v1920
    %vm1929 = vcmp.eq.s32.totalorder %v1861, %v1920
    %vm1930 = vcmp.eq.s32.totalorder %v1862, %v1920
    %vm1931 = vcmp.eq.s32.totalorder %v1863, %v1920
    %vm1932 = vcmp.eq.s32.totalorder %v1864, %v1920
    %vm1933 = vcmp.eq.s32.totalorder %v1865, %v1920
    %vm1934 = vcmp.eq.s32.totalorder %v1866, %v1920
    %vm1935 = vcmp.eq.s32.totalorder %v1867, %v1920
    %vm1936 = vcmp.eq.s32.totalorder %v1868, %v1920
    %vm1937 = vcmp.eq.s32.totalorder %v1869, %v1920
    %vm1938 = vcmp.eq.s32.totalorder %v1870, %v1920
    %vm1939 = vcmp.eq.s32.totalorder %v1871, %v1920
    %vm1940 = vcmp.eq.s32.totalorder %v1872, %v1920
    %vm1941 = vcmp.eq.s32.totalorder %v1873, %v1920
    %vm1942 = vcmp.eq.s32.totalorder %v1874, %v1920
    %vm1943 = vcmp.eq.s32.totalorder %v1875, %v1920
    %vm1944 = vcmp.eq.s32.totalorder %v1876, %v1920
    %vm1945 = vcmp.eq.s32.totalorder %v1877, %v1920
    %vm1946 = vcmp.eq.s32.totalorder %v1878, %v1920
    %vm1947 = vcmp.eq.s32.totalorder %v1879, %v1920
    %vm1948 = vcmp.eq.s32.totalorder %v1880, %v1920
    %vm1949 = vcmp.eq.s32.totalorder %v1881, %v1920
    %vm1950 = vcmp.eq.s32.totalorder %v1882, %v1920
    %vm1951 = vcmp.eq.s32.totalorder %v1883, %v1920
    %vm1952 = vcmp.eq.s32.totalorder %v1884, %v1920
    %vm1953 = vmor %vm1888, %vm1921
    %vm1954 = vmor %vm1889, %vm1922
    %vm1955 = vmor %vm1890, %vm1923
    %vm1956 = vmor %vm1891, %vm1924
    %vm1957 = vmor %vm1892, %vm1925
    %vm1958 = vmor %vm1893, %vm1926
    %vm1959 = vmor %vm1894, %vm1927
    %vm1960 = vmor %vm1895, %vm1928
    %vm1961 = vmor %vm1896, %vm1929
    %vm1962 = vmor %vm1897, %vm1930
    %vm1963 = vmor %vm1898, %vm1931
    %vm1964 = vmor %vm1899, %vm1932
    %vm1965 = vmor %vm1900, %vm1933
    %vm1966 = vmor %vm1901, %vm1934
    %vm1967 = vmor %vm1902, %vm1935
    %vm1968 = vmor %vm1903, %vm1936
    %vm1969 = vmor %vm1904, %vm1937
    %vm1970 = vmor %vm1905, %vm1938
    %vm1971 = vmor %vm1906, %vm1939
    %vm1972 = vmor %vm1907, %vm1940
    %vm1973 = vmor %vm1908, %vm1941
    %vm1974 = vmor %vm1909, %vm1942
    %vm1975 = vmor %vm1910, %vm1943
    %vm1976 = vmor %vm1911, %vm1944
    %vm1977 = vmor %vm1912, %vm1945
    %vm1978 = vmor %vm1913, %vm1946
    %vm1979 = vmor %vm1914, %vm1947
    %vm1980 = vmor %vm1915, %vm1948
    %vm1981 = vmor %vm1916, %vm1949
    %vm1982 = vmor %vm1917, %vm1950
    %vm1983 = vmor %vm1918, %vm1951
    %vm1984 = vmor %vm1919, %vm1952
    %v1985 = vmul.u32 %v1885, 2
    %vm1986 = vcmp.eq.s32.totalorder %v1821, %v1985
    %vm1987 = vcmp.eq.s32.totalorder %v1822, %v1985
    %vm1988 = vcmp.eq.s32.totalorder %v1823, %v1985
    %vm1989 = vcmp.eq.s32.totalorder %v1824, %v1985
    %vm1990 = vcmp.eq.s32.totalorder %v1825, %v1985
    %vm1991 = vcmp.eq.s32.totalorder %v1826, %v1985
    %vm1992 = vcmp.eq.s32.totalorder %v1827, %v1985
    %vm1993 = vcmp.eq.s32.totalorder %v1828, %v1985
    %vm1994 = vcmp.eq.s32.totalorder %v1829, %v1985
    %vm1995 = vcmp.eq.s32.totalorder %v1830, %v1985
    %vm1996 = vcmp.eq.s32.totalorder %v1831, %v1985
    %vm1997 = vcmp.eq.s32.totalorder %v1832, %v1985
    %vm1998 = vcmp.eq.s32.totalorder %v1833, %v1985
    %vm1999 = vcmp.eq.s32.totalorder %v1834, %v1985
    %vm2000 = vcmp.eq.s32.totalorder %v1835, %v1985
    %vm2001 = vcmp.eq.s32.totalorder %v1836, %v1985
    %vm2002 = vcmp.eq.s32.totalorder %v1837, %v1985
    %vm2003 = vcmp.eq.s32.totalorder %v1838, %v1985
    %vm2004 = vcmp.eq.s32.totalorder %v1839, %v1985
    %vm2005 = vcmp.eq.s32.totalorder %v1840, %v1985
    %vm2006 = vcmp.eq.s32.totalorder %v1841, %v1985
    %vm2007 = vcmp.eq.s32.totalorder %v1842, %v1985
    %vm2008 = vcmp.eq.s32.totalorder %v1843, %v1985
    %vm2009 = vcmp.eq.s32.totalorder %v1844, %v1985
    %vm2010 = vcmp.eq.s32.totalorder %v1845, %v1985
    %vm2011 = vcmp.eq.s32.totalorder %v1846, %v1985
    %vm2012 = vcmp.eq.s32.totalorder %v1847, %v1985
    %vm2013 = vcmp.eq.s32.totalorder %v1848, %v1985
    %vm2014 = vcmp.eq.s32.totalorder %v1849, %v1985
    %vm2015 = vcmp.eq.s32.totalorder %v1850, %v1985
    %vm2016 = vcmp.eq.s32.totalorder %v1851, %v1985
    %vm2017 = vcmp.eq.s32.totalorder %v1852, %v1985
    %v2018 = vadd.s32 %v1985, 1
    %vm2019 = vcmp.eq.s32.totalorder %v1821, %v2018
    %vm2020 = vcmp.eq.s32.totalorder %v1822, %v2018
    %vm2021 = vcmp.eq.s32.totalorder %v1823, %v2018
    %vm2022 = vcmp.eq.s32.totalorder %v1824, %v2018
    %vm2023 = vcmp.eq.s32.totalorder %v1825, %v2018
    %vm2024 = vcmp.eq.s32.totalorder %v1826, %v2018
    %vm2025 = vcmp.eq.s32.totalorder %v1827, %v2018
    %vm2026 = vcmp.eq.s32.totalorder %v1828, %v2018
    %vm2027 = vcmp.eq.s32.totalorder %v1829, %v2018
    %vm2028 = vcmp.eq.s32.totalorder %v1830, %v2018
    %vm2029 = vcmp.eq.s32.totalorder %v1831, %v2018
    %vm2030 = vcmp.eq.s32.totalorder %v1832, %v2018
    %vm2031 = vcmp.eq.s32.totalorder %v1833, %v2018
    %vm2032 = vcmp.eq.s32.totalorder %v1834, %v2018
    %vm2033 = vcmp.eq.s32.totalorder %v1835, %v2018
    %vm2034 = vcmp.eq.s32.totalorder %v1836, %v2018
    %vm2035 = vcmp.eq.s32.totalorder %v1837, %v2018
    %vm2036 = vcmp.eq.s32.totalorder %v1838, %v2018
    %vm2037 = vcmp.eq.s32.totalorder %v1839, %v2018
    %vm2038 = vcmp.eq.s32.totalorder %v1840, %v2018
    %vm2039 = vcmp.eq.s32.totalorder %v1841, %v2018
    %vm2040 = vcmp.eq.s32.totalorder %v1842, %v2018
    %vm2041 = vcmp.eq.s32.totalorder %v1843, %v2018
    %vm2042 = vcmp.eq.s32.totalorder %v1844, %v2018
    %vm2043 = vcmp.eq.s32.totalorder %v1845, %v2018
    %vm2044 = vcmp.eq.s32.totalorder %v1846, %v2018
    %vm2045 = vcmp.eq.s32.totalorder %v1847, %v2018
    %vm2046 = vcmp.eq.s32.totalorder %v1848, %v2018
    %vm2047 = vcmp.eq.s32.totalorder %v1849, %v2018
    %vm2048 = vcmp.eq.s32.totalorder %v1850, %v2018
    %vm2049 = vcmp.eq.s32.totalorder %v1851, %v2018
    %vm2050 = vcmp.eq.s32.totalorder %v1852, %v2018
    %vm2051 = vmor %vm1986, %vm2019
    %vm2052 = vmor %vm1987, %vm2020
    %vm2053 = vmor %vm1988, %vm2021
    %vm2054 = vmor %vm1989, %vm2022
    %vm2055 = vmor %vm1990, %vm2023
    %vm2056 = vmor %vm1991, %vm2024
    %vm2057 = vmor %vm1992, %vm2025
    %vm2058 = vmor %vm1993, %vm2026
    %vm2059 = vmor %vm1994, %vm2027
    %vm2060 = vmor %vm1995, %vm2028
    %vm2061 = vmor %vm1996, %vm2029
    %vm2062 = vmor %vm1997, %vm2030
    %vm2063 = vmor %vm1998, %vm2031
    %vm2064 = vmor %vm1999, %vm2032
    %vm2065 = vmor %vm2000, %vm2033
    %vm2066 = vmor %vm2001, %vm2034
    %vm2067 = vmor %vm2002, %vm2035
    %vm2068 = vmor %vm2003, %vm2036
    %vm2069 = vmor %vm2004, %vm2037
    %vm2070 = vmor %vm2005, %vm2038
    %vm2071 = vmor %vm2006, %vm2039
    %vm2072 = vmor %vm2007, %vm2040
    %vm2073 = vmor %vm2008, %vm2041
    %vm2074 = vmor %vm2009, %vm2042
    %vm2075 = vmor %vm2010, %vm2043
    %vm2076 = vmor %vm2011, %vm2044
    %vm2077 = vmor %vm2012, %vm2045
    %vm2078 = vmor %vm2013, %vm2046
    %vm2079 = vmor %vm2014, %vm2047
    %vm2080 = vmor %vm2015, %vm2048
    %vm2081 = vmor %vm2016, %vm2049
    %vm2082 = vmor %vm2017, %vm2050
    %vm2083 = vmand %vm1953, %vm2051
    %vm2084 = vmand %vm1954, %vm2052
    %vm2085 = vmand %vm1955, %vm2053
    %vm2086 = vmand %vm1956, %vm2054
    %vm2087 = vmand %vm1957, %vm2055
    %vm2088 = vmand %vm1958, %vm2056
    %vm2089 = vmand %vm1959, %vm2057
    %vm2090 = vmand %vm1960, %vm2058
    %vm2091 = vmand %vm1961, %vm2059
    %vm2092 = vmand %vm1962, %vm2060
    %vm2093 = vmand %vm1963, %vm2061
    %vm2094 = vmand %vm1964, %vm2062
    %vm2095 = vmand %vm1965, %vm2063
    %vm2096 = vmand %vm1966, %vm2064
    %vm2097 = vmand %vm1967, %vm2065
    %vm2098 = vmand %vm1968, %vm2066
    %vm2099 = vmand %vm1969, %vm2067
    %vm2100 = vmand %vm1970, %vm2068
    %vm2101 = vmand %vm1971, %vm2069
    %vm2102 = vmand %vm1972, %vm2070
    %vm2103 = vmand %vm1973, %vm2071
    %vm2104 = vmand %vm1974, %vm2072
    %vm2105 = vmand %vm1975, %vm2073
    %vm2106 = vmand %vm1976, %vm2074
    %vm2107 = vmand %vm1977, %vm2075
    %vm2108 = vmand %vm1978, %vm2076
    %vm2109 = vmand %vm1979, %vm2077
    %vm2110 = vmand %vm1980, %vm2078
    %vm2111 = vmand %vm1981, %vm2079
    %vm2112 = vmand %vm1982, %vm2080
    %vm2113 = vmand %vm1983, %vm2081
    %vm2114 = vmand %vm1984, %vm2082
    %v2115 = vsel %vm2083, 1, 0
    %v2116 = vsel %vm2084, 1, 0
    %v2117 = vsel %vm2085, 1, 0
    %v2118 = vsel %vm2086, 1, 0
    %v2119 = vsel %vm2087, 1, 0
    %v2120 = vsel %vm2088, 1, 0
    %v2121 = vsel %vm2089, 1, 0
    %v2122 = vsel %vm2090, 1, 0
    %v2123 = vsel %vm2091, 1, 0
    %v2124 = vsel %vm2092, 1, 0
    %v2125 = vsel %vm2093, 1, 0
    %v2126 = vsel %vm2094, 1, 0
    %v2127 = vsel %vm2095, 1, 0
    %v2128 = vsel %vm2096, 1, 0
    %v2129 = vsel %vm2097, 1, 0
    %v2130 = vsel %vm2098, 1, 0
    %v2131 = vsel %vm2099, 1, 0
    %v2132 = vsel %vm2100, 1, 0
    %v2133 = vsel %vm2101, 1, 0
    %v2134 = vsel %vm2102, 1, 0
    %v2135 = vsel %vm2103, 1, 0
    %v2136 = vsel %vm2104, 1, 0
    %v2137 = vsel %vm2105, 1, 0
    %v2138 = vsel %vm2106, 1, 0
    %v2139 = vsel %vm2107, 1, 0
    %v2140 = vsel %vm2108, 1, 0
    %v2141 = vsel %vm2109, 1, 0
    %v2142 = vsel %vm2110, 1, 0
    %v2143 = vsel %vm2111, 1, 0
    %v2144 = vsel %vm2112, 1, 0
    %v2145 = vsel %vm2113, 1, 0
    %v2146 = vsel %vm2114, 1, 0
    %v2147 = vcvt.s32.f32 %v2115
    %v2148 = vcvt.s32.f32 %v2116
    %v2149 = vcvt.s32.f32 %v2117
    %v2150 = vcvt.s32.f32 %v2118
    %v2151 = vcvt.s32.f32 %v2119
    %v2152 = vcvt.s32.f32 %v2120
    %v2153 = vcvt.s32.f32 %v2121
    %v2154 = vcvt.s32.f32 %v2122
    %v2155 = vcvt.s32.f32 %v2123
    %v2156 = vcvt.s32.f32 %v2124
    %v2157 = vcvt.s32.f32 %v2125
    %v2158 = vcvt.s32.f32 %v2126
    %v2159 = vcvt.s32.f32 %v2127
    %v2160 = vcvt.s32.f32 %v2128
    %v2161 = vcvt.s32.f32 %v2129
    %v2162 = vcvt.s32.f32 %v2130
    %v2163 = vcvt.s32.f32 %v2131
    %v2164 = vcvt.s32.f32 %v2132
    %v2165 = vcvt.s32.f32 %v2133
    %v2166 = vcvt.s32.f32 %v2134
    %v2167 = vcvt.s32.f32 %v2135
    %v2168 = vcvt.s32.f32 %v2136
    %v2169 = vcvt.s32.f32 %v2137
    %v2170 = vcvt.s32.f32 %v2138
    %v2171 = vcvt.s32.f32 %v2139
    %v2172 = vcvt.s32.f32 %v2140
    %v2173 = vcvt.s32.f32 %v2141
    %v2174 = vcvt.s32.f32 %v2142
    %v2175 = vcvt.s32.f32 %v2143
    %v2176 = vcvt.s32.f32 %v2144
    %v2177 = vcvt.s32.f32 %v2145
    %v2178 = vcvt.s32.f32 %v2146
    %v2180 = vsel %vm1047, %v1820, 0
    %2182 = vmatprep.subr.mxu0 %v46
    %2183 = vmatpush1.msra.mxu0 %v45
    %2184 = vmatprep.subr.mxu0 %v48
    %2185 = vmatpush1.msra.mxu0 %v47
    %2186 = vmatprep.subr.mxu0 0.0
    %2187 = vmatpush1.msra.mxu0 0.0
    %2188 = vmatprep.subr.mxu0 0.0
    %2189 = vmatpush1.msra.mxu0 0.0
    %2190 = vmatprep.subr.mxu0 0.0
    %2191 = vmatpush1.msra.mxu0 0.0
    %2192 = vmatprep.subr.mxu0 0.0
    %2193 = vmatpush1.msra.mxu0 0.0
    %2194 = vmatprep.subr.mxu0 0.0
    %2195 = vmatpush1.msra.mxu0 0.0
    %2196 = vmatprep.subr.mxu0 0.0
    %2197 = vmatpush1.msra.mxu0 0.0
    %2198 = vmatprep.subr.mxu0 0.0
    %2199 = vmatpush1.msra.mxu0 0.0
    %2200 = vmatprep.subr.mxu0 0.0
    %2201 = vmatpush1.msra.mxu0 0.0
    %2202 = vmatprep.subr.mxu0 0.0
    %2203 = vmatpush1.msra.mxu0 0.0
    %2204 = vmatprep.subr.mxu0 0.0
    %2205 = vmatpush1.msra.mxu0 0.0
    %2206 = vmatprep.subr.mxu0 0.0
    %2207 = vmatpush1.msra.mxu0 0.0
    %2208 = vmatprep.subr.mxu0 0.0
    %2209 = vmatpush1.msra.mxu0 0.0
    %2210 = vmatprep.subr.mxu0 0.0
    %2211 = vmatpush1.msra.mxu0 0.0
    %2212 = vmatprep.subr.mxu0 0.0
    %2213 = vmatpush1.msra.mxu0 0.0
    %2214 = vmatprep.subr.mxu0 0.0
    %2215 = vmatpush1.msra.mxu0 0.0
    %2216 = vmatprep.subr.mxu0 0.0
    %2217 = vmatpush1.msra.mxu0 0.0
    %2218 = vmatprep.subr.mxu0 0.0
    %2219 = vmatpush1.msra.mxu0 0.0
    %2220 = vmatprep.subr.mxu0 0.0
    %2221 = vmatpush1.msra.mxu0 0.0
    %2222 = vmatprep.subr.mxu0 0.0
    %2223 = vmatpush1.msra.mxu0 0.0
    %2224 = vmatprep.subr.mxu0 0.0
    %2225 = vmatpush1.msra.mxu0 0.0
    %2226 = vmatprep.subr.mxu0 0.0
    %2227 = vmatpush1.msra.mxu0 0.0
    %2228 = vmatprep.subr.mxu0 0.0
    %2229 = vmatpush1.msra.mxu0 0.0
    %2230 = vmatprep.subr.mxu0 0.0
    %2231 = vmatpush1.msra.mxu0 0.0
    %2232 = vmatprep.subr.mxu0 0.0
    %2233 = vmatpush1.msra.mxu0 0.0
    %2234 = vmatprep.subr.mxu0 0.0
    %2235 = vmatpush1.msra.mxu0 0.0
    %2236 = vmatprep.subr.mxu0 0.0
    %2237 = vmatpush1.msra.mxu0 0.0
    %2238 = vmatprep.subr.mxu0 0.0
    %2239 = vmatpush1.msra.mxu0 0.0
    %2240 = vmatprep.subr.mxu0 0.0
    %2241 = vmatpush1.msra.mxu0 0.0
    %2242 = vmatprep.subr.mxu0 0.0
    %2243 = vmatpush1.msra.mxu0 0.0
    %2244 = vmatprep.subr.mxu0 0.0
    %2245 = vmatpush1.msra.mxu0 0.0
    %2246 = vmatprep.mubr.f32.mxu0 0.0
    %2247 = vmatmul.mubr.f32.gmra.mrb[0].mxu0 %v2180
    %v2248 = vpop.f32.mrb[0].mxu0
    %v2249 = vadd.f32 0.0, %v2248
    %v2250 = vpop.f32.mrb[0].mxu0
    %v2251 = vadd.f32 0.0, %v2250
    %2252 = vdwg.mxu0
    %2253 = vmatprep.subr.mxu0 0.0
    %2254 = vmatpush1.msra.mxu0 %v2147
    %2255 = vmatprep.subr.mxu0 0.0
    %2256 = vmatpush1.msra.mxu0 %v2148
    %2257 = vmatprep.subr.mxu0 0.0
    %2258 = vmatpush1.msra.mxu0 %v2149
    %2259 = vmatprep.subr.mxu0 0.0
    %2260 = vmatpush1.msra.mxu0 %v2150
    %2261 = vmatprep.subr.mxu0 0.0
    %2262 = vmatpush1.msra.mxu0 %v2151
    %2263 = vmatprep.subr.mxu0 0.0
    %2264 = vmatpush1.msra.mxu0 %v2152
    %2265 = vmatprep.subr.mxu0 0.0
    %2266 = vmatpush1.msra.mxu0 %v2153
    %2267 = vmatprep.subr.mxu0 0.0
    %2268 = vmatpush1.msra.mxu0 %v2154
    %2269 = vmatprep.subr.mxu0 0.0
    %2270 = vmatpush1.msra.mxu0 %v2155
    %2271 = vmatprep.subr.mxu0 0.0
    %2272 = vmatpush1.msra.mxu0 %v2156
    %2273 = vmatprep.subr.mxu0 0.0
    %2274 = vmatpush1.msra.mxu0 %v2157
    %2275 = vmatprep.subr.mxu0 0.0
    %2276 = vmatpush1.msra.mxu0 %v2158
    %2277 = vmatprep.subr.mxu0 0.0
    %2278 = vmatpush1.msra.mxu0 %v2159
    %2279 = vmatprep.subr.mxu0 0.0
    %2280 = vmatpush1.msra.mxu0 %v2160
    %2281 = vmatprep.subr.mxu0 0.0
    %2282 = vmatpush1.msra.mxu0 %v2161
    %2283 = vmatprep.subr.mxu0 0.0
    %2284 = vmatpush1.msra.mxu0 %v2162
    %2285 = vmatprep.subr.mxu0 0.0
    %2286 = vmatpush1.msra.mxu0 %v2163
    %2287 = vmatprep.subr.mxu0 0.0
    %2288 = vmatpush1.msra.mxu0 %v2164
    %2289 = vmatprep.subr.mxu0 0.0
    %2290 = vmatpush1.msra.mxu0 %v2165
    %2291 = vmatprep.subr.mxu0 0.0
    %2292 = vmatpush1.msra.mxu0 %v2166
    %2293 = vmatprep.subr.mxu0 0.0
    %2294 = vmatpush1.msra.mxu0 %v2167
    %2295 = vmatprep.subr.mxu0 0.0
    %2296 = vmatpush1.msra.mxu0 %v2168
    %2297 = vmatprep.subr.mxu0 0.0
    %2298 = vmatpush1.msra.mxu0 %v2169
    %2299 = vmatprep.subr.mxu0 0.0
    %2300 = vmatpush1.msra.mxu0 %v2170
    %2301 = vmatprep.subr.mxu0 0.0
    %2302 = vmatpush1.msra.mxu0 %v2171
    %2303 = vmatprep.subr.mxu0 0.0
    %2304 = vmatpush1.msra.mxu0 %v2172
    %2305 = vmatprep.subr.mxu0 0.0
    %2306 = vmatpush1.msra.mxu0 %v2173
    %2307 = vmatprep.subr.mxu0 0.0
    %2308 = vmatpush1.msra.mxu0 %v2174
    %2309 = vmatprep.subr.mxu0 0.0
    %2310 = vmatpush1.msra.mxu0 %v2175
    %2311 = vmatprep.subr.mxu0 0.0
    %2312 = vmatpush1.msra.mxu0 %v2176
    %2313 = vmatprep.subr.mxu0 0.0
    %2314 = vmatpush1.msra.mxu0 %v2177
    %2315 = vmatprep.subr.mxu0 0.0
    %2316 = vmatpush1.msra.mxu0 %v2178
    %2317 = vmatprep.mubr.f32.mxu0 %v2251
    %2318 = vmatmul.mubr.f32.gmra.mrb[0].mxu0 %v2249
    %v2319 = vpop.f32.mrb[0].mxu0
    %v2320 = vadd.f32 0.0, %v2319
    %v2321 = vpop.f32.mrb[0].mxu0
    %2322 = vdwg.mxu0
    %2323 = vmatprep.subr.mxu0 %v54
    %2324 = vmatpush1.msra.mxu0 %v53
    %2325 = vmatprep.subr.mxu0 %v56
    %2326 = vmatpush1.msra.mxu0 %v55
    %2327 = vmatprep.subr.mxu0 0.0
    %2328 = vmatpush1.msra.mxu0 0.0
    %2329 = vmatprep.subr.mxu0 0.0
    %2330 = vmatpush1.msra.mxu0 0.0
    %2331 = vmatprep.subr.mxu0 0.0
    %2332 = vmatpush1.msra.mxu0 0.0
    %2333 = vmatprep.subr.mxu0 0.0
    %2334 = vmatpush1.msra.mxu0 0.0
    %2335 = vmatprep.subr.mxu0 0.0
    %2336 = vmatpush1.msra.mxu0 0.0
    %2337 = vmatprep.subr.mxu0 0.0
    %2338 = vmatpush1.msra.mxu0 0.0
    %2339 = vmatprep.subr.mxu0 0.0
    %2340 = vmatpush1.msra.mxu0 0.0
    %2341 = vmatprep.subr.mxu0 0.0
    %2342 = vmatpush1.msra.mxu0 0.0
    %2343 = vmatprep.subr.mxu0 0.0
    %2344 = vmatpush1.msra.mxu0 0.0
    %2345 = vmatprep.subr.mxu0 0.0
    %2346 = vmatpush1.msra.mxu0 0.0
    %2347 = vmatprep.subr.mxu0 0.0
    %2348 = vmatpush1.msra.mxu0 0.0
    %2349 = vmatprep.subr.mxu0 0.0
    %2350 = vmatpush1.msra.mxu0 0.0
    %2351 = vmatprep.subr.mxu0 0.0
    %2352 = vmatpush1.msra.mxu0 0.0
    %2353 = vmatprep.subr.mxu0 0.0
    %2354 = vmatpush1.msra.mxu0 0.0
    %2355 = vmatprep.subr.mxu0 0.0
    %2356 = vmatpush1.msra.mxu0 0.0
    %2357 = vmatprep.subr.mxu0 0.0
    %2358 = vmatpush1.msra.mxu0 0.0
    %2359 = vmatprep.subr.mxu0 0.0
    %2360 = vmatpush1.msra.mxu0 0.0
    %2361 = vmatprep.subr.mxu0 0.0
    %2362 = vmatpush1.msra.mxu0 0.0
    %2363 = vmatprep.subr.mxu0 0.0
    %2364 = vmatpush1.msra.mxu0 0.0
    %2365 = vmatprep.subr.mxu0 0.0
    %2366 = vmatpush1.msra.mxu0 0.0
    %2367 = vmatprep.subr.mxu0 0.0
    %2368 = vmatpush1.msra.mxu0 0.0
    %2369 = vmatprep.subr.mxu0 0.0
    %2370 = vmatpush1.msra.mxu0 0.0
    %2371 = vmatprep.subr.mxu0 0.0
    %2372 = vmatpush1.msra.mxu0 0.0
    %2373 = vmatprep.subr.mxu0 0.0
    %2374 = vmatpush1.msra.mxu0 0.0
    %2375 = vmatprep.subr.mxu0 0.0
    %2376 = vmatpush1.msra.mxu0 0.0
    %2377 = vmatprep.subr.mxu0 0.0
    %2378 = vmatpush1.msra.mxu0 0.0
    %2379 = vmatprep.subr.mxu0 0.0
    %2380 = vmatpush1.msra.mxu0 0.0
    %2381 = vmatprep.subr.mxu0 0.0
    %2382 = vmatpush1.msra.mxu0 0.0
    %2383 = vmatprep.subr.mxu0 0.0
    %2384 = vmatpush1.msra.mxu0 0.0
    %2385 = vmatprep.subr.mxu0 0.0
    %2386 = vmatpush1.msra.mxu0 0.0
    %2387 = vmatprep.mubr.f32.mxu0 0.0
    %2388 = vmatmul.mubr.f32.gmra.mrb[0].mxu0 %v2180
    %v2389 = vpop.f32.mrb[0].mxu0
    %v2390 = vadd.f32 0.0, %v2389
    %v2391 = vpop.f32.mrb[0].mxu0
    %v2392 = vadd.f32 0.0, %v2391
    %2393 = vdwg.mxu0
    %2394 = vmatprep.subr.mxu0 0.0
    %2395 = vmatpush1.msra.mxu0 %v2147
    %2396 = vmatprep.subr.mxu0 0.0
    %2397 = vmatpush1.msra.mxu0 %v2148
    %2398 = vmatprep.subr.mxu0 0.0
    %2399 = vmatpush1.msra.mxu0 %v2149
    %2400 = vmatprep.subr.mxu0 0.0
    %2401 = vmatpush1.msra.mxu0 %v2150
    %2402 = vmatprep.subr.mxu0 0.0
    %2403 = vmatpush1.msra.mxu0 %v2151
    %2404 = vmatprep.subr.mxu0 0.0
    %2405 = vmatpush1.msra.mxu0 %v2152
    %2406 = vmatprep.subr.mxu0 0.0
    %2407 = vmatpush1.msra.mxu0 %v2153
    %2408 = vmatprep.subr.mxu0 0.0
    %2409 = vmatpush1.msra.mxu0 %v2154
    %2410 = vmatprep.subr.mxu0 0.0
    %2411 = vmatpush1.msra.mxu0 %v2155
    %2412 = vmatprep.subr.mxu0 0.0
    %2413 = vmatpush1.msra.mxu0 %v2156
    %2414 = vmatprep.subr.mxu0 0.0
    %2415 = vmatpush1.msra.mxu0 %v2157
    %2416 = vmatprep.subr.mxu0 0.0
    %2417 = vmatpush1.msra.mxu0 %v2158
    %2418 = vmatprep.subr.mxu0 0.0
    %2419 = vmatpush1.msra.mxu0 %v2159
    %2420 = vmatprep.subr.mxu0 0.0
    %2421 = vmatpush1.msra.mxu0 %v2160
    %2422 = vmatprep.subr.mxu0 0.0
    %2423 = vmatpush1.msra.mxu0 %v2161
    %2424 = vmatprep.subr.mxu0 0.0
    %2425 = vmatpush1.msra.mxu0 %v2162
    %2426 = vmatprep.subr.mxu0 0.0
    %2427 = vmatpush1.msra.mxu0 %v2163
    %2428 = vmatprep.subr.mxu0 0.0
    %2429 = vmatpush1.msra.mxu0 %v2164
    %2430 = vmatprep.subr.mxu0 0.0
    %2431 = vmatpush1.msra.mxu0 %v2165
    %2432 = vmatprep.subr.mxu0 0.0
    %2433 = vmatpush1.msra.mxu0 %v2166
    %2434 = vmatprep.subr.mxu0 0.0
    %2435 = vmatpush1.msra.mxu0 %v2167
    %2436 = vmatprep.subr.mxu0 0.0
    %2437 = vmatpush1.msra.mxu0 %v2168
    %2438 = vmatprep.subr.mxu0 0.0
    %2439 = vmatpush1.msra.mxu0 %v2169
    %2440 = vmatprep.subr.mxu0 0.0
    %2441 = vmatpush1.msra.mxu0 %v2170
    %2442 = vmatprep.subr.mxu0 0.0
    %2443 = vmatpush1.msra.mxu0 %v2171
    %2444 = vmatprep.subr.mxu0 0.0
    %2445 = vmatpush1.msra.mxu0 %v2172
    %2446 = vmatprep.subr.mxu0 0.0
    %2447 = vmatpush1.msra.mxu0 %v2173
    %2448 = vmatprep.subr.mxu0 0.0
    %2449 = vmatpush1.msra.mxu0 %v2174
    %2450 = vmatprep.subr.mxu0 0.0
    %2451 = vmatpush1.msra.mxu0 %v2175
    %2452 = vmatprep.subr.mxu0 0.0
    %2453 = vmatpush1.msra.mxu0 %v2176
    %2454 = vmatprep.subr.mxu0 0.0
    %2455 = vmatpush1.msra.mxu0 %v2177
    %2456 = vmatprep.subr.mxu0 0.0
    %2457 = vmatpush1.msra.mxu0 %v2178
    %2458 = vmatprep.mubr.f32.mxu0 %v2392
    %2459 = vmatmul.mubr.f32.gmra.mrb[0].mxu0 %v2390
    %v2460 = vpop.f32.mrb[0].mxu0
    %v2461 = vadd.f32 0.0, %v2460
    %v2462 = vpop.f32.mrb[0].mxu0
    %2463 = vdwg.mxu0
    %vm2464 = vcmp.gt.f32.partialorder %v2461, 0.0
    %v2465 = vsel %vm2464, 1, 0
    %v2466 = vcvt.s32.f32 %v2465
    %v2467 = vmax.f32 %v2461, 1.0
    %v2468 = vrcp.pop %v2467
    %v2469 = vmul.f32 %v2320, %v2468
    %v2470 = vsel %vm2464, %v2469, 0.0
    %v2471 = vsub.s32 %v89, 8
    %vm2472 = vcmp.eq.s32.totalorder %v86, %v2471
    %vm2473 = vcmp.eq.s32.totalorder %v87, %v2471
    %vm2474 = vcmp.eq.s32.totalorder %v106, %v2471
    %vm2475 = vcmp.eq.s32.totalorder %v107, %v2471
    %vm2476 = vcmp.eq.s32.totalorder %v108, %v2471
    %vm2477 = vcmp.eq.s32.totalorder %v109, %v2471
    %vm2478 = vcmp.eq.s32.totalorder %v110, %v2471
    %vm2479 = vcmp.eq.s32.totalorder %v111, %v2471
    %v2480 = vsel %vm2472, 1, 0
    %v2481 = vsel %vm2473, 1, 0
    %v2482 = vsel %vm2474, 1, 0
    %v2483 = vsel %vm2475, 1, 0
    %v2484 = vsel %vm2476, 1, 0
    %v2485 = vsel %vm2477, 1, 0
    %v2486 = vsel %vm2478, 1, 0
    %v2487 = vsel %vm2479, 1, 0
    %v2488 = vcvt.s32.f32 %v2480
    %v2489 = vcvt.s32.f32 %v2481
    %v2490 = vcvt.s32.f32 %v2482
    %v2491 = vcvt.s32.f32 %v2483
    %v2492 = vcvt.s32.f32 %v2484
    %v2493 = vcvt.s32.f32 %v2485
    %v2494 = vcvt.s32.f32 %v2486
    %v2495 = vcvt.s32.f32 %v2487
    %v2496 = vadd.s32 %v89, 8
    %vm2497 = vcmp.eq.s32.totalorder %v86, %v2496
    %vm2498 = vcmp.eq.s32.totalorder %v87, %v2496
    %vm2499 = vcmp.eq.s32.totalorder %v106, %v2496
    %vm2500 = vcmp.eq.s32.totalorder %v107, %v2496
    %vm2501 = vcmp.eq.s32.totalorder %v108, %v2496
    %vm2502 = vcmp.eq.s32.totalorder %v109, %v2496
    %vm2503 = vcmp.eq.s32.totalorder %v110, %v2496
    %vm2504 = vcmp.eq.s32.totalorder %v111, %v2496
    %v2505 = vsel %vm2497, 1, 0
    %v2506 = vsel %vm2498, 1, 0
    %v2507 = vsel %vm2499, 1, 0
    %v2508 = vsel %vm2500, 1, 0
    %v2509 = vsel %vm2501, 1, 0
    %v2510 = vsel %vm2502, 1, 0
    %v2511 = vsel %vm2503, 1, 0
    %v2512 = vsel %vm2504, 1, 0
    %v2513 = vcvt.s32.f32 %v2505
    %v2514 = vcvt.s32.f32 %v2506
    %v2515 = vcvt.s32.f32 %v2507
    %v2516 = vcvt.s32.f32 %v2508
    %v2517 = vcvt.s32.f32 %v2509
    %v2518 = vcvt.s32.f32 %v2510
    %v2519 = vcvt.s32.f32 %v2511
    %v2520 = vcvt.s32.f32 %v2512
    %vm2521 = vcmp.ne.s32.totalorder %v1885, 0
    %vm2522 = vmand %vm529, %vm2521
    %vm2523 = vmand %vm531, %vm2521
    %vm2524 = vmand %vm533, %vm2521
    %vm2525 = vmand %vm535, %vm2521
    %vm2526 = vmand %vm537, %vm2521
    %vm2527 = vmand %vm539, %vm2521
    %vm2528 = vmand %vm541, %vm2521
    %vm2529 = vmand %vm543, %vm2521
    %v2530 = vsel %vm2522, 1, 0
    %v2531 = vsel %vm2523, 1, 0
    %v2532 = vsel %vm2524, 1, 0
    %v2533 = vsel %vm2525, 1, 0
    %v2534 = vsel %vm2526, 1, 0
    %v2535 = vsel %vm2527, 1, 0
    %v2536 = vsel %vm2528, 1, 0
    %v2537 = vsel %vm2529, 1, 0
    %v2538 = vcvt.s32.f32 %v2530
    %v2539 = vcvt.s32.f32 %v2531
    %v2540 = vcvt.s32.f32 %v2532
    %v2541 = vcvt.s32.f32 %v2533
    %v2542 = vcvt.s32.f32 %v2534
    %v2543 = vcvt.s32.f32 %v2535
    %v2544 = vcvt.s32.f32 %v2536
    %v2545 = vcvt.s32.f32 %v2537
    %vm2546 = vcmp.ne.s32.totalorder %v1885, 7
    %vm2547 = vmand %vm789, %vm2546
    %vm2548 = vmand %vm791, %vm2546
    %vm2549 = vmand %vm793, %vm2546
    %vm2550 = vmand %vm795, %vm2546
    %vm2551 = vmand %vm797, %vm2546
    %vm2552 = vmand %vm799, %vm2546
    %vm2553 = vmand %vm801, %vm2546
    %vm2554 = vmand %vm803, %vm2546
    %v2555 = vsel %vm2547, 1, 0
    %v2556 = vsel %vm2548, 1, 0
    %v2557 = vsel %vm2549, 1, 0
    %v2558 = vsel %vm2550, 1, 0
    %v2559 = vsel %vm2551, 1, 0
    %v2560 = vsel %vm2552, 1, 0
    %v2561 = vsel %vm2553, 1, 0
    %v2562 = vsel %vm2554, 1, 0
    %v2563 = vcvt.s32.f32 %v2555
    %v2564 = vcvt.s32.f32 %v2556
    %v2565 = vcvt.s32.f32 %v2557
    %v2566 = vcvt.s32.f32 %v2558
    %v2567 = vcvt.s32.f32 %v2559
    %v2568 = vcvt.s32.f32 %v2560
    %v2569 = vcvt.s32.f32 %v2561
    %v2570 = vcvt.s32.f32 %v2562
    %vm2571 = vcmask 64512
    %v2572 = vsel %vm2571, %v96, 0
    %2574 = vmatprep.subr.mxu0 0.0
    %2575 = vmatpush1.msra.mxu0 %v2470
    %2576 = vmatprep.subr.mxu0 0.0
    %2577 = vmatpush1.msra.mxu0 0.0
    %2578 = vmatprep.subr.mxu0 0.0
    %2579 = vmatpush1.msra.mxu0 0.0
    %2580 = vmatprep.subr.mxu0 0.0
    %2581 = vmatpush1.msra.mxu0 0.0
    %2582 = vmatprep.subr.mxu0 0.0
    %2583 = vmatpush1.msra.mxu0 0.0
    %2584 = vmatprep.subr.mxu0 0.0
    %2585 = vmatpush1.msra.mxu0 0.0
    %2586 = vmatprep.subr.mxu0 0.0
    %2587 = vmatpush1.msra.mxu0 0.0
    %2588 = vmatprep.subr.mxu0 0.0
    %2589 = vmatpush1.msra.mxu0 0.0
    %2590 = vmatprep.subr.mxu0 0.0
    %2591 = vmatpush1.msra.mxu0 0.0
    %2592 = vmatprep.subr.mxu0 0.0
    %2593 = vmatpush1.msra.mxu0 0.0
    %2594 = vmatprep.subr.mxu0 0.0
    %2595 = vmatpush1.msra.mxu0 0.0
    %2596 = vmatprep.subr.mxu0 0.0
    %2597 = vmatpush1.msra.mxu0 0.0
    %2598 = vmatprep.subr.mxu0 0.0
    %2599 = vmatpush1.msra.mxu0 0.0
    %2600 = vmatprep.subr.mxu0 0.0
    %2601 = vmatpush1.msra.mxu0 0.0
    %2602 = vmatprep.subr.mxu0 0.0
    %2603 = vmatpush1.msra.mxu0 0.0
    %2604 = vmatprep.subr.mxu0 0.0
    %2605 = vmatpush1.msra.mxu0 0.0
    %2606 = vmatprep.subr.mxu0 0.0
    %2607 = vmatpush1.msra.mxu0 0.0
    %2608 = vmatprep.subr.mxu0 0.0
    %2609 = vmatpush1.msra.mxu0 0.0
    %2610 = vmatprep.subr.mxu0 0.0
    %2611 = vmatpush1.msra.mxu0 0.0
    %2612 = vmatprep.subr.mxu0 0.0
    %2613 = vmatpush1.msra.mxu0 0.0
    %2614 = vmatprep.subr.mxu0 0.0
    %2615 = vmatpush1.msra.mxu0 0.0
    %2616 = vmatprep.subr.mxu0 0.0
    %2617 = vmatpush1.msra.mxu0 0.0
    %2618 = vmatprep.subr.mxu0 0.0
    %2619 = vmatpush1.msra.mxu0 0.0
    %2620 = vmatprep.subr.mxu0 0.0
    %2621 = vmatpush1.msra.mxu0 0.0
    %2622 = vmatprep.subr.mxu0 0.0
    %2623 = vmatpush1.msra.mxu0 0.0
    %2624 = vmatprep.subr.mxu0 0.0
    %2625 = vmatpush1.msra.mxu0 0.0
    %2626 = vmatprep.subr.mxu0 0.0
    %2627 = vmatpush1.msra.mxu0 0.0
    %2628 = vmatprep.subr.mxu0 0.0
    %2629 = vmatpush1.msra.mxu0 0.0
    %2630 = vmatprep.subr.mxu0 0.0
    %2631 = vmatpush1.msra.mxu0 0.0
    %2632 = vmatprep.subr.mxu0 0.0
    %2633 = vmatpush1.msra.mxu0 0.0
    %2634 = vmatprep.subr.mxu0 0.0
    %2635 = vmatpush1.msra.mxu0 0.0
    %2636 = vmatprep.subr.mxu0 0.0
    %2637 = vmatpush1.msra.mxu0 0.0
    %2638 = vmatprep.mubr.f32.mxu0 0.0
    %2639 = vmatmul.mubr.f32.gmra.mrb[0].mxu0 %v2572
    %v2640 = vpop.f32.mrb[0].mxu0
    %v2641 = vadd.f32 0.0, %v2640
    %v2642 = vpop.f32.mrb[0].mxu0
    %2643 = vdwg.mxu0
    %v2644 = vsel %vm2571, %v104, 0
    %2646 = vmatprep.subr.mxu0 0.0
    %2647 = vmatpush1.msra.mxu0 %v2470
    %2648 = vmatprep.subr.mxu0 0.0
    %2649 = vmatpush1.msra.mxu0 0.0
    %2650 = vmatprep.subr.mxu0 0.0
    %2651 = vmatpush1.msra.mxu0 0.0
    %2652 = vmatprep.subr.mxu0 0.0
    %2653 = vmatpush1.msra.mxu0 0.0
    %2654 = vmatprep.subr.mxu0 0.0
    %2655 = vmatpush1.msra.mxu0 0.0
    %2656 = vmatprep.subr.mxu0 0.0
    %2657 = vmatpush1.msra.mxu0 0.0
    %2658 = vmatprep.subr.mxu0 0.0
    %2659 = vmatpush1.msra.mxu0 0.0
    %2660 = vmatprep.subr.mxu0 0.0
    %2661 = vmatpush1.msra.mxu0 0.0
    %2662 = vmatprep.subr.mxu0 0.0
    %2663 = vmatpush1.msra.mxu0 0.0
    %2664 = vmatprep.subr.mxu0 0.0
    %2665 = vmatpush1.msra.mxu0 0.0
    %2666 = vmatprep.subr.mxu0 0.0
    %2667 = vmatpush1.msra.mxu0 0.0
    %2668 = vmatprep.subr.mxu0 0.0
    %2669 = vmatpush1.msra.mxu0 0.0
    %2670 = vmatprep.subr.mxu0 0.0
    %2671 = vmatpush1.msra.mxu0 0.0
    %2672 = vmatprep.subr.mxu0 0.0
    %2673 = vmatpush1.msra.mxu0 0.0
    %2674 = vmatprep.subr.mxu0 0.0
    %2675 = vmatpush1.msra.mxu0 0.0
    %2676 = vmatprep.subr.mxu0 0.0
    %2677 = vmatpush1.msra.mxu0 0.0
    %2678 = vmatprep.subr.mxu0 0.0
    %2679 = vmatpush1.msra.mxu0 0.0
    %2680 = vmatprep.subr.mxu0 0.0
    %2681 = vmatpush1.msra.mxu0 0.0
    %2682 = vmatprep.subr.mxu0 0.0
    %2683 = vmatpush1.msra.mxu0 0.0
    %2684 = vmatprep.subr.mxu0 0.0
    %2685 = vmatpush1.msra.mxu0 0.0
    %2686 = vmatprep.subr.mxu0 0.0
    %2687 = vmatpush1.msra.mxu0 0.0
    %2688 = vmatprep.subr.mxu0 0.0
    %2689 = vmatpush1.msra.mxu0 0.0
    %2690 = vmatprep.subr.mxu0 0.0
    %2691 = vmatpush1.msra.mxu0 0.0
    %2692 = vmatprep.subr.mxu0 0.0
    %2693 = vmatpush1.msra.mxu0 0.0
    %2694 = vmatprep.subr.mxu0 0.0
    %2695 = vmatpush1.msra.mxu0 0.0
    %2696 = vmatprep.subr.mxu0 0.0
    %2697 = vmatpush1.msra.mxu0 0.0
    %2698 = vmatprep.subr.mxu0 0.0
    %2699 = vmatpush1.msra.mxu0 0.0
    %2700 = vmatprep.subr.mxu0 0.0
    %2701 = vmatpush1.msra.mxu0 0.0
    %2702 = vmatprep.subr.mxu0 0.0
    %2703 = vmatpush1.msra.mxu0 0.0
    %2704 = vmatprep.subr.mxu0 0.0
    %2705 = vmatpush1.msra.mxu0 0.0
    %2706 = vmatprep.subr.mxu0 0.0
    %2707 = vmatpush1.msra.mxu0 0.0
    %2708 = vmatprep.subr.mxu0 0.0
    %2709 = vmatpush1.msra.mxu0 0.0
    %2710 = vmatprep.mubr.f32.mxu0 0.0
    %2711 = vmatmul.mubr.f32.gmra.mrb[0].mxu0 %v2644
    %v2712 = vpop.f32.mrb[0].mxu0
    %v2713 = vadd.f32 0.0, %v2712
    %v2714 = vpop.f32.mrb[0].mxu0
    %2715 = vdwg.mxu0
    %vm2716 = vcmask 523264
    %v2718 = vsel %vm2716, %v2470, 0
    %2720 = vmatprep.subr.mxu0 0.0
    %2721 = vmatpush1.msra.mxu0 %v2488
    %2722 = vmatprep.subr.mxu0 0.0
    %2723 = vmatpush1.msra.mxu0 %v2489
    %2724 = vmatprep.subr.mxu0 0.0
    %2725 = vmatpush1.msra.mxu0 %v2490
    %2726 = vmatprep.subr.mxu0 0.0
    %2727 = vmatpush1.msra.mxu0 %v2491
    %2728 = vmatprep.subr.mxu0 0.0
    %2729 = vmatpush1.msra.mxu0 %v2492
    %2730 = vmatprep.subr.mxu0 0.0
    %2731 = vmatpush1.msra.mxu0 %v2493
    %2732 = vmatprep.subr.mxu0 0.0
    %2733 = vmatpush1.msra.mxu0 %v2494
    %2734 = vmatprep.subr.mxu0 0.0
    %2735 = vmatpush1.msra.mxu0 %v2495
    %2736 = vmatprep.subr.mxu0 0.0
    %2737 = vmatpush1.msra.mxu0 0.0
    %2738 = vmatprep.subr.mxu0 0.0
    %2739 = vmatpush1.msra.mxu0 0.0
    %2740 = vmatprep.subr.mxu0 0.0
    %2741 = vmatpush1.msra.mxu0 0.0
    %2742 = vmatprep.subr.mxu0 0.0
    %2743 = vmatpush1.msra.mxu0 0.0
    %2744 = vmatprep.subr.mxu0 0.0
    %2745 = vmatpush1.msra.mxu0 0.0
    %2746 = vmatprep.subr.mxu0 0.0
    %2747 = vmatpush1.msra.mxu0 0.0
    %2748 = vmatprep.subr.mxu0 0.0
    %2749 = vmatpush1.msra.mxu0 0.0
    %2750 = vmatprep.subr.mxu0 0.0
    %2751 = vmatpush1.msra.mxu0 0.0
    %2752 = vmatprep.subr.mxu0 0.0
    %2753 = vmatpush1.msra.mxu0 0.0
    %2754 = vmatprep.subr.mxu0 0.0
    %2755 = vmatpush1.msra.mxu0 0.0
    %2756 = vmatprep.subr.mxu0 0.0
    %2757 = vmatpush1.msra.mxu0 0.0
    %2758 = vmatprep.subr.mxu0 0.0
    %2759 = vmatpush1.msra.mxu0 0.0
    %2760 = vmatprep.subr.mxu0 0.0
    %2761 = vmatpush1.msra.mxu0 0.0
    %2762 = vmatprep.subr.mxu0 0.0
    %2763 = vmatpush1.msra.mxu0 0.0
    %2764 = vmatprep.subr.mxu0 0.0
    %2765 = vmatpush1.msra.mxu0 0.0
    %2766 = vmatprep.subr.mxu0 0.0
    %2767 = vmatpush1.msra.mxu0 0.0
    %2768 = vmatprep.subr.mxu0 0.0
    %2769 = vmatpush1.msra.mxu0 0.0
    %2770 = vmatprep.subr.mxu0 0.0
    %2771 = vmatpush1.msra.mxu0 0.0
    %2772 = vmatprep.subr.mxu0 0.0
    %2773 = vmatpush1.msra.mxu0 0.0
    %2774 = vmatprep.subr.mxu0 0.0
    %2775 = vmatpush1.msra.mxu0 0.0
    %2776 = vmatprep.subr.mxu0 0.0
    %2777 = vmatpush1.msra.mxu0 0.0
    %2778 = vmatprep.subr.mxu0 0.0
    %2779 = vmatpush1.msra.mxu0 0.0
    %2780 = vmatprep.subr.mxu0 0.0
    %2781 = vmatpush1.msra.mxu0 0.0
    %2782 = vmatprep.subr.mxu0 0.0
    %2783 = vmatpush1.msra.mxu0 0.0
    %2784 = vmatprep.mubr.f32.mxu0 0.0
    %2785 = vmatmul.mubr.f32.gmra.mrb[0].mxu0 %v2718
    %v2786 = vpop.f32.mrb[0].mxu0
    %v2787 = vadd.f32 0.0, %v2786
    %v2788 = vpop.f32.mrb[0].mxu0
    %2789 = vdwg.mxu0
    %2790 = vmatprep.subr.mxu0 0.0
    %2791 = vmatpush1.msra.mxu0 %v2513
    %2792 = vmatprep.subr.mxu0 0.0
    %2793 = vmatpush1.msra.mxu0 %v2514
    %2794 = vmatprep.subr.mxu0 0.0
    %2795 = vmatpush1.msra.mxu0 %v2515
    %2796 = vmatprep.subr.mxu0 0.0
    %2797 = vmatpush1.msra.mxu0 %v2516
    %2798 = vmatprep.subr.mxu0 0.0
    %2799 = vmatpush1.msra.mxu0 %v2517
    %2800 = vmatprep.subr.mxu0 0.0
    %2801 = vmatpush1.msra.mxu0 %v2518
    %2802 = vmatprep.subr.mxu0 0.0
    %2803 = vmatpush1.msra.mxu0 %v2519
    %2804 = vmatprep.subr.mxu0 0.0
    %2805 = vmatpush1.msra.mxu0 %v2520
    %2806 = vmatprep.subr.mxu0 0.0
    %2807 = vmatpush1.msra.mxu0 0.0
    %2808 = vmatprep.subr.mxu0 0.0
    %2809 = vmatpush1.msra.mxu0 0.0
    %2810 = vmatprep.subr.mxu0 0.0
    %2811 = vmatpush1.msra.mxu0 0.0
    %2812 = vmatprep.subr.mxu0 0.0
    %2813 = vmatpush1.msra.mxu0 0.0
    %2814 = vmatprep.subr.mxu0 0.0
    %2815 = vmatpush1.msra.mxu0 0.0
    %2816 = vmatprep.subr.mxu0 0.0
    %2817 = vmatpush1.msra.mxu0 0.0
    %2818 = vmatprep.subr.mxu0 0.0
    %2819 = vmatpush1.msra.mxu0 0.0
    %2820 = vmatprep.subr.mxu0 0.0
    %2821 = vmatpush1.msra.mxu0 0.0
    %2822 = vmatprep.subr.mxu0 0.0
    %2823 = vmatpush1.msra.mxu0 0.0
    %2824 = vmatprep.subr.mxu0 0.0
    %2825 = vmatpush1.msra.mxu0 0.0
    %2826 = vmatprep.subr.mxu0 0.0
    %2827 = vmatpush1.msra.mxu0 0.0
    %2828 = vmatprep.subr.mxu0 0.0
    %2829 = vmatpush1.msra.mxu0 0.0
    %2830 = vmatprep.subr.mxu0 0.0
    %2831 = vmatpush1.msra.mxu0 0.0
    %2832 = vmatprep.subr.mxu0 0.0
    %2833 = vmatpush1.msra.mxu0 0.0
    %2834 = vmatprep.subr.mxu0 0.0
    %2835 = vmatpush1.msra.mxu0 0.0
    %2836 = vmatprep.subr.mxu0 0.0
    %2837 = vmatpush1.msra.mxu0 0.0
    %2838 = vmatprep.subr.mxu0 0.0
    %2839 = vmatpush1.msra.mxu0 0.0
    %2840 = vmatprep.subr.mxu0 0.0
    %2841 = vmatpush1.msra.mxu0 0.0
    %2842 = vmatprep.subr.mxu0 0.0
    %2843 = vmatpush1.msra.mxu0 0.0
    %2844 = vmatprep.subr.mxu0 0.0
    %2845 = vmatpush1.msra.mxu0 0.0
    %2846 = vmatprep.subr.mxu0 0.0
    %2847 = vmatpush1.msra.mxu0 0.0
    %2848 = vmatprep.subr.mxu0 0.0
    %2849 = vmatpush1.msra.mxu0 0.0
    %2850 = vmatprep.subr.mxu0 0.0
    %2851 = vmatpush1.msra.mxu0 0.0
    %2852 = vmatprep.subr.mxu0 0.0
    %2853 = vmatpush1.msra.mxu0 0.0
    %2854 = vmatprep.mubr.f32.mxu0 0.0
    %2855 = vmatmul.mubr.f32.gmra.mrb[0].mxu0 %v2718
    %v2856 = vpop.f32.mrb[0].mxu0
    %v2857 = vadd.f32 0.0, %v2856
    %v2858 = vpop.f32.mrb[0].mxu0
    %2859 = vdwg.mxu0
    %2860 = vmatprep.subr.mxu0 0.0
    %2861 = vmatpush1.msra.mxu0 %v2538
    %2862 = vmatprep.subr.mxu0 0.0
    %2863 = vmatpush1.msra.mxu0 %v2539
    %2864 = vmatprep.subr.mxu0 0.0
    %2865 = vmatpush1.msra.mxu0 %v2540
    %2866 = vmatprep.subr.mxu0 0.0
    %2867 = vmatpush1.msra.mxu0 %v2541
    %2868 = vmatprep.subr.mxu0 0.0
    %2869 = vmatpush1.msra.mxu0 %v2542
    %2870 = vmatprep.subr.mxu0 0.0
    %2871 = vmatpush1.msra.mxu0 %v2543
    %2872 = vmatprep.subr.mxu0 0.0
    %2873 = vmatpush1.msra.mxu0 %v2544
    %2874 = vmatprep.subr.mxu0 0.0
    %2875 = vmatpush1.msra.mxu0 %v2545
    %2876 = vmatprep.subr.mxu0 0.0
    %2877 = vmatpush1.msra.mxu0 0.0
    %2878 = vmatprep.subr.mxu0 0.0
    %2879 = vmatpush1.msra.mxu0 0.0
    %2880 = vmatprep.subr.mxu0 0.0
    %2881 = vmatpush1.msra.mxu0 0.0
    %2882 = vmatprep.subr.mxu0 0.0
    %2883 = vmatpush1.msra.mxu0 0.0
    %2884 = vmatprep.subr.mxu0 0.0
    %2885 = vmatpush1.msra.mxu0 0.0
    %2886 = vmatprep.subr.mxu0 0.0
    %2887 = vmatpush1.msra.mxu0 0.0
    %2888 = vmatprep.subr.mxu0 0.0
    %2889 = vmatpush1.msra.mxu0 0.0
    %2890 = vmatprep.subr.mxu0 0.0
    %2891 = vmatpush1.msra.mxu0 0.0
    %2892 = vmatprep.subr.mxu0 0.0
    %2893 = vmatpush1.msra.mxu0 0.0
    %2894 = vmatprep.subr.mxu0 0.0
    %2895 = vmatpush1.msra.mxu0 0.0
    %2896 = vmatprep.subr.mxu0 0.0
    %2897 = vmatpush1.msra.mxu0 0.0
    %2898 = vmatprep.subr.mxu0 0.0
    %2899 = vmatpush1.msra.mxu0 0.0
    %2900 = vmatprep.subr.mxu0 0.0
    %2901 = vmatpush1.msra.mxu0 0.0
    %2902 = vmatprep.subr.mxu0 0.0
    %2903 = vmatpush1.msra.mxu0 0.0
    %2904 = vmatprep.subr.mxu0 0.0
    %2905 = vmatpush1.msra.mxu0 0.0
    %2906 = vmatprep.subr.mxu0 0.0
    %2907 = vmatpush1.msra.mxu0 0.0
    %2908 = vmatprep.subr.mxu0 0.0
    %2909 = vmatpush1.msra.mxu0 0.0
    %2910 = vmatprep.subr.mxu0 0.0
    %2911 = vmatpush1.msra.mxu0 0.0
    %2912 = vmatprep.subr.mxu0 0.0
    %2913 = vmatpush1.msra.mxu0 0.0
    %2914 = vmatprep.subr.mxu0 0.0
    %2915 = vmatpush1.msra.mxu0 0.0
    %2916 = vmatprep.subr.mxu0 0.0
    %2917 = vmatpush1.msra.mxu0 0.0
    %2918 = vmatprep.subr.mxu0 0.0
    %2919 = vmatpush1.msra.mxu0 0.0
    %2920 = vmatprep.subr.mxu0 0.0
    %2921 = vmatpush1.msra.mxu0 0.0
    %2922 = vmatprep.subr.mxu0 0.0
    %2923 = vmatpush1.msra.mxu0 0.0
    %2924 = vmatprep.mubr.f32.mxu0 0.0
    %2925 = vmatmul.mubr.f32.gmra.mrb[0].mxu0 %v2718
    %v2926 = vpop.f32.mrb[0].mxu0
    %v2927 = vadd.f32 0.0, %v2926
    %v2928 = vpop.f32.mrb[0].mxu0
    %2929 = vdwg.mxu0
    %2930 = vmatprep.subr.mxu0 0.0
    %2931 = vmatpush1.msra.mxu0 %v2563
    %2932 = vmatprep.subr.mxu0 0.0
    %2933 = vmatpush1.msra.mxu0 %v2564
    %2934 = vmatprep.subr.mxu0 0.0
    %2935 = vmatpush1.msra.mxu0 %v2565
    %2936 = vmatprep.subr.mxu0 0.0
    %2937 = vmatpush1.msra.mxu0 %v2566
    %2938 = vmatprep.subr.mxu0 0.0
    %2939 = vmatpush1.msra.mxu0 %v2567
    %2940 = vmatprep.subr.mxu0 0.0
    %2941 = vmatpush1.msra.mxu0 %v2568
    %2942 = vmatprep.subr.mxu0 0.0
    %2943 = vmatpush1.msra.mxu0 %v2569
    %2944 = vmatprep.subr.mxu0 0.0
    %2945 = vmatpush1.msra.mxu0 %v2570
    %2946 = vmatprep.subr.mxu0 0.0
    %2947 = vmatpush1.msra.mxu0 0.0
    %2948 = vmatprep.subr.mxu0 0.0
    %2949 = vmatpush1.msra.mxu0 0.0
    %2950 = vmatprep.subr.mxu0 0.0
    %2951 = vmatpush1.msra.mxu0 0.0
    %2952 = vmatprep.subr.mxu0 0.0
    %2953 = vmatpush1.msra.mxu0 0.0
    %2954 = vmatprep.subr.mxu0 0.0
    %2955 = vmatpush1.msra.mxu0 0.0
    %2956 = vmatprep.subr.mxu0 0.0
    %2957 = vmatpush1.msra.mxu0 0.0
    %2958 = vmatprep.subr.mxu0 0.0
    %2959 = vmatpush1.msra.mxu0 0.0
    %2960 = vmatprep.subr.mxu0 0.0
    %2961 = vmatpush1.msra.mxu0 0.0
    %2962 = vmatprep.subr.mxu0 0.0
    %2963 = vmatpush1.msra.mxu0 0.0
    %2964 = vmatprep.subr.mxu0 0.0
    %2965 = vmatpush1.msra.mxu0 0.0
    %2966 = vmatprep.subr.mxu0 0.0
    %2967 = vmatpush1.msra.mxu0 0.0
    %2968 = vmatprep.subr.mxu0 0.0
    %2969 = vmatpush1.msra.mxu0 0.0
    %2970 = vmatprep.subr.mxu0 0.0
    %2971 = vmatpush1.msra.mxu0 0.0
    %2972 = vmatprep.subr.mxu0 0.0
    %2973 = vmatpush1.msra.mxu0 0.0
    %2974 = vmatprep.subr.mxu0 0.0
    %2975 = vmatpush1.msra.mxu0 0.0
    %2976 = vmatprep.subr.mxu0 0.0
    %2977 = vmatpush1.msra.mxu0 0.0
    %2978 = vmatprep.subr.mxu0 0.0
    %2979 = vmatpush1.msra.mxu0 0.0
    %2980 = vmatprep.subr.mxu0 0.0
    %2981 = vmatpush1.msra.mxu0 0.0
    %2982 = vmatprep.subr.mxu0 0.0
    %2983 = vmatpush1.msra.mxu0 0.0
    %2984 = vmatprep.subr.mxu0 0.0
    %2985 = vmatpush1.msra.mxu0 0.0
    %2986 = vmatprep.subr.mxu0 0.0
    %2987 = vmatpush1.msra.mxu0 0.0
    %2988 = vmatprep.subr.mxu0 0.0
    %2989 = vmatpush1.msra.mxu0 0.0
    %2990 = vmatprep.subr.mxu0 0.0
    %2991 = vmatpush1.msra.mxu0 0.0
    %2992 = vmatprep.subr.mxu0 0.0
    %2993 = vmatpush1.msra.mxu0 0.0
    %2994 = vmatprep.mubr.f32.mxu0 0.0
    %2995 = vmatmul.mubr.f32.gmra.mrb[0].mxu0 %v2718
    %v2996 = vpop.f32.mrb[0].mxu0
    %v2997 = vadd.f32 0.0, %v2996
    %v2998 = vpop.f32.mrb[0].mxu0
    %2999 = vdwg.mxu0
    %v3000 = vsub.f32 %v2641, %v2470
    %v3001 = vsub.f32 %v2713, %v2470
    %v3002 = vsub.f32 %v2787, %v2470
    %v3003 = vsub.f32 %v2857, %v2470
    %v3004 = vsub.f32 %v2927, %v2470
    %v3005 = vsub.f32 %v2997, %v2470
    %v3006 = vand.u32 2147483647, %v3000
    %v3007 = vand.u32 2147483647, %v3001
    %v3008 = vand.u32 2147483647, %v3002
    %v3009 = vand.u32 2147483647, %v3003
    %v3010 = vand.u32 2147483647, %v3004
    %v3011 = vand.u32 2147483647, %v3005
    %vm3012 = vcmp.lt.f32.partialorder %v3006, 0.01
    %vm3013 = vcmp.lt.f32.partialorder %v3007, 0.01
    %vm3014 = vcmp.lt.f32.partialorder %v3008, 0.01
    %vm3015 = vcmp.lt.f32.partialorder %v3009, 0.01
    %vm3016 = vcmp.lt.f32.partialorder %v3010, 0.01
    %vm3017 = vcmp.lt.f32.partialorder %v3011, 0.01
    %v3018 = vsel %vm3012, 1, 0
    %v3019 = vsel %vm3013, 1, 0
    %v3020 = vsel %vm3014, 1, 0
    %v3021 = vsel %vm3015, 1, 0
    %v3022 = vsel %vm3016, 1, 0
    %v3023 = vsel %vm3017, 1, 0
    %v3024 = vcvt.s32.f32 %v3018
    %v3025 = vcvt.s32.f32 %v3019
    %v3026 = vcvt.s32.f32 %v3020
    %v3027 = vcvt.s32.f32 %v3021
    %v3028 = vcvt.s32.f32 %v3022
    %v3029 = vcvt.s32.f32 %v3023
    %v3030 = vmul.f32 %v3024, %v2466
    %v3031 = vmul.f32 %v3025, %v2466
    %v3032 = vmul.f32 %v3026, %v2466
    %v3033 = vmul.f32 %v3027, %v2466
    %v3034 = vmul.f32 %v3028, %v2466
    %v3035 = vmul.f32 %v3029, %v2466
    %vm3036 = vcmp.gt.f32.partialorder %v2641, 0.0
    %vm3037 = vcmp.gt.f32.partialorder %v2713, 0.0
    %vm3038 = vcmp.gt.f32.partialorder %v2787, 0.0
    %vm3039 = vcmp.gt.f32.partialorder %v2857, 0.0
    %vm3040 = vcmp.gt.f32.partialorder %v2927, 0.0
    %vm3041 = vcmp.gt.f32.partialorder %v2997, 0.0
    %v3042 = vsel %vm3036, 1, 0
    %v3043 = vsel %vm3037, 1, 0
    %v3044 = vsel %vm3038, 1, 0
    %v3045 = vsel %vm3039, 1, 0
    %v3046 = vsel %vm3040, 1, 0
    %v3047 = vsel %vm3041, 1, 0
    %v3048 = vcvt.s32.f32 %v3042
    %v3049 = vcvt.s32.f32 %v3043
    %v3050 = vcvt.s32.f32 %v3044
    %v3051 = vcvt.s32.f32 %v3045
    %v3052 = vcvt.s32.f32 %v3046
    %v3053 = vcvt.s32.f32 %v3047
    %v3054 = vmul.f32 %v3048, %v2466
    %v3055 = vmul.f32 %v3049, %v2466
    %v3056 = vmul.f32 %v3050, %v2466
    %v3057 = vmul.f32 %v3051, %v2466
    %v3058 = vmul.f32 %v3052, %v2466
    %v3059 = vmul.f32 %v3053, %v2466
    %3060 = vst.msk [vmem:[#allocation6] sm:$0xff] %vm2716, %v3030
    %3061 = vst.msk [vmem:[#allocation6 + $0x8] sm:$0xff] %vm2716, %v3031
    %3062 = vst.msk [vmem:[#allocation6 + $0x10] sm:$0xff] %vm2716, %v3032
    %3063 = vst.msk [vmem:[#allocation6 + $0x18] sm:$0xff] %vm2716, %v3033
    %3064 = vst.msk [vmem:[#allocation6 + $0x20] sm:$0xff] %vm2716, %v3034
    %3065 = vst.msk [vmem:[#allocation6 + $0x28] sm:$0xff] %vm2716, %v3035
    %3066 = vst.msk [vmem:[#allocation6 + $0x30] sm:$0xff] %vm2716, %v3054
    %3067 = vst.msk [vmem:[#allocation6 + $0x38] sm:$0xff] %vm2716, %v3055
    %3068 = vst.msk [vmem:[#allocation6 + $0x40] sm:$0xff] %vm2716, %v3056
    %3069 = vst.msk [vmem:[#allocation6 + $0x48] sm:$0xff] %vm2716, %v3057
    %3070 = vst.msk [vmem:[#allocation6 + $0x50] sm:$0xff] %vm2716, %v3058
    %3071 = vst.msk [vmem:[#allocation6 + $0x58] sm:$0xff] %vm2716, %v3059
    %3072 = vst.msk [vmem:[#allocation7] sm:$0xff] %vm2716, %v2461
    %v3073 = vand.u32 %v86, 7
    %v3074 = vand.u32 %v87, 7
    %v3075 = vand.u32 %v106, 7
    %v3076 = vand.u32 %v107, 7
    %v3077 = vand.u32 %v108, 7
    %v3078 = vand.u32 %v109, 7
    %v3079 = vand.u32 %v110, 7
    %v3080 = vand.u32 %v111, 7
    %v3081 = vsub.s32 %v86, %v3073
    %v3082 = vsub.s32 %v87, %v3074
    %v3083 = vsub.s32 %v106, %v3075
    %v3084 = vsub.s32 %v107, %v3076
    %v3085 = vsub.s32 %v108, %v3077
    %v3086 = vsub.s32 %v109, %v3078
    %v3087 = vsub.s32 %v110, %v3079
    %v3088 = vsub.s32 %v111, %v3080
    %v3089 = vand.u32 %v89, 3
    %v3090 = vsub.s32 %v89, %v3089
    %v3091 = vmul.u32 %v3090, 4
    %vm3092 = vcmp.eq.s32.totalorder %v3081, %v3091
    %vm3093 = vcmp.eq.s32.totalorder %v3082, %v3091
    %vm3094 = vcmp.eq.s32.totalorder %v3083, %v3091
    %vm3095 = vcmp.eq.s32.totalorder %v3084, %v3091
    %vm3096 = vcmp.eq.s32.totalorder %v3085, %v3091
    %vm3097 = vcmp.eq.s32.totalorder %v3086, %v3091
    %vm3098 = vcmp.eq.s32.totalorder %v3087, %v3091
    %vm3099 = vcmp.eq.s32.totalorder %v3088, %v3091
    %v3100 = vadd.s32 %v3091, 8
    %vm3101 = vcmp.eq.s32.totalorder %v3081, %v3100
    %vm3102 = vcmp.eq.s32.totalorder %v3082, %v3100
    %vm3103 = vcmp.eq.s32.totalorder %v3083, %v3100
    %vm3104 = vcmp.eq.s32.totalorder %v3084, %v3100
    %vm3105 = vcmp.eq.s32.totalorder %v3085, %v3100
    %vm3106 = vcmp.eq.s32.totalorder %v3086, %v3100
    %vm3107 = vcmp.eq.s32.totalorder %v3087, %v3100
    %vm3108 = vcmp.eq.s32.totalorder %v3088, %v3100
    %vm3109 = vmor %vm3092, %vm3101
    %vm3110 = vmor %vm3093, %vm3102
    %vm3111 = vmor %vm3094, %vm3103
    %vm3112 = vmor %vm3095, %vm3104
    %vm3113 = vmor %vm3096, %vm3105
    %vm3114 = vmor %vm3097, %vm3106
    %vm3115 = vmor %vm3098, %vm3107
    %vm3116 = vmor %vm3099, %vm3108
    %v3117 = vmul.u32 %v3089, 2
    %vm3118 = vcmp.eq.s32.totalorder %v3073, %v3117
    %vm3119 = vcmp.eq.s32.totalorder %v3074, %v3117
    %vm3120 = vcmp.eq.s32.totalorder %v3075, %v3117
    %vm3121 = vcmp.eq.s32.totalorder %v3076, %v3117
    %vm3122 = vcmp.eq.s32.totalorder %v3077, %v3117
    %vm3123 = vcmp.eq.s32.totalorder %v3078, %v3117
    %vm3124 = vcmp.eq.s32.totalorder %v3079, %v3117
    %vm3125 = vcmp.eq.s32.totalorder %v3080, %v3117
    %v3126 = vadd.s32 %v3117, 1
    %vm3127 = vcmp.eq.s32.totalorder %v3073, %v3126
    %vm3128 = vcmp.eq.s32.totalorder %v3074, %v3126
    %vm3129 = vcmp.eq.s32.totalorder %v3075, %v3126
    %vm3130 = vcmp.eq.s32.totalorder %v3076, %v3126
    %vm3131 = vcmp.eq.s32.totalorder %v3077, %v3126
    %vm3132 = vcmp.eq.s32.totalorder %v3078, %v3126
    %vm3133 = vcmp.eq.s32.totalorder %v3079, %v3126
    %vm3134 = vcmp.eq.s32.totalorder %v3080, %v3126
    %vm3135 = vmor %vm3118, %vm3127
    %vm3136 = vmor %vm3119, %vm3128
    %vm3137 = vmor %vm3120, %vm3129
    %vm3138 = vmor %vm3121, %vm3130
    %vm3139 = vmor %vm3122, %vm3131
    %vm3140 = vmor %vm3123, %vm3132
    %vm3141 = vmor %vm3124, %vm3133
    %vm3142 = vmor %vm3125, %vm3134
    %vm3143 = vmand %vm3109, %vm3135
    %vm3144 = vmand %vm3110, %vm3136
    %vm3145 = vmand %vm3111, %vm3137
    %vm3146 = vmand %vm3112, %vm3138
    %vm3147 = vmand %vm3113, %vm3139
    %vm3148 = vmand %vm3114, %vm3140
    %vm3149 = vmand %vm3115, %vm3141
    %vm3150 = vmand %vm3116, %vm3142
    %v3151 = vsel %vm3143, 1, 0
    %v3152 = vsel %vm3144, 1, 0
    %v3153 = vsel %vm3145, 1, 0
    %v3154 = vsel %vm3146, 1, 0
    %v3155 = vsel %vm3147, 1, 0
    %v3156 = vsel %vm3148, 1, 0
    %v3157 = vsel %vm3149, 1, 0
    %v3158 = vsel %vm3150, 1, 0
    %v3159 = vcvt.s32.f32 %v3151
    %v3160 = vcvt.s32.f32 %v3152
    %v3161 = vcvt.s32.f32 %v3153
    %v3162 = vcvt.s32.f32 %v3154
    %v3163 = vcvt.s32.f32 %v3155
    %v3164 = vcvt.s32.f32 %v3156
    %v3165 = vcvt.s32.f32 %v3157
    %v3166 = vcvt.s32.f32 %v3158
    %v3167 = vsel %vm2571, %v1820, 0
    %3169 = vmatprep.subr.mxu0 0.0
    %3170 = vmatpush1.msra.mxu0 %v2320
    %3171 = vmatprep.subr.mxu0 0.0
    %3172 = vmatpush1.msra.mxu0 0.0
    %3173 = vmatprep.subr.mxu0 0.0
    %3174 = vmatpush1.msra.mxu0 0.0
    %3175 = vmatprep.subr.mxu0 0.0
    %3176 = vmatpush1.msra.mxu0 0.0
    %3177 = vmatprep.subr.mxu0 0.0
    %3178 = vmatpush1.msra.mxu0 0.0
    %3179 = vmatprep.subr.mxu0 0.0
    %3180 = vmatpush1.msra.mxu0 0.0
    %3181 = vmatprep.subr.mxu0 0.0
    %3182 = vmatpush1.msra.mxu0 0.0
    %3183 = vmatprep.subr.mxu0 0.0
    %3184 = vmatpush1.msra.mxu0 0.0
    %3185 = vmatprep.subr.mxu0 0.0
    %3186 = vmatpush1.msra.mxu0 0.0
    %3187 = vmatprep.subr.mxu0 0.0
    %3188 = vmatpush1.msra.mxu0 0.0
    %3189 = vmatprep.subr.mxu0 0.0
    %3190 = vmatpush1.msra.mxu0 0.0
    %3191 = vmatprep.subr.mxu0 0.0
    %3192 = vmatpush1.msra.mxu0 0.0
    %3193 = vmatprep.subr.mxu0 0.0
    %3194 = vmatpush1.msra.mxu0 0.0
    %3195 = vmatprep.subr.mxu0 0.0
    %3196 = vmatpush1.msra.mxu0 0.0
    %3197 = vmatprep.subr.mxu0 0.0
    %3198 = vmatpush1.msra.mxu0 0.0
    %3199 = vmatprep.subr.mxu0 0.0
    %3200 = vmatpush1.msra.mxu0 0.0
    %3201 = vmatprep.subr.mxu0 0.0
    %3202 = vmatpush1.msra.mxu0 0.0
    %3203 = vmatprep.subr.mxu0 0.0
    %3204 = vmatpush1.msra.mxu0 0.0
    %3205 = vmatprep.subr.mxu0 0.0
    %3206 = vmatpush1.msra.mxu0 0.0
    %3207 = vmatprep.subr.mxu0 0.0
    %3208 = vmatpush1.msra.mxu0 0.0
    %3209 = vmatprep.subr.mxu0 0.0
    %3210 = vmatpush1.msra.mxu0 0.0
    %3211 = vmatprep.subr.mxu0 0.0
    %3212 = vmatpush1.msra.mxu0 0.0
    %3213 = vmatprep.subr.mxu0 0.0
    %3214 = vmatpush1.msra.mxu0 0.0
    %3215 = vmatprep.subr.mxu0 0.0
    %3216 = vmatpush1.msra.mxu0 0.0
    %3217 = vmatprep.subr.mxu0 0.0
    %3218 = vmatpush1.msra.mxu0 0.0
    %3219 = vmatprep.subr.mxu0 0.0
    %3220 = vmatpush1.msra.mxu0 0.0
    %3221 = vmatprep.subr.mxu0 0.0
    %3222 = vmatpush1.msra.mxu0 0.0
    %3223 = vmatprep.subr.mxu0 0.0
    %3224 = vmatpush1.msra.mxu0 0.0
    %3225 = vmatprep.subr.mxu0 0.0
    %3226 = vmatpush1.msra.mxu0 0.0
    %3227 = vmatprep.subr.mxu0 0.0
    %3228 = vmatpush1.msra.mxu0 0.0
    %3229 = vmatprep.subr.mxu0 0.0
    %3230 = vmatpush1.msra.mxu0 0.0
    %3231 = vmatprep.subr.mxu0 0.0
    %3232 = vmatpush1.msra.mxu0 0.0
    %3233 = vmatprep.mubr.f32.mxu0 0.0
    %3234 = vmatmul.mubr.f32.gmra.mrb[0].mxu0 %v3167
    %v3235 = vpop.f32.mrb[0].mxu0
    %v3236 = vadd.f32 0.0, %v3235
    %v3237 = vpop.f32.mrb[0].mxu0
    %3238 = vdwg.mxu0
    %v3240 = vsel %vm2716, %v3236, 0
    %3242 = vmatprep.subr.mxu0 0.0
    %3243 = vmatpush1.msra.mxu0 %v3159
    %3244 = vmatprep.subr.mxu0 0.0
    %3245 = vmatpush1.msra.mxu0 %v3160
    %3246 = vmatprep.subr.mxu0 0.0
    %3247 = vmatpush1.msra.mxu0 %v3161
    %3248 = vmatprep.subr.mxu0 0.0
    %3249 = vmatpush1.msra.mxu0 %v3162
    %3250 = vmatprep.subr.mxu0 0.0
    %3251 = vmatpush1.msra.mxu0 %v3163
    %3252 = vmatprep.subr.mxu0 0.0
    %3253 = vmatpush1.msra.mxu0 %v3164
    %3254 = vmatprep.subr.mxu0 0.0
    %3255 = vmatpush1.msra.mxu0 %v3165
    %3256 = vmatprep.subr.mxu0 0.0
    %3257 = vmatpush1.msra.mxu0 %v3166
    %3258 = vmatprep.subr.mxu0 0.0
    %3259 = vmatpush1.msra.mxu0 0.0
    %3260 = vmatprep.subr.mxu0 0.0
    %3261 = vmatpush1.msra.mxu0 0.0
    %3262 = vmatprep.subr.mxu0 0.0
    %3263 = vmatpush1.msra.mxu0 0.0
    %3264 = vmatprep.subr.mxu0 0.0
    %3265 = vmatpush1.msra.mxu0 0.0
    %3266 = vmatprep.subr.mxu0 0.0
    %3267 = vmatpush1.msra.mxu0 0.0
    %3268 = vmatprep.subr.mxu0 0.0
    %3269 = vmatpush1.msra.mxu0 0.0
    %3270 = vmatprep.subr.mxu0 0.0
    %3271 = vmatpush1.msra.mxu0 0.0
    %3272 = vmatprep.subr.mxu0 0.0
    %3273 = vmatpush1.msra.mxu0 0.0
    %3274 = vmatprep.subr.mxu0 0.0
    %3275 = vmatpush1.msra.mxu0 0.0
    %3276 = vmatprep.subr.mxu0 0.0
    %3277 = vmatpush1.msra.mxu0 0.0
    %3278 = vmatprep.subr.mxu0 0.0
    %3279 = vmatpush1.msra.mxu0 0.0
    %3280 = vmatprep.subr.mxu0 0.0
    %3281 = vmatpush1.msra.mxu0 0.0
    %3282 = vmatprep.subr.mxu0 0.0
    %3283 = vmatpush1.msra.mxu0 0.0
    %3284 = vmatprep.subr.mxu0 0.0
    %3285 = vmatpush1.msra.mxu0 0.0
    %3286 = vmatprep.subr.mxu0 0.0
    %3287 = vmatpush1.msra.mxu0 0.0
    %3288 = vmatprep.subr.mxu0 0.0
    %3289 = vmatpush1.msra.mxu0 0.0
    %3290 = vmatprep.subr.mxu0 0.0
    %3291 = vmatpush1.msra.mxu0 0.0
    %3292 = vmatprep.subr.mxu0 0.0
    %3293 = vmatpush1.msra.mxu0 0.0
    %3294 = vmatprep.subr.mxu0 0.0
    %3295 = vmatpush1.msra.mxu0 0.0
    %3296 = vmatprep.subr.mxu0 0.0
    %3297 = vmatpush1.msra.mxu0 0.0
    %3298 = vmatprep.subr.mxu0 0.0
    %3299 = vmatpush1.msra.mxu0 0.0
    %3300 = vmatprep.subr.mxu0 0.0
    %3301 = vmatpush1.msra.mxu0 0.0
    %3302 = vmatprep.subr.mxu0 0.0
    %3303 = vmatpush1.msra.mxu0 0.0
    %3304 = vmatprep.subr.mxu0 0.0
    %3305 = vmatpush1.msra.mxu0 0.0
    %3306 = vmatprep.mubr.f32.mxu0 0.0
    %3307 = vmatmul.mubr.f32.gmra.mrb[0].mxu0 %v3240
    %v3308 = vpop.f32.mrb[0].mxu0
    %v3309 = vadd.f32 0.0, %v3308
    %v3310 = vpop.f32.mrb[0].mxu0
    %3311 = vdwg.mxu0
    %3312 = vmatprep.subr.mxu0 0.0
    %3313 = vmatpush1.msra.mxu0 %v2461
    %3314 = vmatprep.subr.mxu0 0.0
    %3315 = vmatpush1.msra.mxu0 0.0
    %3316 = vmatprep.subr.mxu0 0.0
    %3317 = vmatpush1.msra.mxu0 0.0
    %3318 = vmatprep.subr.mxu0 0.0
    %3319 = vmatpush1.msra.mxu0 0.0
    %3320 = vmatprep.subr.mxu0 0.0
    %3321 = vmatpush1.msra.mxu0 0.0
    %3322 = vmatprep.subr.mxu0 0.0
    %3323 = vmatpush1.msra.mxu0 0.0
    %3324 = vmatprep.subr.mxu0 0.0
    %3325 = vmatpush1.msra.mxu0 0.0
    %3326 = vmatprep.subr.mxu0 0.0
    %3327 = vmatpush1.msra.mxu0 0.0
    %3328 = vmatprep.subr.mxu0 0.0
    %3329 = vmatpush1.msra.mxu0 0.0
    %3330 = vmatprep.subr.mxu0 0.0
    %3331 = vmatpush1.msra.mxu0 0.0
    %3332 = vmatprep.subr.mxu0 0.0
    %3333 = vmatpush1.msra.mxu0 0.0
    %3334 = vmatprep.subr.mxu0 0.0
    %3335 = vmatpush1.msra.mxu0 0.0
    %3336 = vmatprep.subr.mxu0 0.0
    %3337 = vmatpush1.msra.mxu0 0.0
    %3338 = vmatprep.subr.mxu0 0.0
    %3339 = vmatpush1.msra.mxu0 0.0
    %3340 = vmatprep.subr.mxu0 0.0
    %3341 = vmatpush1.msra.mxu0 0.0
    %3342 = vmatprep.subr.mxu0 0.0
    %3343 = vmatpush1.msra.mxu0 0.0
    %3344 = vmatprep.subr.mxu0 0.0
    %3345 = vmatpush1.msra.mxu0 0.0
    %3346 = vmatprep.subr.mxu0 0.0
    %3347 = vmatpush1.msra.mxu0 0.0
    %3348 = vmatprep.subr.mxu0 0.0
    %3349 = vmatpush1.msra.mxu0 0.0
    %3350 = vmatprep.subr.mxu0 0.0
    %3351 = vmatpush1.msra.mxu0 0.0
    %3352 = vmatprep.subr.mxu0 0.0
    %3353 = vmatpush1.msra.mxu0 0.0
    %3354 = vmatprep.subr.mxu0 0.0
    %3355 = vmatpush1.msra.mxu0 0.0
    %3356 = vmatprep.subr.mxu0 0.0
    %3357 = vmatpush1.msra.mxu0 0.0
    %3358 = vmatprep.subr.mxu0 0.0
    %3359 = vmatpush1.msra.mxu0 0.0
    %3360 = vmatprep.subr.mxu0 0.0
    %3361 = vmatpush1.msra.mxu0 0.0
    %3362 = vmatprep.subr.mxu0 0.0
    %3363 = vmatpush1.msra.mxu0 0.0
    %3364 = vmatprep.subr.mxu0 0.0
    %3365 = vmatpush1.msra.mxu0 0.0
    %3366 = vmatprep.subr.mxu0 0.0
    %3367 = vmatpush1.msra.mxu0 0.0
    %3368 = vmatprep.subr.mxu0 0.0
    %3369 = vmatpush1.msra.mxu0 0.0
    %3370 = vmatprep.subr.mxu0 0.0
    %3371 = vmatpush1.msra.mxu0 0.0
    %3372 = vmatprep.subr.mxu0 0.0
    %3373 = vmatpush1.msra.mxu0 0.0
    %3374 = vmatprep.subr.mxu0 0.0
    %3375 = vmatpush1.msra.mxu0 0.0
    %3376 = vmatprep.mubr.f32.mxu0 0.0
    %3377 = vmatmul.mubr.f32.gmra.mrb[0].mxu0 %v3167
    %v3378 = vpop.f32.mrb[0].mxu0
    %v3379 = vadd.f32 0.0, %v3378
    %v3380 = vpop.f32.mrb[0].mxu0
    %3381 = vdwg.mxu0
    %v3383 = vsel %vm2716, %v3379, 0
    %3385 = vmatprep.subr.mxu0 0.0
    %3386 = vmatpush1.msra.mxu0 %v3159
    %3387 = vmatprep.subr.mxu0 0.0
    %3388 = vmatpush1.msra.mxu0 %v3160
    %3389 = vmatprep.subr.mxu0 0.0
    %3390 = vmatpush1.msra.mxu0 %v3161
    %3391 = vmatprep.subr.mxu0 0.0
    %3392 = vmatpush1.msra.mxu0 %v3162
    %3393 = vmatprep.subr.mxu0 0.0
    %3394 = vmatpush1.msra.mxu0 %v3163
    %3395 = vmatprep.subr.mxu0 0.0
    %3396 = vmatpush1.msra.mxu0 %v3164
    %3397 = vmatprep.subr.mxu0 0.0
    %3398 = vmatpush1.msra.mxu0 %v3165
    %3399 = vmatprep.subr.mxu0 0.0
    %3400 = vmatpush1.msra.mxu0 %v3166
    %3401 = vmatprep.subr.mxu0 0.0
    %3402 = vmatpush1.msra.mxu0 0.0
    %3403 = vmatprep.subr.mxu0 0.0
    %3404 = vmatpush1.msra.mxu0 0.0
    %3405 = vmatprep.subr.mxu0 0.0
    %3406 = vmatpush1.msra.mxu0 0.0
    %3407 = vmatprep.subr.mxu0 0.0
    %3408 = vmatpush1.msra.mxu0 0.0
    %3409 = vmatprep.subr.mxu0 0.0
    %3410 = vmatpush1.msra.mxu0 0.0
    %3411 = vmatprep.subr.mxu0 0.0
    %3412 = vmatpush1.msra.mxu0 0.0
    %3413 = vmatprep.subr.mxu0 0.0
    %3414 = vmatpush1.msra.mxu0 0.0
    %3415 = vmatprep.subr.mxu0 0.0
    %3416 = vmatpush1.msra.mxu0 0.0
    %3417 = vmatprep.subr.mxu0 0.0
    %3418 = vmatpush1.msra.mxu0 0.0
    %3419 = vmatprep.subr.mxu0 0.0
    %3420 = vmatpush1.msra.mxu0 0.0
    %3421 = vmatprep.subr.mxu0 0.0
    %3422 = vmatpush1.msra.mxu0 0.0
    %3423 = vmatprep.subr.mxu0 0.0
    %3424 = vmatpush1.msra.mxu0 0.0
    %3425 = vmatprep.subr.mxu0 0.0
    %3426 = vmatpush1.msra.mxu0 0.0
    %3427 = vmatprep.subr.mxu0 0.0
    %3428 = vmatpush1.msra.mxu0 0.0
    %3429 = vmatprep.subr.mxu0 0.0
    %3430 = vmatpush1.msra.mxu0 0.0
    %3431 = vmatprep.subr.mxu0 0.0
    %3432 = vmatpush1.msra.mxu0 0.0
    %3433 = vmatprep.subr.mxu0 0.0
    %3434 = vmatpush1.msra.mxu0 0.0
    %3435 = vmatprep.subr.mxu0 0.0
    %3436 = vmatpush1.msra.mxu0 0.0
    %3437 = vmatprep.subr.mxu0 0.0
    %3438 = vmatpush1.msra.mxu0 0.0
    %3439 = vmatprep.subr.mxu0 0.0
    %3440 = vmatpush1.msra.mxu0 0.0
    %3441 = vmatprep.subr.mxu0 0.0
    %3442 = vmatpush1.msra.mxu0 0.0
    %3443 = vmatprep.subr.mxu0 0.0
    %3444 = vmatpush1.msra.mxu0 0.0
    %3445 = vmatprep.subr.mxu0 0.0
    %3446 = vmatpush1.msra.mxu0 0.0
    %3447 = vmatprep.subr.mxu0 0.0
    %3448 = vmatpush1.msra.mxu0 0.0
    %3449 = vmatprep.mubr.f32.mxu0 0.0
    %3450 = vmatmul.mubr.f32.gmra.mrb[0].mxu0 %v3383
    %v3451 = vpop.f32.mrb[0].mxu0
    %v3452 = vadd.f32 0.0, %v3451
    %v3453 = vpop.f32.mrb[0].mxu0
    %3454 = vdwg.mxu0
    %vm3455 = vcmp.gt.f32.partialorder %v3452, 0.0
    %v3456 = vsel %vm3455, 1, 0
    %v3457 = vcvt.s32.f32 %v3456
    %v3458 = vmax.f32 %v3452, 1.0
    %v3459 = vrcp.pop %v3458
    %v3460 = vmul.f32 %v3309, %v3459
    %v3461 = vsel %vm3455, %v3460, 0.0
    %v3462 = vsub.s32 %v89, 4
    %vm3463 = vcmp.eq.s32.totalorder %v86, %v3462
    %vm3464 = vcmp.eq.s32.totalorder %v87, %v3462
    %v3465 = vsel %vm3463, 1, 0
    %v3466 = vsel %vm3464, 1, 0
    %v3467 = vcvt.s32.f32 %v3465
    %v3468 = vcvt.s32.f32 %v3466
    %v3469 = vadd.s32 %v89, 4
    %vm3470 = vcmp.eq.s32.totalorder %v86, %v3469
    %vm3471 = vcmp.eq.s32.totalorder %v87, %v3469
    %v3472 = vsel %vm3470, 1, 0
    %v3473 = vsel %vm3471, 1, 0
    %v3474 = vcvt.s32.f32 %v3472
    %v3475 = vcvt.s32.f32 %v3473
    %vm3476 = vcmp.ne.s32.totalorder %v3089, 0
    %vm3477 = vmand %vm529, %vm3476
    %vm3478 = vmand %vm531, %vm3476
    %v3479 = vsel %vm3477, 1, 0
    %v3480 = vsel %vm3478, 1, 0
    %v3481 = vcvt.s32.f32 %v3479
    %v3482 = vcvt.s32.f32 %v3480
    %vm3483 = vcmp.ne.s32.totalorder %v3089, 3
    %vm3484 = vmand %vm789, %vm3483
    %vm3485 = vmand %vm791, %vm3483
    %v3486 = vsel %vm3484, 1, 0
    %v3487 = vsel %vm3485, 1, 0
    %v3488 = vcvt.s32.f32 %v3486
    %v3489 = vcvt.s32.f32 %v3487
    %vm3490 = vcmask 31744
    %v3491 = vsel %vm3490, %v96, 0
    %vm3493 = vcmask 1043456
    %v3495 = vsel %vm3493, %v3461, 0
    %3497 = vmatprep.subr.mxu0 0.0
    %3498 = vmatpush1.msra.mxu0 %v3495
    %3499 = vmatprep.subr.mxu0 0.0
    %3500 = vmatpush1.msra.mxu0 0.0
    %3501 = vmatprep.subr.mxu0 0.0
    %3502 = vmatpush1.msra.mxu0 0.0
    %3503 = vmatprep.subr.mxu0 0.0
    %3504 = vmatpush1.msra.mxu0 0.0
    %3505 = vmatprep.subr.mxu0 0.0
    %3506 = vmatpush1.msra.mxu0 0.0
    %3507 = vmatprep.subr.mxu0 0.0
    %3508 = vmatpush1.msra.mxu0 0.0
    %3509 = vmatprep.subr.mxu0 0.0
    %3510 = vmatpush1.msra.mxu0 0.0
    %3511 = vmatprep.subr.mxu0 0.0
    %3512 = vmatpush1.msra.mxu0 0.0
    %3513 = vmatprep.subr.mxu0 0.0
    %3514 = vmatpush1.msra.mxu0 0.0
    %3515 = vmatprep.subr.mxu0 0.0
    %3516 = vmatpush1.msra.mxu0 0.0
    %3517 = vmatprep.subr.mxu0 0.0
    %3518 = vmatpush1.msra.mxu0 0.0
    %3519 = vmatprep.subr.mxu0 0.0
    %3520 = vmatpush1.msra.mxu0 0.0
    %3521 = vmatprep.subr.mxu0 0.0
    %3522 = vmatpush1.msra.mxu0 0.0
    %3523 = vmatprep.subr.mxu0 0.0
    %3524 = vmatpush1.msra.mxu0 0.0
    %3525 = vmatprep.subr.mxu0 0.0
    %3526 = vmatpush1.msra.mxu0 0.0
    %3527 = vmatprep.subr.mxu0 0.0
    %3528 = vmatpush1.msra.mxu0 0.0
    %3529 = vmatprep.subr.mxu0 0.0
    %3530 = vmatpush1.msra.mxu0 0.0
    %3531 = vmatprep.subr.mxu0 0.0
    %3532 = vmatpush1.msra.mxu0 0.0
    %3533 = vmatprep.subr.mxu0 0.0
    %3534 = vmatpush1.msra.mxu0 0.0
    %3535 = vmatprep.subr.mxu0 0.0
    %3536 = vmatpush1.msra.mxu0 0.0
    %3537 = vmatprep.subr.mxu0 0.0
    %3538 = vmatpush1.msra.mxu0 0.0
    %3539 = vmatprep.subr.mxu0 0.0
    %3540 = vmatpush1.msra.mxu0 0.0
    %3541 = vmatprep.subr.mxu0 0.0
    %3542 = vmatpush1.msra.mxu0 0.0
    %3543 = vmatprep.subr.mxu0 0.0
    %3544 = vmatpush1.msra.mxu0 0.0
    %3545 = vmatprep.subr.mxu0 0.0
    %3546 = vmatpush1.msra.mxu0 0.0
    %3547 = vmatprep.subr.mxu0 0.0
    %3548 = vmatpush1.msra.mxu0 0.0
    %3549 = vmatprep.subr.mxu0 0.0
    %3550 = vmatpush1.msra.mxu0 0.0
    %3551 = vmatprep.subr.mxu0 0.0
    %3552 = vmatpush1.msra.mxu0 0.0
    %3553 = vmatprep.subr.mxu0 0.0
    %3554 = vmatpush1.msra.mxu0 0.0
    %3555 = vmatprep.subr.mxu0 0.0
    %3556 = vmatpush1.msra.mxu0 0.0
    %3557 = vmatprep.subr.mxu0 0.0
    %3558 = vmatpush1.msra.mxu0 0.0
    %3559 = vmatprep.subr.mxu0 0.0
    %3560 = vmatpush1.msra.mxu0 0.0
    %3561 = vmatprep.mubr.f32.mxu0 0.0
    %3562 = vmatmul.mubr.f32.gmra.mrb[0].mxu0 %v3491
    %v3563 = vpop.f32.mrb[0].mxu0
    %v3564 = vadd.f32 0.0, %v3563
    %v3565 = vpop.f32.mrb[0].mxu0
    %3566 = vdwg.mxu0
    %v3567 = vsel %vm3490, %v104, 0
    %3569 = vmatprep.subr.mxu0 0.0
    %3570 = vmatpush1.msra.mxu0 %v3495
    %3571 = vmatprep.subr.mxu0 0.0
    %3572 = vmatpush1.msra.mxu0 0.0
    %3573 = vmatprep.subr.mxu0 0.0
    %3574 = vmatpush1.msra.mxu0 0.0
    %3575 = vmatprep.subr.mxu0 0.0
    %3576 = vmatpush1.msra.mxu0 0.0
    %3577 = vmatprep.subr.mxu0 0.0
    %3578 = vmatpush1.msra.mxu0 0.0
    %3579 = vmatprep.subr.mxu0 0.0
    %3580 = vmatpush1.msra.mxu0 0.0
    %3581 = vmatprep.subr.mxu0 0.0
    %3582 = vmatpush1.msra.mxu0 0.0
    %3583 = vmatprep.subr.mxu0 0.0
    %3584 = vmatpush1.msra.mxu0 0.0
    %3585 = vmatprep.subr.mxu0 0.0
    %3586 = vmatpush1.msra.mxu0 0.0
    %3587 = vmatprep.subr.mxu0 0.0
    %3588 = vmatpush1.msra.mxu0 0.0
    %3589 = vmatprep.subr.mxu0 0.0
    %3590 = vmatpush1.msra.mxu0 0.0
    %3591 = vmatprep.subr.mxu0 0.0
    %3592 = vmatpush1.msra.mxu0 0.0
    %3593 = vmatprep.subr.mxu0 0.0
    %3594 = vmatpush1.msra.mxu0 0.0
    %3595 = vmatprep.subr.mxu0 0.0
    %3596 = vmatpush1.msra.mxu0 0.0
    %3597 = vmatprep.subr.mxu0 0.0
    %3598 = vmatpush1.msra.mxu0 0.0
    %3599 = vmatprep.subr.mxu0 0.0
    %3600 = vmatpush1.msra.mxu0 0.0
    %3601 = vmatprep.subr.mxu0 0.0
    %3602 = vmatpush1.msra.mxu0 0.0
    %3603 = vmatprep.subr.mxu0 0.0
    %3604 = vmatpush1.msra.mxu0 0.0
    %3605 = vmatprep.subr.mxu0 0.0
    %3606 = vmatpush1.msra.mxu0 0.0
    %3607 = vmatprep.subr.mxu0 0.0
    %3608 = vmatpush1.msra.mxu0 0.0
    %3609 = vmatprep.subr.mxu0 0.0
    %3610 = vmatpush1.msra.mxu0 0.0
    %3611 = vmatprep.subr.mxu0 0.0
    %3612 = vmatpush1.msra.mxu0 0.0
    %3613 = vmatprep.subr.mxu0 0.0
    %3614 = vmatpush1.msra.mxu0 0.0
    %3615 = vmatprep.subr.mxu0 0.0
    %3616 = vmatpush1.msra.mxu0 0.0
    %3617 = vmatprep.subr.mxu0 0.0
    %3618 = vmatpush1.msra.mxu0 0.0
    %3619 = vmatprep.subr.mxu0 0.0
    %3620 = vmatpush1.msra.mxu0 0.0
    %3621 = vmatprep.subr.mxu0 0.0
    %3622 = vmatpush1.msra.mxu0 0.0
    %3623 = vmatprep.subr.mxu0 0.0
    %3624 = vmatpush1.msra.mxu0 0.0
    %3625 = vmatprep.subr.mxu0 0.0
    %3626 = vmatpush1.msra.mxu0 0.0
    %3627 = vmatprep.subr.mxu0 0.0
    %3628 = vmatpush1.msra.mxu0 0.0
    %3629 = vmatprep.subr.mxu0 0.0
    %3630 = vmatpush1.msra.mxu0 0.0
    %3631 = vmatprep.subr.mxu0 0.0
    %3632 = vmatpush1.msra.mxu0 0.0
    %3633 = vmatprep.mubr.f32.mxu0 0.0
    %3634 = vmatmul.mubr.f32.gmra.mrb[0].mxu0 %v3567
    %v3635 = vpop.f32.mrb[0].mxu0
    %v3636 = vadd.f32 0.0, %v3635
    %v3637 = vpop.f32.mrb[0].mxu0
    %3638 = vdwg.mxu0
    %v3639 = vsel %vm1047, %v3461, 0
    %3641 = vmatprep.subr.mxu0 0.0
    %3642 = vmatpush1.msra.mxu0 %v3467
    %3643 = vmatprep.subr.mxu0 0.0
    %3644 = vmatpush1.msra.mxu0 %v3468
    %3645 = vmatprep.subr.mxu0 0.0
    %3646 = vmatpush1.msra.mxu0 0.0
    %3647 = vmatprep.subr.mxu0 0.0
    %3648 = vmatpush1.msra.mxu0 0.0
    %3649 = vmatprep.subr.mxu0 0.0
    %3650 = vmatpush1.msra.mxu0 0.0
    %3651 = vmatprep.subr.mxu0 0.0
    %3652 = vmatpush1.msra.mxu0 0.0
    %3653 = vmatprep.subr.mxu0 0.0
    %3654 = vmatpush1.msra.mxu0 0.0
    %3655 = vmatprep.subr.mxu0 0.0
    %3656 = vmatpush1.msra.mxu0 0.0
    %3657 = vmatprep.subr.mxu0 0.0
    %3658 = vmatpush1.msra.mxu0 0.0
    %3659 = vmatprep.subr.mxu0 0.0
    %3660 = vmatpush1.msra.mxu0 0.0
    %3661 = vmatprep.subr.mxu0 0.0
    %3662 = vmatpush1.msra.mxu0 0.0
    %3663 = vmatprep.subr.mxu0 0.0
    %3664 = vmatpush1.msra.mxu0 0.0
    %3665 = vmatprep.subr.mxu0 0.0
    %3666 = vmatpush1.msra.mxu0 0.0
    %3667 = vmatprep.subr.mxu0 0.0
    %3668 = vmatpush1.msra.mxu0 0.0
    %3669 = vmatprep.subr.mxu0 0.0
    %3670 = vmatpush1.msra.mxu0 0.0
    %3671 = vmatprep.subr.mxu0 0.0
    %3672 = vmatpush1.msra.mxu0 0.0
    %3673 = vmatprep.subr.mxu0 0.0
    %3674 = vmatpush1.msra.mxu0 0.0
    %3675 = vmatprep.subr.mxu0 0.0
    %3676 = vmatpush1.msra.mxu0 0.0
    %3677 = vmatprep.subr.mxu0 0.0
    %3678 = vmatpush1.msra.mxu0 0.0
    %3679 = vmatprep.subr.mxu0 0.0
    %3680 = vmatpush1.msra.mxu0 0.0
    %3681 = vmatprep.subr.mxu0 0.0
    %3682 = vmatpush1.msra.mxu0 0.0
    %3683 = vmatprep.subr.mxu0 0.0
    %3684 = vmatpush1.msra.mxu0 0.0
    %3685 = vmatprep.subr.mxu0 0.0
    %3686 = vmatpush1.msra.mxu0 0.0
    %3687 = vmatprep.subr.mxu0 0.0
    %3688 = vmatpush1.msra.mxu0 0.0
    %3689 = vmatprep.subr.mxu0 0.0
    %3690 = vmatpush1.msra.mxu0 0.0
    %3691 = vmatprep.subr.mxu0 0.0
    %3692 = vmatpush1.msra.mxu0 0.0
    %3693 = vmatprep.subr.mxu0 0.0
    %3694 = vmatpush1.msra.mxu0 0.0
    %3695 = vmatprep.subr.mxu0 0.0
    %3696 = vmatpush1.msra.mxu0 0.0
    %3697 = vmatprep.subr.mxu0 0.0
    %3698 = vmatpush1.msra.mxu0 0.0
    %3699 = vmatprep.subr.mxu0 0.0
    %3700 = vmatpush1.msra.mxu0 0.0
    %3701 = vmatprep.subr.mxu0 0.0
    %3702 = vmatpush1.msra.mxu0 0.0
    %3703 = vmatprep.subr.mxu0 0.0
    %3704 = vmatpush1.msra.mxu0 0.0
    %3705 = vmatprep.mubr.f32.mxu0 0.0
    %3706 = vmatmul.mubr.f32.gmra.mrb[0].mxu0 %v3639
    %v3707 = vpop.f32.mrb[0].mxu0
    %v3708 = vadd.f32 0.0, %v3707
    %v3709 = vpop.f32.mrb[0].mxu0
    %3710 = vdwg.mxu0
    %3711 = vmatprep.subr.mxu0 0.0
    %3712 = vmatpush1.msra.mxu0 %v3474
    %3713 = vmatprep.subr.mxu0 0.0
    %3714 = vmatpush1.msra.mxu0 %v3475
    %3715 = vmatprep.subr.mxu0 0.0
    %3716 = vmatpush1.msra.mxu0 0.0
    %3717 = vmatprep.subr.mxu0 0.0
    %3718 = vmatpush1.msra.mxu0 0.0
    %3719 = vmatprep.subr.mxu0 0.0
    %3720 = vmatpush1.msra.mxu0 0.0
    %3721 = vmatprep.subr.mxu0 0.0
    %3722 = vmatpush1.msra.mxu0 0.0
    %3723 = vmatprep.subr.mxu0 0.0
    %3724 = vmatpush1.msra.mxu0 0.0
    %3725 = vmatprep.subr.mxu0 0.0
    %3726 = vmatpush1.msra.mxu0 0.0
    %3727 = vmatprep.subr.mxu0 0.0
    %3728 = vmatpush1.msra.mxu0 0.0
    %3729 = vmatprep.subr.mxu0 0.0
    %3730 = vmatpush1.msra.mxu0 0.0
    %3731 = vmatprep.subr.mxu0 0.0
    %3732 = vmatpush1.msra.mxu0 0.0
    %3733 = vmatprep.subr.mxu0 0.0
    %3734 = vmatpush1.msra.mxu0 0.0
    %3735 = vmatprep.subr.mxu0 0.0
    %3736 = vmatpush1.msra.mxu0 0.0
    %3737 = vmatprep.subr.mxu0 0.0
    %3738 = vmatpush1.msra.mxu0 0.0
    %3739 = vmatprep.subr.mxu0 0.0
    %3740 = vmatpush1.msra.mxu0 0.0
    %3741 = vmatprep.subr.mxu0 0.0
    %3742 = vmatpush1.msra.mxu0 0.0
    %3743 = vmatprep.subr.mxu0 0.0
    %3744 = vmatpush1.msra.mxu0 0.0
    %3745 = vmatprep.subr.mxu0 0.0
    %3746 = vmatpush1.msra.mxu0 0.0
    %3747 = vmatprep.subr.mxu0 0.0
    %3748 = vmatpush1.msra.mxu0 0.0
    %3749 = vmatprep.subr.mxu0 0.0
    %3750 = vmatpush1.msra.mxu0 0.0
    %3751 = vmatprep.subr.mxu0 0.0
    %3752 = vmatpush1.msra.mxu0 0.0
    %3753 = vmatprep.subr.mxu0 0.0
    %3754 = vmatpush1.msra.mxu0 0.0
    %3755 = vmatprep.subr.mxu0 0.0
    %3756 = vmatpush1.msra.mxu0 0.0
    %3757 = vmatprep.subr.mxu0 0.0
    %3758 = vmatpush1.msra.mxu0 0.0
    %3759 = vmatprep.subr.mxu0 0.0
    %3760 = vmatpush1.msra.mxu0 0.0
    %3761 = vmatprep.subr.mxu0 0.0
    %3762 = vmatpush1.msra.mxu0 0.0
    %3763 = vmatprep.subr.mxu0 0.0
    %3764 = vmatpush1.msra.mxu0 0.0
    %3765 = vmatprep.subr.mxu0 0.0
    %3766 = vmatpush1.msra.mxu0 0.0
    %3767 = vmatprep.subr.mxu0 0.0
    %3768 = vmatpush1.msra.mxu0 0.0
    %3769 = vmatprep.subr.mxu0 0.0
    %3770 = vmatpush1.msra.mxu0 0.0
    %3771 = vmatprep.subr.mxu0 0.0
    %3772 = vmatpush1.msra.mxu0 0.0
    %3773 = vmatprep.subr.mxu0 0.0
    %3774 = vmatpush1.msra.mxu0 0.0
    %3775 = vmatprep.mubr.f32.mxu0 0.0
    %3776 = vmatmul.mubr.f32.gmra.mrb[0].mxu0 %v3639
    %v3777 = vpop.f32.mrb[0].mxu0
    %v3778 = vadd.f32 0.0, %v3777
    %v3779 = vpop.f32.mrb[0].mxu0
    %3780 = vdwg.mxu0
    %3781 = vmatprep.subr.mxu0 0.0
    %3782 = vmatpush1.msra.mxu0 %v3481
    %3783 = vmatprep.subr.mxu0 0.0
    %3784 = vmatpush1.msra.mxu0 %v3482
    %3785 = vmatprep.subr.mxu0 0.0
    %3786 = vmatpush1.msra.mxu0 0.0
    %3787 = vmatprep.subr.mxu0 0.0
    %3788 = vmatpush1.msra.mxu0 0.0
    %3789 = vmatprep.subr.mxu0 0.0
    %3790 = vmatpush1.msra.mxu0 0.0
    %3791 = vmatprep.subr.mxu0 0.0
    %3792 = vmatpush1.msra.mxu0 0.0
    %3793 = vmatprep.subr.mxu0 0.0
    %3794 = vmatpush1.msra.mxu0 0.0
    %3795 = vmatprep.subr.mxu0 0.0
    %3796 = vmatpush1.msra.mxu0 0.0
    %3797 = vmatprep.subr.mxu0 0.0
    %3798 = vmatpush1.msra.mxu0 0.0
    %3799 = vmatprep.subr.mxu0 0.0
    %3800 = vmatpush1.msra.mxu0 0.0
    %3801 = vmatprep.subr.mxu0 0.0
    %3802 = vmatpush1.msra.mxu0 0.0
    %3803 = vmatprep.subr.mxu0 0.0
    %3804 = vmatpush1.msra.mxu0 0.0
    %3805 = vmatprep.subr.mxu0 0.0
    %3806 = vmatpush1.msra.mxu0 0.0
    %3807 = vmatprep.subr.mxu0 0.0
    %3808 = vmatpush1.msra.mxu0 0.0
    %3809 = vmatprep.subr.mxu0 0.0
    %3810 = vmatpush1.msra.mxu0 0.0
    %3811 = vmatprep.subr.mxu0 0.0
    %3812 = vmatpush1.msra.mxu0 0.0
    %3813 = vmatprep.subr.mxu0 0.0
    %3814 = vmatpush1.msra.mxu0 0.0
    %3815 = vmatprep.subr.mxu0 0.0
    %3816 = vmatpush1.msra.mxu0 0.0
    %3817 = vmatprep.subr.mxu0 0.0
    %3818 = vmatpush1.msra.mxu0 0.0
    %3819 = vmatprep.subr.mxu0 0.0
    %3820 = vmatpush1.msra.mxu0 0.0
    %3821 = vmatprep.subr.mxu0 0.0
    %3822 = vmatpush1.msra.mxu0 0.0
    %3823 = vmatprep.subr.mxu0 0.0
    %3824 = vmatpush1.msra.mxu0 0.0
    %3825 = vmatprep.subr.mxu0 0.0
    %3826 = vmatpush1.msra.mxu0 0.0
    %3827 = vmatprep.subr.mxu0 0.0
    %3828 = vmatpush1.msra.mxu0 0.0
    %3829 = vmatprep.subr.mxu0 0.0
    %3830 = vmatpush1.msra.mxu0 0.0
    %3831 = vmatprep.subr.mxu0 0.0
    %3832 = vmatpush1.msra.mxu0 0.0
    %3833 = vmatprep.subr.mxu0 0.0
    %3834 = vmatpush1.msra.mxu0 0.0
    %3835 = vmatprep.subr.mxu0 0.0
    %3836 = vmatpush1.msra.mxu0 0.0
    %3837 = vmatprep.subr.mxu0 0.0
    %3838 = vmatpush1.msra.mxu0 0.0
    %3839 = vmatprep.subr.mxu0 0.0
    %3840 = vmatpush1.msra.mxu0 0.0
    %3841 = vmatprep.subr.mxu0 0.0
    %3842 = vmatpush1.msra.mxu0 0.0
    %3843 = vmatprep.subr.mxu0 0.0
    %3844 = vmatpush1.msra.mxu0 0.0
    %3845 = vmatprep.mubr.f32.mxu0 0.0
    %3846 = vmatmul.mubr.f32.gmra.mrb[0].mxu0 %v3639
    %v3847 = vpop.f32.mrb[0].mxu0
    %v3848 = vadd.f32 0.0, %v3847
    %v3849 = vpop.f32.mrb[0].mxu0
    %3850 = vdwg.mxu0
    %3851 = vmatprep.subr.mxu0 0.0
    %3852 = vmatpush1.msra.mxu0 %v3488
    %3853 = vmatprep.subr.mxu0 0.0
    %3854 = vmatpush1.msra.mxu0 %v3489
    %3855 = vmatprep.subr.mxu0 0.0
    %3856 = vmatpush1.msra.mxu0 0.0
    %3857 = vmatprep.subr.mxu0 0.0
    %3858 = vmatpush1.msra.mxu0 0.0
    %3859 = vmatprep.subr.mxu0 0.0
    %3860 = vmatpush1.msra.mxu0 0.0
    %3861 = vmatprep.subr.mxu0 0.0
    %3862 = vmatpush1.msra.mxu0 0.0
    %3863 = vmatprep.subr.mxu0 0.0
    %3864 = vmatpush1.msra.mxu0 0.0
    %3865 = vmatprep.subr.mxu0 0.0
    %3866 = vmatpush1.msra.mxu0 0.0
    %3867 = vmatprep.subr.mxu0 0.0
    %3868 = vmatpush1.msra.mxu0 0.0
    %3869 = vmatprep.subr.mxu0 0.0
    %3870 = vmatpush1.msra.mxu0 0.0
    %3871 = vmatprep.subr.mxu0 0.0
    %3872 = vmatpush1.msra.mxu0 0.0
    %3873 = vmatprep.subr.mxu0 0.0
    %3874 = vmatpush1.msra.mxu0 0.0
    %3875 = vmatprep.subr.mxu0 0.0
    %3876 = vmatpush1.msra.mxu0 0.0
    %3877 = vmatprep.subr.mxu0 0.0
    %3878 = vmatpush1.msra.mxu0 0.0
    %3879 = vmatprep.subr.mxu0 0.0
    %3880 = vmatpush1.msra.mxu0 0.0
    %3881 = vmatprep.subr.mxu0 0.0
    %3882 = vmatpush1.msra.mxu0 0.0
    %3883 = vmatprep.subr.mxu0 0.0
    %3884 = vmatpush1.msra.mxu0 0.0
    %3885 = vmatprep.subr.mxu0 0.0
    %3886 = vmatpush1.msra.mxu0 0.0
    %3887 = vmatprep.subr.mxu0 0.0
    %3888 = vmatpush1.msra.mxu0 0.0
    %3889 = vmatprep.subr.mxu0 0.0
    %3890 = vmatpush1.msra.mxu0 0.0
    %3891 = vmatprep.subr.mxu0 0.0
    %3892 = vmatpush1.msra.mxu0 0.0
    %3893 = vmatprep.subr.mxu0 0.0
    %3894 = vmatpush1.msra.mxu0 0.0
    %3895 = vmatprep.subr.mxu0 0.0
    %3896 = vmatpush1.msra.mxu0 0.0
    %3897 = vmatprep.subr.mxu0 0.0
    %3898 = vmatpush1.msra.mxu0 0.0
    %3899 = vmatprep.subr.mxu0 0.0
    %3900 = vmatpush1.msra.mxu0 0.0
    %3901 = vmatprep.subr.mxu0 0.0
    %3902 = vmatpush1.msra.mxu0 0.0
    %3903 = vmatprep.subr.mxu0 0.0
    %3904 = vmatpush1.msra.mxu0 0.0
    %3905 = vmatprep.subr.mxu0 0.0
    %3906 = vmatpush1.msra.mxu0 0.0
    %3907 = vmatprep.subr.mxu0 0.0
    %3908 = vmatpush1.msra.mxu0 0.0
    %3909 = vmatprep.subr.mxu0 0.0
    %3910 = vmatpush1.msra.mxu0 0.0
    %3911 = vmatprep.subr.mxu0 0.0
    %3912 = vmatpush1.msra.mxu0 0.0
    %3913 = vmatprep.subr.mxu0 0.0
    %3914 = vmatpush1.msra.mxu0 0.0
    %3915 = vmatprep.mubr.f32.mxu0 0.0
    %3916 = vmatmul.mubr.f32.gmra.mrb[0].mxu0 %v3639
    %v3917 = vpop.f32.mrb[0].mxu0
    %v3918 = vadd.f32 0.0, %v3917
    %v3919 = vpop.f32.mrb[0].mxu0
    %3920 = vdwg.mxu0
    %v3921 = vsub.f32 %v3564, %v3461
    %v3922 = vsub.f32 %v3636, %v3461
    %v3923 = vsub.f32 %v3708, %v3461
    %v3924 = vsub.f32 %v3778, %v3461
    %v3925 = vsub.f32 %v3848, %v3461
    %v3926 = vsub.f32 %v3918, %v3461
    %v3927 = vand.u32 2147483647, %v3921
    %v3928 = vand.u32 2147483647, %v3922
    %v3929 = vand.u32 2147483647, %v3923
    %v3930 = vand.u32 2147483647, %v3924
    %v3931 = vand.u32 2147483647, %v3925
    %v3932 = vand.u32 2147483647, %v3926
    %vm3933 = vcmp.lt.f32.partialorder %v3927, 0.01
    %vm3934 = vcmp.lt.f32.partialorder %v3928, 0.01
    %vm3935 = vcmp.lt.f32.partialorder %v3929, 0.01
    %vm3936 = vcmp.lt.f32.partialorder %v3930, 0.01
    %vm3937 = vcmp.lt.f32.partialorder %v3931, 0.01
    %vm3938 = vcmp.lt.f32.partialorder %v3932, 0.01
    %v3939 = vsel %vm3933, 1, 0
    %v3940 = vsel %vm3934, 1, 0
    %v3941 = vsel %vm3935, 1, 0
    %v3942 = vsel %vm3936, 1, 0
    %v3943 = vsel %vm3937, 1, 0
    %v3944 = vsel %vm3938, 1, 0
    %v3945 = vcvt.s32.f32 %v3939
    %v3946 = vcvt.s32.f32 %v3940
    %v3947 = vcvt.s32.f32 %v3941
    %v3948 = vcvt.s32.f32 %v3942
    %v3949 = vcvt.s32.f32 %v3943
    %v3950 = vcvt.s32.f32 %v3944
    %v3951 = vmul.f32 %v3945, %v3457
    %v3952 = vmul.f32 %v3946, %v3457
    %v3953 = vmul.f32 %v3947, %v3457
    %v3954 = vmul.f32 %v3948, %v3457
    %v3955 = vmul.f32 %v3949, %v3457
    %v3956 = vmul.f32 %v3950, %v3457
    %vm3957 = vcmp.gt.f32.partialorder %v3564, 0.0
    %vm3958 = vcmp.gt.f32.partialorder %v3636, 0.0
    %vm3959 = vcmp.gt.f32.partialorder %v3708, 0.0
    %vm3960 = vcmp.gt.f32.partialorder %v3778, 0.0
    %vm3961 = vcmp.gt.f32.partialorder %v3848, 0.0
    %vm3962 = vcmp.gt.f32.partialorder %v3918, 0.0
    %v3963 = vsel %vm3957, 1, 0
    %v3964 = vsel %vm3958, 1, 0
    %v3965 = vsel %vm3959, 1, 0
    %v3966 = vsel %vm3960, 1, 0
    %v3967 = vsel %vm3961, 1, 0
    %v3968 = vsel %vm3962, 1, 0
    %v3969 = vcvt.s32.f32 %v3963
    %v3970 = vcvt.s32.f32 %v3964
    %v3971 = vcvt.s32.f32 %v3965
    %v3972 = vcvt.s32.f32 %v3966
    %v3973 = vcvt.s32.f32 %v3967
    %v3974 = vcvt.s32.f32 %v3968
    %v3975 = vmul.f32 %v3969, %v3457
    %v3976 = vmul.f32 %v3970, %v3457
    %v3977 = vmul.f32 %v3971, %v3457
    %v3978 = vmul.f32 %v3972, %v3457
    %v3979 = vmul.f32 %v3973, %v3457
    %v3980 = vmul.f32 %v3974, %v3457
    %vm3981 = vcmask 125952
    %3982 = vst.msk [vmem:[#allocation9] sm:$0xf] %vm3981, %v3951
    %3983 = vst.msk [vmem:[#allocation9 + $0x4] sm:$0xf] %vm3981, %v3952
    %3984 = vst.msk [vmem:[#allocation9 + $0x8] sm:$0xf] %vm3981, %v3953
    %3985 = vst.msk [vmem:[#allocation9 + $0xc] sm:$0xf] %vm3981, %v3954
    %3986 = vst.msk [vmem:[#allocation9 + $0x10] sm:$0xf] %vm3981, %v3955
    %3987 = vst.msk [vmem:[#allocation9 + $0x14] sm:$0xf] %vm3981, %v3956
    %3988 = vst.msk [vmem:[#allocation9 + $0x18] sm:$0xf] %vm3981, %v3975
    %3989 = vst.msk [vmem:[#allocation9 + $0x1c] sm:$0xf] %vm3981, %v3976
    %3990 = vst.msk [vmem:[#allocation9 + $0x20] sm:$0xf] %vm3981, %v3977
    %3991 = vst.msk [vmem:[#allocation9 + $0x24] sm:$0xf] %vm3981, %v3978
    %3992 = vst.msk [vmem:[#allocation9 + $0x28] sm:$0xf] %vm3981, %v3979
    %3993 = vst.msk [vmem:[#allocation9 + $0x2c] sm:$0xf] %vm3981, %v3980
    %3994 = vst.msk [vmem:[#allocation10] sm:$0xf] %vm3981, %v3452
    // Predicated region
    $region10: #{_lambda_.1} parent=1 // pred_check
      _
    $region11: #{_lambda_.1} parent=1 // pred_check_branch
      %3996 = sbr.rel (0) target = $region13
    $region12: #{_lambda_.1} parent=1 // pred_region
      %s3998 = ssub.s32 6144, 6144
      %3999 = vsyncadd [#allocation3], %s3998
      %s4000 = sshll.u32 [#allocation2], 4
      %s4001 = int_to_ptr.vmem [resolvable:$true] %s4000
      %4006 = dma.vmem_to_hbm [thread:$0]  %s4001, 6144, %s2, [#allocation3], 256, 256, 16
    $region13: #{_lambda_.1} parent=1 // pred_fallthru
      _
    // Predicated region
    $region14: #{_lambda_.1} parent=1 // pred_check
      _
    $region15: #{_lambda_.1} parent=1 // pred_check_branch
      %4008 = sbr.rel (0) target = $region17
    $region16: #{_lambda_.1} parent=1 // pred_region
      %s4010 = ssub.s32 512, 512
      %4011 = vsyncadd [#allocation5], %s4010
      %s4012 = sshll.u32 [#allocation4], 4
      %s4013 = int_to_ptr.vmem [resolvable:$true] %s4012
      %4018 = dma.vmem_to_hbm [thread:$0]  %s4013, 512, %s3, [#allocation5], 256, 256, 16
    $region17: #{_lambda_.1} parent=1 // pred_fallthru
      _
    // Predicated region
    $region18: #{_lambda_.1} parent=1 // pred_check
      _
    $region19: #{_lambda_.1} parent=1 // pred_check_branch
      %4020 = sbr.rel (0) target = $region21
    $region20: #{_lambda_.1} parent=1 // pred_region
      %s4022 = ssub.s32 1536, 1536
      %4023 = vsyncadd [#allocation5], %s4022
      %s4024 = sshll.u32 [#allocation6], 4
      %s4025 = int_to_ptr.vmem [resolvable:$true] %s4024
      %4030 = dma.vmem_to_hbm [thread:$0]  %s4025, 1536, %s4, [#allocation5], 128, 128, 8
    $region21: #{_lambda_.1} parent=1 // pred_fallthru
      _
    // Predicated region
    $region22: #{_lambda_.1} parent=1 // pred_check
      _
    $region23: #{_lambda_.1} parent=1 // pred_check_branch
      %4032 = sbr.rel (0) target = $region25
    $region24: #{_lambda_.1} parent=1 // pred_region
      %s4034 = ssub.s32 128, 128
      %4035 = vsyncadd [#allocation8], %s4034
      %s4037 = sshll.u32 [#allocation7], 4
      %s4038 = int_to_ptr.vmem [resolvable:$true] %s4037
      %4040 = dma.vmem_to_hbm [thread:$0]  %s4038, 128, %s5, [#allocation8]
    $region25: #{_lambda_.1} parent=1 // pred_fallthru
      _
    // Predicated region
    $region26: #{_lambda_.1} parent=1 // pred_check
      _
    $region27: #{_lambda_.1} parent=1 // pred_check_branch
      %4042 = sbr.rel (0) target = $region29
    $region28: #{_lambda_.1} parent=1 // pred_region
      %s4044 = ssub.s32 768, 768
      %4045 = vsyncadd [#allocation8], %s4044
      %s4046 = sshll.u32 [#allocation9], 4
      %s4047 = int_to_ptr.vmem [resolvable:$true] %s4046
      %4052 = dma.vmem_to_hbm [thread:$0]  %s4047, 768, %s6, [#allocation8], 64, 64, 4
    $region29: #{_lambda_.1} parent=1 // pred_fallthru
      _
    // Predicated region
    $region30: #{_lambda_.1} parent=1 // pred_check
      _
    $region31: #{_lambda_.1} parent=1 // pred_check_branch
      %4054 = sbr.rel (0) target = $region33
    $region32: #{_lambda_.1} parent=1 // pred_region
      %s4056 = ssub.s32 64, 64
      %4057 = vsyncadd [#allocation11], %s4056
      %s4059 = sshll.u32 [#allocation10], 4
      %s4060 = int_to_ptr.vmem [resolvable:$true] %s4059
      %4062 = dma.vmem_to_hbm [thread:$0]  %s4060, 64, %s7, [#allocation11]
    $region33: #{_lambda_.1} parent=1 // pred_fallthru
      _
    // Predicated region
    $region34: #{_lambda_.1} parent=1 // pred_check
      _
    $region35: #{_lambda_.1} parent=1 // pred_check_branch
      %4064 = sbr.rel (0) target = $region37
    $region36: #{_lambda_.1} parent=1 // pred_region
      %4065 = dma.done [#allocation3], 6144
    $region37: #{_lambda_.1} parent=1 // pred_fallthru
      _
    // Predicated region
    $region38: #{_lambda_.1} parent=1 // pred_check
      _
    $region39: #{_lambda_.1} parent=1 // pred_check_branch
      %4067 = sbr.rel (0) target = $region41
    $region40: #{_lambda_.1} parent=1 // pred_region
      %4068 = dma.done [#allocation5], 512
    $region41: #{_lambda_.1} parent=1 // pred_fallthru
      _
    // Predicated region
    $region42: #{_lambda_.1} parent=1 // pred_check
      _
    $region43: #{_lambda_.1} parent=1 // pred_check_branch
      %4070 = sbr.rel (0) target = $region45
    $region44: #{_lambda_.1} parent=1 // pred_region
      %4071 = dma.done [#allocation5], 1536
    $region45: #{_lambda_.1} parent=1 // pred_fallthru
      _
    // Predicated region
    $region46: #{_lambda_.1} parent=1 // pred_check
      _
    $region47: #{_lambda_.1} parent=1 // pred_check_branch
      %4073 = sbr.rel (0) target = $region49
    $region48: #{_lambda_.1} parent=1 // pred_region
      %4074 = dma.done [#allocation8], 128
    $region49: #{_lambda_.1} parent=1 // pred_fallthru
      _
    // Predicated region
    $region50: #{_lambda_.1} parent=1 // pred_check
      _
    $region51: #{_lambda_.1} parent=1 // pred_check_branch
      %4076 = sbr.rel (0) target = $region53
    $region52: #{_lambda_.1} parent=1 // pred_region
      %4077 = dma.done [#allocation8], 768
    $region53: #{_lambda_.1} parent=1 // pred_fallthru
      _
    // Predicated region
    $region54: #{_lambda_.1} parent=1 // pred_check
      _
    $region55: #{_lambda_.1} parent=1 // pred_check_branch
      %4079 = sbr.rel (0) target = $region57
    $region56: #{_lambda_.1} parent=1 // pred_region
      %4080 = dma.done [#allocation11], 64
    $region57: #{_lambda_.1} parent=1 // pred_fallthru
      _
    %4081 = vsyncpa [#allocation3], 1
    %4082 = vsyncpa [#allocation5], 1
    %4083 = vsyncpa [#allocation8], 1
    %4084 = vsyncpa [#allocation11], 1

</llo_original>
